<compile_context>
chip_gen: v5e
topology: v5e:2x2
jax: 0.10.0
libtpu: 0.0.40
codegen_flags: <defaults>
</compile_context>

<pallas_src>
import math
import functools

import jax
import jax.numpy as jnp
from jax.experimental import pallas as pl
from jax.experimental.pallas import tpu as pltpu


def encoder_layer_kernel(x_res_ref, x_full_ref,
                         wq_ref, bq_ref, wkv_ref, bkv_ref,
                         wo_ref, bo_ref,
                         g1_ref, beta1_ref,
                         w1_ref, b1_ref, w2_ref, b2_ref,
                         g2_ref, beta2_ref,
                         o_ref,
                         k_scr, v_scr, m_scr, l_scr, acc_scr,
                         *, num_heads, d_k, d_model, seq_len, q_tile, kv_tile,
                         eps=1e-5):
    H, dk, D, S = num_heads, d_k, d_model, seq_len
    TQ, TK = q_tile, kv_tile
    n_kv = S // TK
    qi = pl.program_id(1)
    bf16, f32 = jnp.bfloat16, jnp.float32

    # ---- K/V projection for the whole sequence, once per batch element ----
    # Chunked over rows so only a (TK, 2D) intermediate is ever live.
    @pl.when(qi == 0)
    def _project_kv():
        @pl.loop(0, n_kv)
        def _chunk(c):
            r = pl.multiple_of(c * TK, TK)
            xc = x_full_ref[0, pl.ds(r, TK), :]                           # (TK, D) bf16
            kv = jnp.dot(xc, wkv_ref[...],
                         preferred_element_type=f32) + bkv_ref[...]       # (TK, 2D) f32
            k_part = kv[:, :D].reshape(TK, H, dk)
            v_part = kv[:, D:].reshape(TK, H, dk)
            k_scr[:, pl.ds(r, TK), :] = jnp.transpose(k_part, (1, 0, 2)).astype(bf16)
            v_scr[:, pl.ds(r, TK), :] = jnp.transpose(v_part, (1, 0, 2)).astype(bf16)

    # ---- per-tile Q projection: only the TQ rows this grid step needs ----
    x_rows = x_res_ref[0].astype(f32)                                     # (TQ, D)
    q_flat = jnp.dot(x_res_ref[0].astype(bf16), wq_ref[...],
                     preferred_element_type=f32) + bq_ref[...]            # (TQ, D)
    q_t = jnp.transpose(q_flat.reshape(TQ, H, dk), (1, 0, 2)).astype(bf16)  # (H, TQ, dk)

    scale = 1.0 / math.sqrt(dk)

    # ---- flash attention over KV tiles; accumulators live in VMEM scratch ----
    m_scr[...] = jnp.full((H, TQ), -jnp.inf, f32)
    l_scr[...] = jnp.zeros((H, TQ), f32)
    acc_scr[...] = jnp.zeros((H, TQ, dk), f32)

    @pl.loop(0, n_kv, unroll=n_kv <= 8)
    def _kv_step(kj):
        r = pl.multiple_of(kj * TK, TK)
        k_t = k_scr[:, pl.ds(r, TK), :]                                   # (H, TK, dk) bf16
        v_t = v_scr[:, pl.ds(r, TK), :]
        s = jnp.einsum("hqd,hkd->hqk", q_t, k_t,
                       preferred_element_type=f32) * scale                # (H, TQ, TK)
        # TODO(synk): attention mask (mask=None default) not implemented.
        m_prev = m_scr[...]                                               # (H, TQ)
        m_new = jnp.maximum(m_prev, jnp.max(s, axis=-1))
        alpha = jnp.exp(m_prev - m_new)
        p = jnp.exp(s - m_new[:, :, None])
        l_scr[...] = alpha * l_scr[...] + jnp.sum(p, axis=-1)
        acc_scr[...] = (alpha[:, :, None] * acc_scr[...]
                        + jnp.einsum("hqk,hkd->hqd", p.astype(bf16), v_t,
                                     preferred_element_type=f32))
        m_scr[...] = m_new

    ctx = acc_scr[...] * pl.reciprocal(l_scr[...], approx=True)[:, :, None]  # (H, TQ, dk)

    # ---- output projection, head-batched (no combine-heads relayout) ----
    attn = jnp.einsum("hqd,hdD->hqD", ctx.astype(bf16), wo_ref[...],
                      preferred_element_type=f32)                          # (H, TQ, D)
    attn_out = jnp.sum(attn, axis=0) + bo_ref[...]                         # (TQ, D)

    # ---- residual + LayerNorm 1 (dropout = identity in eval) ----
    y = x_rows + attn_out
    mu = jnp.mean(y, axis=-1, keepdims=True)
    var = jnp.mean(jnp.square(y - mu), axis=-1, keepdims=True)
    y = (y - mu) * jax.lax.rsqrt(var + eps)
    y = y * g1_ref[...] + beta1_ref[...]

    # ---- position-wise feed forward: Linear -> ReLU -> Linear ----
    # TODO(synk): d_ff tiling for very large d_ff on v7x (see header).
    h1 = jnp.dot(y.astype(bf16), w1_ref[...], preferred_element_type=f32) + b1_ref[...]
    h1 = jnp.maximum(h1, 0.0)
    ff = jnp.dot(h1.astype(bf16), w2_ref[...], preferred_element_type=f32) + b2_ref[...]

    # ---- residual + LayerNorm 2 ----
    z = y + ff
    mu2 = jnp.mean(z, axis=-1, keepdims=True)
    var2 = jnp.mean(jnp.square(z - mu2), axis=-1, keepdims=True)
    z = (z - mu2) * jax.lax.rsqrt(var2 + eps)
    z = z * g2_ref[...] + beta2_ref[...]

    o_ref[0] = z.astype(o_ref.dtype)


def encoder_layer(x, params, num_heads, *, q_tile=128, kv_tile=128):
    # On v6e/v7x, raise q_tile/kv_tile to 256 if VMEM allows; keep 128 on v5e.
    B, S, D = x.shape
    H = num_heads
    assert D % H == 0
    dk = D // H
    d_ff = params["w1"].shape[1]

    TQ = min(q_tile, S)
    TK = min(kv_tile, S)
    assert S % TQ == 0 and S % TK == 0, "seq_len must divide the chosen tile sizes"
    nq = S // TQ

    f32, bf16 = jnp.float32, jnp.bfloat16
    # K/V weights fused into one (D, 2D) matmul; Q projected per tile; Wo pre-split
    # by head to (H, dk, D) so the kernel never runs a combine-heads transpose.
    w_kv = jnp.concatenate([params["wk"], params["wv"]], axis=1).astype(bf16)
    b_kv = jnp.concatenate([params["bk"], params["bv"]], axis=1).astype(f32)
    w_o_heads = params["wo"].reshape(H, dk, D).astype(bf16)

    weights = [
        params["wq"].astype(bf16), params["bq"].astype(f32),
        w_kv, b_kv,
        w_o_heads, params["bo"].astype(f32),
        params["g1"].astype(f32), params["beta1"].astype(f32),
        params["w1"].astype(bf16), params["b1"].astype(f32),
        params["w2"].astype(bf16), params["b2"].astype(f32),
        params["g2"].astype(f32), params["beta2"].astype(f32),
    ]

    x_full_bf16 = x.astype(bf16)   # full-sequence view, only feeds the K/V projection

    kernel = functools.partial(
        encoder_layer_kernel,
        num_heads=H, d_k=dk, d_model=D, seq_len=S, q_tile=TQ, kv_tile=TK)

    cost = pl.CostEstimate(
        flops=int(2 * B * S * (4 * D * D + 2 * S * D + 2 * D * d_ff)),
        transcendentals=int(B * H * S * S),
        bytes_accessed=int(x.size * x.dtype.itemsize
                           + x_full_bf16.size * 2
                           + sum(a.size * a.dtype.itemsize for a in weights)
                           + B * S * D * x.dtype.itemsize),
    )

    # VMEM budget: leave headroom below physical capacity (≈48 MiB on v7x,
    # ≈100 MiB on v5e/v6e).
    try:
        vmem_cap = pltpu.get_tpu_info().vmem_capacity_bytes
    except Exception:
        vmem_cap = 128 * 1024 * 1024
    vmem_limit = max(min(vmem_cap - 16 * 1024 * 1024, 100 * 1024 * 1024),
                     32 * 1024 * 1024)

    def build(single_buffer_weights):
        w_kwargs = ({"pipeline_mode": pl.Buffered(1)} if single_buffer_weights else {})
        in_specs = [
            pl.BlockSpec((1, TQ, D), lambda b, q: (b, q, 0)),   # residual / Q rows (f32)
            pl.BlockSpec((1, S, D), lambda b, q: (b, 0, 0)),    # full-seq bf16 for K/V proj
        ]
        for a in weights:
            # grid-invariant weight / bias blocks
            in_specs.append(pl.BlockSpec(a.shape,
                                         lambda b, q, _nd=a.ndim: (0,) * _nd,
                                         **w_kwargs))
        return pl.pallas_call(
            kernel,
            out_shape=jax.ShapeDtypeStruct((B, S, D), x.dtype),
            grid_spec=pltpu.PrefetchScalarGridSpec(
                num_scalar_prefetch=0,
                grid=(B, nq),
                in_specs=in_specs,
                out_specs=pl.BlockSpec((1, TQ, D), lambda b, q: (b, q, 0)),
                scratch_shapes=[
                    pltpu.VMEM((H, S, dk), bf16),    # K scratch (per batch element)
                    pltpu.VMEM((H, S, dk), bf16),    # V scratch
                    pltpu.VMEM((H, TQ), f32),        # running max m
                    pltpu.VMEM((H, TQ), f32),        # running denom l
                    pltpu.VMEM((H, TQ, dk), f32),    # attention accumulator
                ]),
            compiler_params=pltpu.CompilerParams(
                dimension_semantics=("parallel", "arbitrary"),
                vmem_limit_bytes=int(vmem_limit)),
            cost_estimate=cost,
        )

    try:
        return build(True)(x, x_full_bf16, *weights)
    except Exception:
        # Fallback to default double-buffering if pl.Buffered(1) is unsupported here.
        return build(False)(x, x_full_bf16, *weights)


# ---------------- pure-JAX f32 reference (for correctness check) ----------------
def encoder_layer_ref(x, p, num_heads, eps=1e-5):
    B, S, D = x.shape
    d_k = D // num_heads

    def ln(y, g, b):
        mu = jnp.mean(y, axis=-1, keepdims=True)
        var = jnp.mean((y - mu) ** 2, axis=-1, keepdims=True)
        return (y - mu) / jnp.sqrt(var + eps) * g + b

    q = x @ p["wq"] + p["bq"]
    k = x @ p["wk"] + p["bk"]
    v = x @ p["wv"] + p["bv"]
    qh = q.reshape(B, S, num_heads, d_k).transpose(0, 2, 1, 3)
    kh = k.reshape(B, S, num_heads, d_k).transpose(0, 2, 1, 3)
    vh = v.reshape(B, S, num_heads, d_k).transpose(0, 2, 1, 3)
    scores = jnp.einsum("bhqd,bhkd->bhqk", qh, kh) / math.sqrt(d_k)
    probs = jax.nn.softmax(scores, axis=-1)
    attn = jnp.einsum("bhqk,bhkd->bhqd", probs, vh)
    attn = attn.transpose(0, 2, 1, 3).reshape(B, S, D)
    attn_out = attn @ p["wo"] + p["bo"]
    y = ln(x + attn_out, p["g1"], p["beta1"])
    ff = jnp.maximum(y @ p["w1"] + p["b1"], 0.0) @ p["w2"] + p["b2"]
    return ln(y + ff, p["g2"], p["beta2"])


def init_params(key, d_model, d_ff):
    scale = 0.05

    def lin(k, fin, fout):
        kw, kb = jax.random.split(k)
        return (jax.random.normal(kw, (fin, fout), jnp.float32) * scale,
                jax.random.normal(kb, (1, fout), jnp.float32) * scale)

    ks = jax.random.split(key, 6)
    wq, bq = lin(ks[0], d_model, d_model)
    wk, bk = lin(ks[1], d_model, d_model)
    wv, bv = lin(ks[2], d_model, d_model)
    wo, bo = lin(ks[3], d_model, d_model)
    w1, b1 = lin(ks[4], d_model, d_ff)
    w2, b2 = lin(ks[5], d_ff, d_model)
    return {
        "wq": wq, "bq": bq, "wk": wk, "bk": bk, "wv": wv, "bv": bv,
        "wo": wo, "bo": bo,
        "g1": jnp.ones((1, d_model), jnp.float32),
        "beta1": jnp.zeros((1, d_model), jnp.float32),
        "w1": w1, "b1": b1, "w2": w2, "b2": b2,
        "g2": jnp.ones((1, d_model), jnp.float32),
        "beta2": jnp.zeros((1, d_model), jnp.float32),
    }


if __name__ == "__main__":
    B, S, D, H, FF = 2, 8, 32, 4, 64
    key = jax.random.PRNGKey(0)
    kx, kp = jax.random.split(key)
    x = jax.random.normal(kx, (B, S, D), jnp.float32)
    params = init_params(kp, D, FF)

    out = encoder_layer(x, params, num_heads=H)
    out = jax.block_until_ready(out)

    ref = encoder_layer_ref(x, params, num_heads=H)
    assert out.shape == (B, S, D)
    # Kernel runs bf16 MXU matmuls with f32 accumulation and an approx reciprocal,
    # so the tolerance vs. the pure-f32 reference is loosened accordingly.
    assert jnp.allclose(out, ref, atol=5e-2, rtol=5e-2), "mismatch vs JAX reference"
    print("KERNEL_OK")
</pallas_src>

<mosaic_0001>
module attributes {stable_mosaic.version = 11 : i64} {
  func.func @encoder_layer_kernel(%arg0: i32, %arg1: i32, %arg2: memref<1x8x32xf32, #tpu.memory_space<vmem>>, %arg3: memref<1x8x32xbf16, #tpu.memory_space<vmem>>, %arg4: memref<32x32xbf16, #tpu.memory_space<vmem>>, %arg5: memref<1x32xf32, #tpu.memory_space<vmem>>, %arg6: memref<32x64xbf16, #tpu.memory_space<vmem>>, %arg7: memref<1x64xf32, #tpu.memory_space<vmem>>, %arg8: memref<4x8x32xbf16, #tpu.memory_space<vmem>>, %arg9: memref<1x32xf32, #tpu.memory_space<vmem>>, %arg10: memref<1x32xf32, #tpu.memory_space<vmem>>, %arg11: memref<1x32xf32, #tpu.memory_space<vmem>>, %arg12: memref<32x64xbf16, #tpu.memory_space<vmem>>, %arg13: memref<1x64xf32, #tpu.memory_space<vmem>>, %arg14: memref<64x32xbf16, #tpu.memory_space<vmem>>, %arg15: memref<1x32xf32, #tpu.memory_space<vmem>>, %arg16: memref<1x32xf32, #tpu.memory_space<vmem>>, %arg17: memref<1x32xf32, #tpu.memory_space<vmem>>, %arg18: memref<1x8x32xf32, #tpu.memory_space<vmem>>, %arg19: memref<4x8x8xbf16, #tpu.memory_space<vmem>>, %arg20: memref<4x8x8xbf16, #tpu.memory_space<vmem>>, %arg21: memref<4x8xf32, #tpu.memory_space<vmem>>, %arg22: memref<4x8xf32, #tpu.memory_space<vmem>>, %arg23: memref<4x8x8xf32, #tpu.memory_space<vmem>>) attributes {dimension_semantics = [#tpu.dimension_semantics<parallel>, #tpu.dimension_semantics<arbitrary>], iteration_bounds = array<i64: 2, 1>, scalar_prefetch = 0 : i64, scratch_operands = 5 : i64, tpu.core_type = #tpu.core_type<tc>, window_params = [{transform_indices = @transform_0, window_bounds = array<i64: 1, 8, 32>}, {transform_indices = @transform_1, window_bounds = array<i64: 1, 8, 32>}, {pipeline_mode = #tpu.pipeline_mode<synchronous>, transform_indices = @transform_2, window_bounds = array<i64: 32, 32>}, {pipeline_mode = #tpu.pipeline_mode<synchronous>, transform_indices = @transform_3, window_bounds = array<i64: 1, 32>}, {pipeline_mode = #tpu.pipeline_mode<synchronous>, transform_indices = @transform_4, window_bounds = array<i64: 32, 64>}, {pipeline_mode = #tpu.pipeline_mode<synchronous>, transform_indices = @transform_5, window_bounds = array<i64: 1, 64>}, {pipeline_mode = #tpu.pipeline_mode<synchronous>, transform_indices = @transform_6, window_bounds = array<i64: 4, 8, 32>}, {pipeline_mode = #tpu.pipeline_mode<synchronous>, transform_indices = @transform_7, window_bounds = array<i64: 1, 32>}, {pipeline_mode = #tpu.pipeline_mode<synchronous>, transform_indices = @transform_8, window_bounds = array<i64: 1, 32>}, {pipeline_mode = #tpu.pipeline_mode<synchronous>, transform_indices = @transform_9, window_bounds = array<i64: 1, 32>}, {pipeline_mode = #tpu.pipeline_mode<synchronous>, transform_indices = @transform_10, window_bounds = array<i64: 32, 64>}, {pipeline_mode = #tpu.pipeline_mode<synchronous>, transform_indices = @transform_11, window_bounds = array<i64: 1, 64>}, {pipeline_mode = #tpu.pipeline_mode<synchronous>, transform_indices = @transform_12, window_bounds = array<i64: 64, 32>}, {pipeline_mode = #tpu.pipeline_mode<synchronous>, transform_indices = @transform_13, window_bounds = array<i64: 1, 32>}, {pipeline_mode = #tpu.pipeline_mode<synchronous>, transform_indices = @transform_14, window_bounds = array<i64: 1, 32>}, {pipeline_mode = #tpu.pipeline_mode<synchronous>, transform_indices = @transform_15, window_bounds = array<i64: 1, 32>}, {transform_indices = @transform_16, window_bounds = array<i64: 1, 8, 32>}]} {
    %c0_i32 = arith.constant 0 : i32
    %0 = arith.cmpi eq, %arg1, %c0_i32 : i32
    %1 = arith.extui %0 : i1 to i32
    %c0_i32_0 = arith.constant 0 : i32
    %2 = arith.cmpi ne, %1, %c0_i32_0 : i32
    scf.if %2 {
      %c0_i32_90 = arith.constant 0 : i32
      %c1_i32_91 = arith.constant 1 : i32
      %136 = arith.muli %c0_i32_90, %c1_i32_91 : i32
      %c0_i32_92 = arith.constant 0 : i32
      %137 = arith.addi %c0_i32_92, %136 : i32
      %c8_i32_93 = arith.constant 8 : i32
      %138 = arith.muli %137, %c8_i32_93 : i32
      %139 = tpu.assume_multiple %138, 8 : i32
      %c0_94 = arith.constant 0 : index
      %140 = arith.index_cast %139 : i32 to index
      %c0_95 = arith.constant 0 : index
      %141 = vector.load %arg3[%c0_94, %140, %c0_95] : memref<1x8x32xbf16, #tpu.memory_space<vmem>>, vector<1x8x32xbf16>
      %142 = vector.shape_cast %141 : vector<1x8x32xbf16> to vector<8x32xbf16>
      %c0_96 = arith.constant 0 : index
      %c0_97 = arith.constant 0 : index
      %143 = vector.load %arg6[%c0_96, %c0_97] : memref<32x64xbf16, #tpu.memory_space<vmem>>, vector<32x64xbf16>
      %cst_98 = arith.constant dense<0.000000e+00> : vector<8x64xf32>
      %144 = tpu.matmul %142, %143, %cst_98 {dimension_numbers = #tpu.dot_dimension_numbers<[1], [0], [0], [1], [0, 0, 1, 1], [], []>} : vector<8x32xbf16>, vector<32x64xbf16>, vector<8x64xf32> -> vector<8x64xf32>
      %c0_99 = arith.constant 0 : index
      %c0_100 = arith.constant 0 : index
      %145 = vector.load %arg7[%c0_99, %c0_100] : memref<1x64xf32, #tpu.memory_space<vmem>>, vector<1x64xf32>
      %146 = vector.broadcast %145 : vector<1x64xf32> to vector<8x64xf32>
      %147 = arith.addf %144, %146 : vector<8x64xf32>
      %148 = vector.extract_strided_slice %147 {offsets = [0, 0], sizes = [8, 32], strides = [1, 1]} : vector<8x64xf32> to vector<8x32xf32>
      %149 = vector.shape_cast %148 : vector<8x32xf32> to vector<8x4x8xf32>
      %150 = vector.extract_strided_slice %147 {offsets = [0, 32], sizes = [8, 32], strides = [1, 1]} : vector<8x64xf32> to vector<8x32xf32>
      %151 = vector.shape_cast %150 : vector<8x32xf32> to vector<8x4x8xf32>
      %152 = tpu.transpose %149, [1, 0, 2] : vector<8x4x8xf32> -> vector<4x8x8xf32>
      %153 = arith.truncf %152 : vector<4x8x8xf32> to vector<4x8x8xbf16>
      %c0_101 = arith.constant 0 : index
      %154 = arith.index_cast %139 : i32 to index
      %c0_102 = arith.constant 0 : index
      %155 = vector.load %arg19[%c0_101, %154, %c0_102] : memref<4x8x8xbf16, #tpu.memory_space<vmem>>, vector<4x8x8xbf16>
      tpu.vector_store %arg19[%c0_101, %154, %c0_102], %153 {strides = array<i32>} : memref<4x8x8xbf16, #tpu.memory_space<vmem>>, vector<4x8x8xbf16>,
      %156 = tpu.transpose %151, [1, 0, 2] : vector<8x4x8xf32> -> vector<4x8x8xf32>
      %157 = arith.truncf %156 : vector<4x8x8xf32> to vector<4x8x8xbf16>
      %c0_103 = arith.constant 0 : index
      %158 = arith.index_cast %139 : i32 to index
      %c0_104 = arith.constant 0 : index
      %159 = vector.load %arg20[%c0_103, %158, %c0_104] : memref<4x8x8xbf16, #tpu.memory_space<vmem>>, vector<4x8x8xbf16>
      tpu.vector_store %arg20[%c0_103, %158, %c0_104], %157 {strides = array<i32>} : memref<4x8x8xbf16, #tpu.memory_space<vmem>>, vector<4x8x8xbf16>,
      %c1_i32_105 = arith.constant 1 : i32
    } else {
    }
    %c0 = arith.constant 0 : index
    %c0_1 = arith.constant 0 : index
    %c0_2 = arith.constant 0 : index
    %3 = vector.load %arg2[%c0, %c0_1, %c0_2] : memref<1x8x32xf32, #tpu.memory_space<vmem>>, vector<1x8x32xf32>
    %4 = vector.shape_cast %3 : vector<1x8x32xf32> to vector<8x32xf32>
    %c0_3 = arith.constant 0 : index
    %c0_4 = arith.constant 0 : index
    %c0_5 = arith.constant 0 : index
    %5 = vector.load %arg2[%c0_3, %c0_4, %c0_5] : memref<1x8x32xf32, #tpu.memory_space<vmem>>, vector<1x8x32xf32>
    %6 = vector.shape_cast %5 : vector<1x8x32xf32> to vector<8x32xf32>
    %7 = arith.truncf %6 : vector<8x32xf32> to vector<8x32xbf16>
    %c0_6 = arith.constant 0 : index
    %c0_7 = arith.constant 0 : index
    %8 = vector.load %arg4[%c0_6, %c0_7] : memref<32x32xbf16, #tpu.memory_space<vmem>>, vector<32x32xbf16>
    %cst = arith.constant dense<0.000000e+00> : vector<8x32xf32>
    %9 = tpu.matmul %7, %8, %cst {dimension_numbers = #tpu.dot_dimension_numbers<[1], [0], [0], [1], [0, 0, 1, 1], [], []>} : vector<8x32xbf16>, vector<32x32xbf16>, vector<8x32xf32> -> vector<8x32xf32>
    %c0_8 = arith.constant 0 : index
    %c0_9 = arith.constant 0 : index
    %10 = vector.load %arg5[%c0_8, %c0_9] : memref<1x32xf32, #tpu.memory_space<vmem>>, vector<1x32xf32>
    %11 = vector.broadcast %10 : vector<1x32xf32> to vector<8x32xf32>
    %12 = arith.addf %9, %11 : vector<8x32xf32>
    %13 = vector.shape_cast %12 : vector<8x32xf32> to vector<8x4x8xf32>
    %14 = tpu.transpose %13, [1, 0, 2] : vector<8x4x8xf32> -> vector<4x8x8xf32>
    %15 = arith.truncf %14 : vector<4x8x8xf32> to vector<4x8x8xbf16>
    %cst_10 = arith.constant 0xFF800000 : f32
    %16 = vector.broadcast %cst_10 : f32 to vector<4x8xf32>
    %c0_11 = arith.constant 0 : index
    %c0_12 = arith.constant 0 : index
    %17 = vector.load %arg21[%c0_11, %c0_12] : memref<4x8xf32, #tpu.memory_space<vmem>>, vector<4x8xf32>
    tpu.vector_store %arg21[%c0_11, %c0_12], %16 {strides = array<i32>} : memref<4x8xf32, #tpu.memory_space<vmem>>, vector<4x8xf32>,
    %cst_13 = arith.constant 0.000000e+00 : f32
    %18 = vector.broadcast %cst_13 : f32 to vector<4x8xf32>
    %c0_14 = arith.constant 0 : index
    %c0_15 = arith.constant 0 : index
    %19 = vector.load %arg22[%c0_14, %c0_15] : memref<4x8xf32, #tpu.memory_space<vmem>>, vector<4x8xf32>
    tpu.vector_store %arg22[%c0_14, %c0_15], %18 {strides = array<i32>} : memref<4x8xf32, #tpu.memory_space<vmem>>, vector<4x8xf32>,
    %cst_16 = arith.constant 0.000000e+00 : f32
    %20 = vector.broadcast %cst_16 : f32 to vector<4x8x8xf32>
    %c0_17 = arith.constant 0 : index
    %c0_18 = arith.constant 0 : index
    %c0_19 = arith.constant 0 : index
    %21 = vector.load %arg23[%c0_17, %c0_18, %c0_19] : memref<4x8x8xf32, #tpu.memory_space<vmem>>, vector<4x8x8xf32>
    tpu.vector_store %arg23[%c0_17, %c0_18, %c0_19], %20 {strides = array<i32>} : memref<4x8x8xf32, #tpu.memory_space<vmem>>, vector<4x8x8xf32>,
    %c0_i32_20 = arith.constant 0 : i32
    %c1_i32 = arith.constant 1 : i32
    %22 = arith.muli %c0_i32_20, %c1_i32 : i32
    %c0_i32_21 = arith.constant 0 : i32
    %23 = arith.addi %c0_i32_21, %22 : i32
    %c8_i32 = arith.constant 8 : i32
    %24 = arith.muli %23, %c8_i32 : i32
    %25 = tpu.assume_multiple %24, 8 : i32
    %c0_22 = arith.constant 0 : index
    %26 = arith.index_cast %25 : i32 to index
    %c0_23 = arith.constant 0 : index
    %27 = vector.load %arg19[%c0_22, %26, %c0_23] : memref<4x8x8xbf16, #tpu.memory_space<vmem>>, vector<4x8x8xbf16>
    %c0_24 = arith.constant 0 : index
    %28 = arith.index_cast %25 : i32 to index
    %c0_25 = arith.constant 0 : index
    %29 = vector.load %arg20[%c0_24, %28, %c0_25] : memref<4x8x8xbf16, #tpu.memory_space<vmem>>, vector<4x8x8xbf16>
    "tpu.trace_start"() <{level = 10 : i32, message = "hqd,hkd->hqk"}> : () -> ()
    %cst_26 = arith.constant dense<0.000000e+00> : vector<4x8x8xf32>
    %30 = tpu.matmul %15, %27, %cst_26 {dimension_numbers = #tpu.dot_dimension_numbers<[2], [2], [1], [1], [0, 0, 0, 1, 1, 1], [0], [0]>} : vector<4x8x8xbf16>, vector<4x8x8xbf16>, vector<4x8x8xf32> -> vector<4x8x8xf32>
    "tpu.trace_stop"() : () -> ()
    %cst_27 = arith.constant 0.353553385 : f32
    %31 = vector.broadcast %cst_27 : f32 to vector<4x8x8xf32>
    %32 = arith.mulf %30, %31 : vector<4x8x8xf32>
    %c0_28 = arith.constant 0 : index
    %c0_29 = arith.constant 0 : index
    %33 = vector.load %arg21[%c0_28, %c0_29] : memref<4x8xf32, #tpu.memory_space<vmem>>, vector<4x8xf32>
    %cst_30 = arith.constant dense<0xFF800000> : vector<4x8xf32>
    %34 = vector.multi_reduction <maximumf>, %32, %cst_30 [2] : vector<4x8x8xf32> to vector<4x8xf32>
    %35 = arith.maximumf %33, %34 : vector<4x8xf32>
    %36 = arith.subf %33, %35 : vector<4x8xf32>
    %37 = math.exp %36 : vector<4x8xf32>
    %38 = vector.shape_cast %35 : vector<4x8xf32> to vector<4x8x1xf32>
    %39 = vector.broadcast %38 : vector<4x8x1xf32> to vector<4x8x8xf32>
    %40 = arith.subf %32, %39 : vector<4x8x8xf32>
    %41 = math.exp %40 : vector<4x8x8xf32>
    %c0_31 = arith.constant 0 : index
    %c0_32 = arith.constant 0 : index
    %42 = vector.load %arg22[%c0_31, %c0_32] : memref<4x8xf32, #tpu.memory_space<vmem>>, vector<4x8xf32>
    %43 = arith.mulf %37, %42 : vector<4x8xf32>
    %cst_33 = arith.constant dense<0.000000e+00> : vector<4x8xf32>
    %44 = vector.multi_reduction <add>, %41, %cst_33 [2] : vector<4x8x8xf32> to vector<4x8xf32>
    %45 = arith.addf %43, %44 : vector<4x8xf32>
    %c0_34 = arith.constant 0 : index
    %c0_35 = arith.constant 0 : index
    %46 = vector.load %arg22[%c0_34, %c0_35] : memref<4x8xf32, #tpu.memory_space<vmem>>, vector<4x8xf32>
    tpu.vector_store %arg22[%c0_34, %c0_35], %45 {strides = array<i32>} : memref<4x8xf32, #tpu.memory_space<vmem>>, vector<4x8xf32>,
    %47 = vector.shape_cast %37 : vector<4x8xf32> to vector<4x8x1xf32>
    %c0_36 = arith.constant 0 : index
    %c0_37 = arith.constant 0 : index
    %c0_38 = arith.constant 0 : index
    %48 = vector.load %arg23[%c0_36, %c0_37, %c0_38] : memref<4x8x8xf32, #tpu.memory_space<vmem>>, vector<4x8x8xf32>
    %49 = vector.broadcast %47 : vector<4x8x1xf32> to vector<4x8x8xf32>
    %50 = arith.mulf %49, %48 : vector<4x8x8xf32>
    %51 = arith.truncf %41 : vector<4x8x8xf32> to vector<4x8x8xbf16>
    "tpu.trace_start"() <{level = 10 : i32, message = "hqk,hkd->hqd"}> : () -> ()
    %cst_39 = arith.constant dense<0.000000e+00> : vector<4x8x8xf32>
    %52 = tpu.matmul %51, %29, %cst_39 {dimension_numbers = #tpu.dot_dimension_numbers<[2], [1], [1], [2], [0, 0, 0, 1, 1, 2], [0], [0]>} : vector<4x8x8xbf16>, vector<4x8x8xbf16>, vector<4x8x8xf32> -> vector<4x8x8xf32>
    "tpu.trace_stop"() : () -> ()
    %53 = arith.addf %50, %52 : vector<4x8x8xf32>
    %c0_40 = arith.constant 0 : index
    %c0_41 = arith.constant 0 : index
    %c0_42 = arith.constant 0 : index
    %54 = vector.load %arg23[%c0_40, %c0_41, %c0_42] : memref<4x8x8xf32, #tpu.memory_space<vmem>>, vector<4x8x8xf32>
    tpu.vector_store %arg23[%c0_40, %c0_41, %c0_42], %53 {strides = array<i32>} : memref<4x8x8xf32, #tpu.memory_space<vmem>>, vector<4x8x8xf32>,
    %c0_43 = arith.constant 0 : index
    %c0_44 = arith.constant 0 : index
    %55 = vector.load %arg21[%c0_43, %c0_44] : memref<4x8xf32, #tpu.memory_space<vmem>>, vector<4x8xf32>
    tpu.vector_store %arg21[%c0_43, %c0_44], %35 {strides = array<i32>} : memref<4x8xf32, #tpu.memory_space<vmem>>, vector<4x8xf32>,
    %c1_i32_45 = arith.constant 1 : i32
    %c0_46 = arith.constant 0 : index
    %c0_47 = arith.constant 0 : index
    %c0_48 = arith.constant 0 : index
    %56 = vector.load %arg23[%c0_46, %c0_47, %c0_48] : memref<4x8x8xf32, #tpu.memory_space<vmem>>, vector<4x8x8xf32>
    %c0_49 = arith.constant 0 : index
    %c0_50 = arith.constant 0 : index
    %57 = vector.load %arg22[%c0_49, %c0_50] : memref<4x8xf32, #tpu.memory_space<vmem>>, vector<4x8xf32>
    %58 = tpu.reciprocal %57 {approx = true} : vector<4x8xf32> -> vector<4x8xf32>
    %59 = vector.shape_cast %58 : vector<4x8xf32> to vector<4x8x1xf32>
    %60 = vector.broadcast %59 : vector<4x8x1xf32> to vector<4x8x8xf32>
    %61 = arith.mulf %56, %60 : vector<4x8x8xf32>
    %62 = arith.truncf %61 : vector<4x8x8xf32> to vector<4x8x8xbf16>
    %c0_51 = arith.constant 0 : index
    %c0_52 = arith.constant 0 : index
    %c0_53 = arith.constant 0 : index
    %63 = vector.load %arg8[%c0_51, %c0_52, %c0_53] : memref<4x8x32xbf16, #tpu.memory_space<vmem>>, vector<4x8x32xbf16>
    "tpu.trace_start"() <{level = 10 : i32, message = "hqd,hdD->hqD"}> : () -> ()
    %cst_54 = arith.constant dense<0.000000e+00> : vector<4x8x32xf32>
    %64 = tpu.matmul %62, %63, %cst_54 {dimension_numbers = #tpu.dot_dimension_numbers<[2], [1], [1], [2], [0, 0, 0, 1, 1, 2], [0], [0]>} : vector<4x8x8xbf16>, vector<4x8x32xbf16>, vector<4x8x32xf32> -> vector<4x8x32xf32>
    "tpu.trace_stop"() : () -> ()
    %cst_55 = arith.constant dense<0.000000e+00> : vector<8x32xf32>
    %65 = vector.multi_reduction <add>, %64, %cst_55 [0] : vector<4x8x32xf32> to vector<8x32xf32>
    %c0_56 = arith.constant 0 : index
    %c0_57 = arith.constant 0 : index
    %66 = vector.load %arg9[%c0_56, %c0_57] : memref<1x32xf32, #tpu.memory_space<vmem>>, vector<1x32xf32>
    %67 = vector.broadcast %66 : vector<1x32xf32> to vector<8x32xf32>
    %68 = arith.addf %65, %67 : vector<8x32xf32>
    %69 = arith.addf %4, %68 : vector<8x32xf32>
    %cst_58 = arith.constant dense<0.000000e+00> : vector<8xf32>
    %70 = vector.multi_reduction <add>, %69, %cst_58 [1] : vector<8x32xf32> to vector<8xf32>
    %71 = vector.shape_cast %70 : vector<8xf32> to vector<8x1xf32>
    %cst_59 = arith.constant 3.200000e+01 : f32
    %72 = vector.broadcast %cst_59 : f32 to vector<8x1xf32>
    %73 = arith.divf %71, %72 : vector<8x1xf32>
    %74 = vector.broadcast %73 : vector<8x1xf32> to vector<8x32xf32>
    %75 = arith.subf %69, %74 : vector<8x32xf32>
    %76 = arith.mulf %75, %75 : vector<8x32xf32>
    %cst_60 = arith.constant dense<0.000000e+00> : vector<8xf32>
    %77 = vector.multi_reduction <add>, %76, %cst_60 [1] : vector<8x32xf32> to vector<8xf32>
    %78 = vector.shape_cast %77 : vector<8xf32> to vector<8x1xf32>
    %cst_61 = arith.constant 3.200000e+01 : f32
    %79 = vector.broadcast %cst_61 : f32 to vector<8x1xf32>
    %80 = arith.divf %78, %79 : vector<8x1xf32>
    %81 = vector.broadcast %73 : vector<8x1xf32> to vector<8x32xf32>
    %82 = arith.subf %69, %81 : vector<8x32xf32>
    %cst_62 = arith.constant 9.99999974E-6 : f32
    %83 = vector.broadcast %cst_62 : f32 to vector<8x1xf32>
    %84 = arith.addf %80, %83 : vector<8x1xf32>
    %85 = math.rsqrt %84 : vector<8x1xf32>
    %86 = vector.broadcast %85 : vector<8x1xf32> to vector<8x32xf32>
    %87 = arith.mulf %82, %86 : vector<8x32xf32>
    %c0_63 = arith.constant 0 : index
    %c0_64 = arith.constant 0 : index
    %88 = vector.load %arg10[%c0_63, %c0_64] : memref<1x32xf32, #tpu.memory_space<vmem>>, vector<1x32xf32>
    %89 = vector.broadcast %88 : vector<1x32xf32> to vector<8x32xf32>
    %90 = arith.mulf %87, %89 : vector<8x32xf32>
    %c0_65 = arith.constant 0 : index
    %c0_66 = arith.constant 0 : index
    %91 = vector.load %arg11[%c0_65, %c0_66] : memref<1x32xf32, #tpu.memory_space<vmem>>, vector<1x32xf32>
    %92 = vector.broadcast %91 : vector<1x32xf32> to vector<8x32xf32>
    %93 = arith.addf %90, %92 : vector<8x32xf32>
    %94 = arith.truncf %93 : vector<8x32xf32> to vector<8x32xbf16>
    %c0_67 = arith.constant 0 : index
    %c0_68 = arith.constant 0 : index
    %95 = vector.load %arg12[%c0_67, %c0_68] : memref<32x64xbf16, #tpu.memory_space<vmem>>, vector<32x64xbf16>
    %cst_69 = arith.constant dense<0.000000e+00> : vector<8x64xf32>
    %96 = tpu.matmul %94, %95, %cst_69 {dimension_numbers = #tpu.dot_dimension_numbers<[1], [0], [0], [1], [0, 0, 1, 1], [], []>} : vector<8x32xbf16>, vector<32x64xbf16>, vector<8x64xf32> -> vector<8x64xf32>
    %c0_70 = arith.constant 0 : index
    %c0_71 = arith.constant 0 : index
    %97 = vector.load %arg13[%c0_70, %c0_71] : memref<1x64xf32, #tpu.memory_space<vmem>>, vector<1x64xf32>
    %98 = vector.broadcast %97 : vector<1x64xf32> to vector<8x64xf32>
    %99 = arith.addf %96, %98 : vector<8x64xf32>
    %cst_72 = arith.constant 0.000000e+00 : f32
    %100 = vector.broadcast %cst_72 : f32 to vector<8x64xf32>
    %101 = arith.maximumf %99, %100 : vector<8x64xf32>
    %102 = arith.truncf %101 : vector<8x64xf32> to vector<8x64xbf16>
    %c0_73 = arith.constant 0 : index
    %c0_74 = arith.constant 0 : index
    %103 = vector.load %arg14[%c0_73, %c0_74] : memref<64x32xbf16, #tpu.memory_space<vmem>>, vector<64x32xbf16>
    %cst_75 = arith.constant dense<0.000000e+00> : vector<8x32xf32>
    %104 = tpu.matmul %102, %103, %cst_75 {dimension_numbers = #tpu.dot_dimension_numbers<[1], [0], [0], [1], [0, 0, 1, 1], [], []>} : vector<8x64xbf16>, vector<64x32xbf16>, vector<8x32xf32> -> vector<8x32xf32>
    %c0_76 = arith.constant 0 : index
    %c0_77 = arith.constant 0 : index
    %105 = vector.load %arg15[%c0_76, %c0_77] : memref<1x32xf32, #tpu.memory_space<vmem>>, vector<1x32xf32>
    %106 = vector.broadcast %105 : vector<1x32xf32> to vector<8x32xf32>
    %107 = arith.addf %104, %106 : vector<8x32xf32>
    %108 = arith.addf %93, %107 : vector<8x32xf32>
    %cst_78 = arith.constant dense<0.000000e+00> : vector<8xf32>
    %109 = vector.multi_reduction <add>, %108, %cst_78 [1] : vector<8x32xf32> to vector<8xf32>
    %110 = vector.shape_cast %109 : vector<8xf32> to vector<8x1xf32>
    %cst_79 = arith.constant 3.200000e+01 : f32
    %111 = vector.broadcast %cst_79 : f32 to vector<8x1xf32>
    %112 = arith.divf %110, %111 : vector<8x1xf32>
    %113 = vector.broadcast %112 : vector<8x1xf32> to vector<8x32xf32>
    %114 = arith.subf %108, %113 : vector<8x32xf32>
    %115 = arith.mulf %114, %114 : vector<8x32xf32>
    %cst_80 = arith.constant dense<0.000000e+00> : vector<8xf32>
    %116 = vector.multi_reduction <add>, %115, %cst_80 [1] : vector<8x32xf32> to vector<8xf32>
    %117 = vector.shape_cast %116 : vector<8xf32> to vector<8x1xf32>
    %cst_81 = arith.constant 3.200000e+01 : f32
    %118 = vector.broadcast %cst_81 : f32 to vector<8x1xf32>
    %119 = arith.divf %117, %118 : vector<8x1xf32>
    %120 = vector.broadcast %112 : vector<8x1xf32> to vector<8x32xf32>
    %121 = arith.subf %108, %120 : vector<8x32xf32>
    %cst_82 = arith.constant 9.99999974E-6 : f32
    %122 = vector.broadcast %cst_82 : f32 to vector<8x1xf32>
    %123 = arith.addf %119, %122 : vector<8x1xf32>
    %124 = math.rsqrt %123 : vector<8x1xf32>
    %125 = vector.broadcast %124 : vector<8x1xf32> to vector<8x32xf32>
    %126 = arith.mulf %121, %125 : vector<8x32xf32>
    %c0_83 = arith.constant 0 : index
    %c0_84 = arith.constant 0 : index
    %127 = vector.load %arg16[%c0_83, %c0_84] : memref<1x32xf32, #tpu.memory_space<vmem>>, vector<1x32xf32>
    %128 = vector.broadcast %127 : vector<1x32xf32> to vector<8x32xf32>
    %129 = arith.mulf %126, %128 : vector<8x32xf32>
    %c0_85 = arith.constant 0 : index
    %c0_86 = arith.constant 0 : index
    %130 = vector.load %arg17[%c0_85, %c0_86] : memref<1x32xf32, #tpu.memory_space<vmem>>, vector<1x32xf32>
    %131 = vector.broadcast %130 : vector<1x32xf32> to vector<8x32xf32>
    %132 = arith.addf %129, %131 : vector<8x32xf32>
    %c0_87 = arith.constant 0 : index
    %c0_88 = arith.constant 0 : index
    %c0_89 = arith.constant 0 : index
    %133 = vector.load %arg18[%c0_87, %c0_88, %c0_89] : memref<1x8x32xf32, #tpu.memory_space<vmem>>, vector<1x8x32xf32>
    %134 = vector.shape_cast %133 : vector<1x8x32xf32> to vector<8x32xf32>
    %135 = vector.shape_cast %132 : vector<8x32xf32> to vector<1x8x32xf32>
    tpu.vector_store %arg18[%c0_87, %c0_88, %c0_89], %135 {strides = array<i32>} : memref<1x8x32xf32, #tpu.memory_space<vmem>>, vector<1x8x32xf32>,
    return
  }
  func.func @transform_0(%arg0: i32, %arg1: i32) -> (i32, i32, i32) {
    %c0_i32 = arith.constant 0 : i32
    %c0_i32_0 = arith.constant 0 : i32
    return %arg0, %arg1, %c0_i32 : i32, i32, i32
  }
  func.func @transform_1(%arg0: i32, %arg1: i32) -> (i32, i32, i32) {
    %c0_i32 = arith.constant 0 : i32
    %c0_i32_0 = arith.constant 0 : i32
    %c0_i32_1 = arith.constant 0 : i32
    return %arg0, %c0_i32, %c0_i32_0 : i32, i32, i32
  }
  func.func @transform_2(%arg0: i32, %arg1: i32) -> (i32, i32) {
    %c0_i32 = arith.constant 0 : i32
    %c0_i32_0 = arith.constant 0 : i32
    %c0_i32_1 = arith.constant 0 : i32
    return %c0_i32, %c0_i32_0 : i32, i32
  }
  func.func @transform_3(%arg0: i32, %arg1: i32) -> (i32, i32) {
    %c0_i32 = arith.constant 0 : i32
    %c0_i32_0 = arith.constant 0 : i32
    %c0_i32_1 = arith.constant 0 : i32
    return %c0_i32, %c0_i32_0 : i32, i32
  }
  func.func @transform_4(%arg0: i32, %arg1: i32) -> (i32, i32) {
    %c0_i32 = arith.constant 0 : i32
    %c0_i32_0 = arith.constant 0 : i32
    %c0_i32_1 = arith.constant 0 : i32
    return %c0_i32, %c0_i32_0 : i32, i32
  }
  func.func @transform_5(%arg0: i32, %arg1: i32) -> (i32, i32) {
    %c0_i32 = arith.constant 0 : i32
    %c0_i32_0 = arith.constant 0 : i32
    %c0_i32_1 = arith.constant 0 : i32
    return %c0_i32, %c0_i32_0 : i32, i32
  }
  func.func @transform_6(%arg0: i32, %arg1: i32) -> (i32, i32, i32) {
    %c0_i32 = arith.constant 0 : i32
    %c0_i32_0 = arith.constant 0 : i32
    %c0_i32_1 = arith.constant 0 : i32
    %c0_i32_2 = arith.constant 0 : i32
    return %c0_i32, %c0_i32_0, %c0_i32_1 : i32, i32, i32
  }
  func.func @transform_7(%arg0: i32, %arg1: i32) -> (i32, i32) {
    %c0_i32 = arith.constant 0 : i32
    %c0_i32_0 = arith.constant 0 : i32
    %c0_i32_1 = arith.constant 0 : i32
    return %c0_i32, %c0_i32_0 : i32, i32
  }
  func.func @transform_8(%arg0: i32, %arg1: i32) -> (i32, i32) {
    %c0_i32 = arith.constant 0 : i32
    %c0_i32_0 = arith.constant 0 : i32
    %c0_i32_1 = arith.constant 0 : i32
    return %c0_i32, %c0_i32_0 : i32, i32
  }
  func.func @transform_9(%arg0: i32, %arg1: i32) -> (i32, i32) {
    %c0_i32 = arith.constant 0 : i32
    %c0_i32_0 = arith.constant 0 : i32
    %c0_i32_1 = arith.constant 0 : i32
    return %c0_i32, %c0_i32_0 : i32, i32
  }
  func.func @transform_10(%arg0: i32, %arg1: i32) -> (i32, i32) {
    %c0_i32 = arith.constant 0 : i32
    %c0_i32_0 = arith.constant 0 : i32
    %c0_i32_1 = arith.constant 0 : i32
    return %c0_i32, %c0_i32_0 : i32, i32
  }
  func.func @transform_11(%arg0: i32, %arg1: i32) -> (i32, i32) {
    %c0_i32 = arith.constant 0 : i32
    %c0_i32_0 = arith.constant 0 : i32
    %c0_i32_1 = arith.constant 0 : i32
    return %c0_i32, %c0_i32_0 : i32, i32
  }
  func.func @transform_12(%arg0: i32, %arg1: i32) -> (i32, i32) {
    %c0_i32 = arith.constant 0 : i32
    %c0_i32_0 = arith.constant 0 : i32
    %c0_i32_1 = arith.constant 0 : i32
    return %c0_i32, %c0_i32_0 : i32, i32
  }
  func.func @transform_13(%arg0: i32, %arg1: i32) -> (i32, i32) {
    %c0_i32 = arith.constant 0 : i32
    %c0_i32_0 = arith.constant 0 : i32
    %c0_i32_1 = arith.constant 0 : i32
    return %c0_i32, %c0_i32_0 : i32, i32
  }
  func.func @transform_14(%arg0: i32, %arg1: i32) -> (i32, i32) {
    %c0_i32 = arith.constant 0 : i32
    %c0_i32_0 = arith.constant 0 : i32
    %c0_i32_1 = arith.constant 0 : i32
    return %c0_i32, %c0_i32_0 : i32, i32
  }
  func.func @transform_15(%arg0: i32, %arg1: i32) -> (i32, i32) {
    %c0_i32 = arith.constant 0 : i32
    %c0_i32_0 = arith.constant 0 : i32
    %c0_i32_1 = arith.constant 0 : i32
    return %c0_i32, %c0_i32_0 : i32, i32
  }
  func.func @transform_16(%arg0: i32, %arg1: i32) -> (i32, i32, i32) {
    %c0_i32 = arith.constant 0 : i32
    %c0_i32_0 = arith.constant 0 : i32
    return %arg0, %arg1, %c0_i32 : i32, i32, i32
  }
}

module attributes {stable_mosaic.version = 11 : i64} {
  func.func @encoder_layer_kernel(%arg0: i32, %arg1: i32, %arg2: memref<1x8x32xf32, #tpu.memory_space<vmem>>, %arg3: memref<1x8x32xbf16, #tpu.memory_space<vmem>>, %arg4: memref<32x32xbf16, #tpu.memory_space<vmem>>, %arg5: memref<1x32xf32, #tpu.memory_space<vmem>>, %arg6: memref<32x64xbf16, #tpu.memory_space<vmem>>, %arg7: memref<1x64xf32, #tpu.memory_space<vmem>>, %arg8: memref<4x8x32xbf16, #tpu.memory_space<vmem>>, %arg9: memref<1x32xf32, #tpu.memory_space<vmem>>, %arg10: memref<1x32xf32, #tpu.memory_space<vmem>>, %arg11: memref<1x32xf32, #tpu.memory_space<vmem>>, %arg12: memref<32x64xbf16, #tpu.memory_space<vmem>>, %arg13: memref<1x64xf32, #tpu.memory_space<vmem>>, %arg14: memref<64x32xbf16, #tpu.memory_space<vmem>>, %arg15: memref<1x32xf32, #tpu.memory_space<vmem>>, %arg16: memref<1x32xf32, #tpu.memory_space<vmem>>, %arg17: memref<1x32xf32, #tpu.memory_space<vmem>>, %arg18: memref<1x8x32xf32, #tpu.memory_space<vmem>>, %arg19: memref<4x8x8xbf16, #tpu.memory_space<vmem>>, %arg20: memref<4x8x8xbf16, #tpu.memory_space<vmem>>, %arg21: memref<4x8xf32, #tpu.memory_space<vmem>>, %arg22: memref<4x8xf32, #tpu.memory_space<vmem>>, %arg23: memref<4x8x8xf32, #tpu.memory_space<vmem>>) attributes {dimension_semantics = [#tpu.dimension_semantics<parallel>, #tpu.dimension_semantics<arbitrary>], iteration_bounds = array<i64: 2, 1>, scalar_prefetch = 0 : i64, scratch_operands = 5 : i64, tpu.core_type = #tpu.core_type<tc>, window_params = [{transform_indices = @transform_0, window_bounds = array<i64: 1, 8, 32>}, {transform_indices = @transform_1, window_bounds = array<i64: 1, 8, 32>}, {pipeline_mode = #tpu.pipeline_mode<synchronous>, transform_indices = @transform_2, window_bounds = array<i64: 32, 32>}, {pipeline_mode = #tpu.pipeline_mode<synchronous>, transform_indices = @transform_3, window_bounds = array<i64: 1, 32>}, {pipeline_mode = #tpu.pipeline_mode<synchronous>, transform_indices = @transform_4, window_bounds = array<i64: 32, 64>}, {pipeline_mode = #tpu.pipeline_mode<synchronous>, transform_indices = @transform_5, window_bounds = array<i64: 1, 64>}, {pipeline_mode = #tpu.pipeline_mode<synchronous>, transform_indices = @transform_6, window_bounds = array<i64: 4, 8, 32>}, {pipeline_mode = #tpu.pipeline_mode<synchronous>, transform_indices = @transform_7, window_bounds = array<i64: 1, 32>}, {pipeline_mode = #tpu.pipeline_mode<synchronous>, transform_indices = @transform_8, window_bounds = array<i64: 1, 32>}, {pipeline_mode = #tpu.pipeline_mode<synchronous>, transform_indices = @transform_9, window_bounds = array<i64: 1, 32>}, {pipeline_mode = #tpu.pipeline_mode<synchronous>, transform_indices = @transform_10, window_bounds = array<i64: 32, 64>}, {pipeline_mode = #tpu.pipeline_mode<synchronous>, transform_indices = @transform_11, window_bounds = array<i64: 1, 64>}, {pipeline_mode = #tpu.pipeline_mode<synchronous>, transform_indices = @transform_12, window_bounds = array<i64: 64, 32>}, {pipeline_mode = #tpu.pipeline_mode<synchronous>, transform_indices = @transform_13, window_bounds = array<i64: 1, 32>}, {pipeline_mode = #tpu.pipeline_mode<synchronous>, transform_indices = @transform_14, window_bounds = array<i64: 1, 32>}, {pipeline_mode = #tpu.pipeline_mode<synchronous>, transform_indices = @transform_15, window_bounds = array<i64: 1, 32>}, {transform_indices = @transform_16, window_bounds = array<i64: 1, 8, 32>}]} {
    %c0_i32 = arith.constant 0 : i32
    %0 = arith.cmpi eq, %arg1, %c0_i32 : i32
    %1 = arith.extui %0 : i1 to i32
    %c0_i32_0 = arith.constant 0 : i32
    %2 = arith.cmpi ne, %1, %c0_i32_0 : i32
    scf.if %2 {
      %c0_i32_90 = arith.constant 0 : i32
      %c1_i32_91 = arith.constant 1 : i32
      %136 = arith.muli %c0_i32_90, %c1_i32_91 : i32
      %c0_i32_92 = arith.constant 0 : i32
      %137 = arith.addi %c0_i32_92, %136 : i32
      %c8_i32_93 = arith.constant 8 : i32
      %138 = arith.muli %137, %c8_i32_93 : i32
      %139 = tpu.assume_multiple %138, 8 : i32
      %c0_94 = arith.constant 0 : index
      %140 = arith.index_cast %139 : i32 to index
      %c0_95 = arith.constant 0 : index
      %141 = vector.load %arg3[%c0_94, %140, %c0_95] : memref<1x8x32xbf16, #tpu.memory_space<vmem>>, vector<1x8x32xbf16>
      %142 = vector.shape_cast %141 : vector<1x8x32xbf16> to vector<8x32xbf16>
      %c0_96 = arith.constant 0 : index
      %c0_97 = arith.constant 0 : index
      %143 = vector.load %arg6[%c0_96, %c0_97] : memref<32x64xbf16, #tpu.memory_space<vmem>>, vector<32x64xbf16>
      %cst_98 = arith.constant dense<0.000000e+00> : vector<8x64xf32>
      %144 = tpu.matmul %142, %143, %cst_98 {dimension_numbers = #tpu.dot_dimension_numbers<[1], [0], [0], [1], [0, 0, 1, 1], [], []>} : vector<8x32xbf16>, vector<32x64xbf16>, vector<8x64xf32> -> vector<8x64xf32>
      %c0_99 = arith.constant 0 : index
      %c0_100 = arith.constant 0 : index
      %145 = vector.load %arg7[%c0_99, %c0_100] : memref<1x64xf32, #tpu.memory_space<vmem>>, vector<1x64xf32>
      %146 = vector.broadcast %145 : vector<1x64xf32> to vector<8x64xf32>
      %147 = arith.addf %144, %146 : vector<8x64xf32>
      %148 = vector.extract_strided_slice %147 {offsets = [0, 0], sizes = [8, 32], strides = [1, 1]} : vector<8x64xf32> to vector<8x32xf32>
      %149 = vector.shape_cast %148 : vector<8x32xf32> to vector<8x4x8xf32>
      %150 = vector.extract_strided_slice %147 {offsets = [0, 32], sizes = [8, 32], strides = [1, 1]} : vector<8x64xf32> to vector<8x32xf32>
      %151 = vector.shape_cast %150 : vector<8x32xf32> to vector<8x4x8xf32>
      %152 = tpu.transpose %149, [1, 0, 2] : vector<8x4x8xf32> -> vector<4x8x8xf32>
      %153 = arith.truncf %152 : vector<4x8x8xf32> to vector<4x8x8xbf16>
      %c0_101 = arith.constant 0 : index
      %154 = arith.index_cast %139 : i32 to index
      %c0_102 = arith.constant 0 : index
      %155 = vector.load %arg19[%c0_101, %154, %c0_102] : memref<4x8x8xbf16, #tpu.memory_space<vmem>>, vector<4x8x8xbf16>
      tpu.vector_store %arg19[%c0_101, %154, %c0_102], %153 {strides = array<i32>} : memref<4x8x8xbf16, #tpu.memory_space<vmem>>, vector<4x8x8xbf16>,
      %156 = tpu.transpose %151, [1, 0, 2] : vector<8x4x8xf32> -> vector<4x8x8xf32>
      %157 = arith.truncf %156 : vector<4x8x8xf32> to vector<4x8x8xbf16>
      %c0_103 = arith.constant 0 : index
      %158 = arith.index_cast %139 : i32 to index
      %c0_104 = arith.constant 0 : index
      %159 = vector.load %arg20[%c0_103, %158, %c0_104] : memref<4x8x8xbf16, #tpu.memory_space<vmem>>, vector<4x8x8xbf16>
      tpu.vector_store %arg20[%c0_103, %158, %c0_104], %157 {strides = array<i32>} : memref<4x8x8xbf16, #tpu.memory_space<vmem>>, vector<4x8x8xbf16>,
      %c1_i32_105 = arith.constant 1 : i32
    } else {
    }
    %c0 = arith.constant 0 : index
    %c0_1 = arith.constant 0 : index
    %c0_2 = arith.constant 0 : index
    %3 = vector.load %arg2[%c0, %c0_1, %c0_2] : memref<1x8x32xf32, #tpu.memory_space<vmem>>, vector<1x8x32xf32>
    %4 = vector.shape_cast %3 : vector<1x8x32xf32> to vector<8x32xf32>
    %c0_3 = arith.constant 0 : index
    %c0_4 = arith.constant 0 : index
    %c0_5 = arith.constant 0 : index
    %5 = vector.load %arg2[%c0_3, %c0_4, %c0_5] : memref<1x8x32xf32, #tpu.memory_space<vmem>>, vector<1x8x32xf32>
    %6 = vector.shape_cast %5 : vector<1x8x32xf32> to vector<8x32xf32>
    %7 = arith.truncf %6 : vector<8x32xf32> to vector<8x32xbf16>
    %c0_6 = arith.constant 0 : index
    %c0_7 = arith.constant 0 : index
    %8 = vector.load %arg4[%c0_6, %c0_7] : memref<32x32xbf16, #tpu.memory_space<vmem>>, vector<32x32xbf16>
    %cst = arith.constant dense<0.000000e+00> : vector<8x32xf32>
    %9 = tpu.matmul %7, %8, %cst {dimension_numbers = #tpu.dot_dimension_numbers<[1], [0], [0], [1], [0, 0, 1, 1], [], []>} : vector<8x32xbf16>, vector<32x32xbf16>, vector<8x32xf32> -> vector<8x32xf32>
    %c0_8 = arith.constant 0 : index
    %c0_9 = arith.constant 0 : index
    %10 = vector.load %arg5[%c0_8, %c0_9] : memref<1x32xf32, #tpu.memory_space<vmem>>, vector<1x32xf32>
    %11 = vector.broadcast %10 : vector<1x32xf32> to vector<8x32xf32>
    %12 = arith.addf %9, %11 : vector<8x32xf32>
    %13 = vector.shape_cast %12 : vector<8x32xf32> to vector<8x4x8xf32>
    %14 = tpu.transpose %13, [1, 0, 2] : vector<8x4x8xf32> -> vector<4x8x8xf32>
    %15 = arith.truncf %14 : vector<4x8x8xf32> to vector<4x8x8xbf16>
    %cst_10 = arith.constant 0xFF800000 : f32
    %16 = vector.broadcast %cst_10 : f32 to vector<4x8xf32>
    %c0_11 = arith.constant 0 : index
    %c0_12 = arith.constant 0 : index
    %17 = vector.load %arg21[%c0_11, %c0_12] : memref<4x8xf32, #tpu.memory_space<vmem>>, vector<4x8xf32>
    tpu.vector_store %arg21[%c0_11, %c0_12], %16 {strides = array<i32>} : memref<4x8xf32, #tpu.memory_space<vmem>>, vector<4x8xf32>,
    %cst_13 = arith.constant 0.000000e+00 : f32
    %18 = vector.broadcast %cst_13 : f32 to vector<4x8xf32>
    %c0_14 = arith.constant 0 : index
    %c0_15 = arith.constant 0 : index
    %19 = vector.load %arg22[%c0_14, %c0_15] : memref<4x8xf32, #tpu.memory_space<vmem>>, vector<4x8xf32>
    tpu.vector_store %arg22[%c0_14, %c0_15], %18 {strides = array<i32>} : memref<4x8xf32, #tpu.memory_space<vmem>>, vector<4x8xf32>,
    %cst_16 = arith.constant 0.000000e+00 : f32
    %20 = vector.broadcast %cst_16 : f32 to vector<4x8x8xf32>
    %c0_17 = arith.constant 0 : index
    %c0_18 = arith.constant 0 : index
    %c0_19 = arith.constant 0 : index
    %21 = vector.load %arg23[%c0_17, %c0_18, %c0_19] : memref<4x8x8xf32, #tpu.memory_space<vmem>>, vector<4x8x8xf32>
    tpu.vector_store %arg23[%c0_17, %c0_18, %c0_19], %20 {strides = array<i32>} : memref<4x8x8xf32, #tpu.memory_space<vmem>>, vector<4x8x8xf32>,
    %c0_i32_20 = arith.constant 0 : i32
    %c1_i32 = arith.constant 1 : i32
    %22 = arith.muli %c0_i32_20, %c1_i32 : i32
    %c0_i32_21 = arith.constant 0 : i32
    %23 = arith.addi %c0_i32_21, %22 : i32
    %c8_i32 = arith.constant 8 : i32
    %24 = arith.muli %23, %c8_i32 : i32
    %25 = tpu.assume_multiple %24, 8 : i32
    %c0_22 = arith.constant 0 : index
    %26 = arith.index_cast %25 : i32 to index
    %c0_23 = arith.constant 0 : index
    %27 = vector.load %arg19[%c0_22, %26, %c0_23] : memref<4x8x8xbf16, #tpu.memory_space<vmem>>, vector<4x8x8xbf16>
    %c0_24 = arith.constant 0 : index
    %28 = arith.index_cast %25 : i32 to index
    %c0_25 = arith.constant 0 : index
    %29 = vector.load %arg20[%c0_24, %28, %c0_25] : memref<4x8x8xbf16, #tpu.memory_space<vmem>>, vector<4x8x8xbf16>
    "tpu.trace_start"() <{level = 10 : i32, message = "hqd,hkd->hqk"}> : () -> ()
    %cst_26 = arith.constant dense<0.000000e+00> : vector<4x8x8xf32>
    %30 = tpu.matmul %15, %27, %cst_26 {dimension_numbers = #tpu.dot_dimension_numbers<[2], [2], [1], [1], [0, 0, 0, 1, 1, 1], [0], [0]>} : vector<4x8x8xbf16>, vector<4x8x8xbf16>, vector<4x8x8xf32> -> vector<4x8x8xf32>
    "tpu.trace_stop"() : () -> ()
    %cst_27 = arith.constant 0.353553385 : f32
    %31 = vector.broadcast %cst_27 : f32 to vector<4x8x8xf32>
    %32 = arith.mulf %30, %31 : vector<4x8x8xf32>
    %c0_28 = arith.constant 0 : index
    %c0_29 = arith.constant 0 : index
    %33 = vector.load %arg21[%c0_28, %c0_29] : memref<4x8xf32, #tpu.memory_space<vmem>>, vector<4x8xf32>
    %cst_30 = arith.constant dense<0xFF800000> : vector<4x8xf32>
    %34 = vector.multi_reduction <maximumf>, %32, %cst_30 [2] : vector<4x8x8xf32> to vector<4x8xf32>
    %35 = arith.maximumf %33, %34 : vector<4x8xf32>
    %36 = arith.subf %33, %35 : vector<4x8xf32>
    %37 = math.exp %36 : vector<4x8xf32>
    %38 = vector.shape_cast %35 : vector<4x8xf32> to vector<4x8x1xf32>
    %39 = vector.broadcast %38 : vector<4x8x1xf32> to vector<4x8x8xf32>
    %40 = arith.subf %32, %39 : vector<4x8x8xf32>
    %41 = math.exp %40 : vector<4x8x8xf32>
    %c0_31 = arith.constant 0 : index
    %c0_32 = arith.constant 0 : index
    %42 = vector.load %arg22[%c0_31, %c0_32] : memref<4x8xf32, #tpu.memory_space<vmem>>, vector<4x8xf32>
    %43 = arith.mulf %37, %42 : vector<4x8xf32>
    %cst_33 = arith.constant dense<0.000000e+00> : vector<4x8xf32>
    %44 = vector.multi_reduction <add>, %41, %cst_33 [2] : vector<4x8x8xf32> to vector<4x8xf32>
    %45 = arith.addf %43, %44 : vector<4x8xf32>
    %c0_34 = arith.constant 0 : index
    %c0_35 = arith.constant 0 : index
    %46 = vector.load %arg22[%c0_34, %c0_35] : memref<4x8xf32, #tpu.memory_space<vmem>>, vector<4x8xf32>
    tpu.vector_store %arg22[%c0_34, %c0_35], %45 {strides = array<i32>} : memref<4x8xf32, #tpu.memory_space<vmem>>, vector<4x8xf32>,
    %47 = vector.shape_cast %37 : vector<4x8xf32> to vector<4x8x1xf32>
    %c0_36 = arith.constant 0 : index
    %c0_37 = arith.constant 0 : index
    %c0_38 = arith.constant 0 : index
    %48 = vector.load %arg23[%c0_36, %c0_37, %c0_38] : memref<4x8x8xf32, #tpu.memory_space<vmem>>, vector<4x8x8xf32>
    %49 = vector.broadcast %47 : vector<4x8x1xf32> to vector<4x8x8xf32>
    %50 = arith.mulf %49, %48 : vector<4x8x8xf32>
    %51 = arith.truncf %41 : vector<4x8x8xf32> to vector<4x8x8xbf16>
    "tpu.trace_start"() <{level = 10 : i32, message = "hqk,hkd->hqd"}> : () -> ()
    %cst_39 = arith.constant dense<0.000000e+00> : vector<4x8x8xf32>
    %52 = tpu.matmul %51, %29, %cst_39 {dimension_numbers = #tpu.dot_dimension_numbers<[2], [1], [1], [2], [0, 0, 0, 1, 1, 2], [0], [0]>} : vector<4x8x8xbf16>, vector<4x8x8xbf16>, vector<4x8x8xf32> -> vector<4x8x8xf32>
    "tpu.trace_stop"() : () -> ()
    %53 = arith.addf %50, %52 : vector<4x8x8xf32>
    %c0_40 = arith.constant 0 : index
    %c0_41 = arith.constant 0 : index
    %c0_42 = arith.constant 0 : index
    %54 = vector.load %arg23[%c0_40, %c0_41, %c0_42] : memref<4x8x8xf32, #tpu.memory_space<vmem>>, vector<4x8x8xf32>
    tpu.vector_store %arg23[%c0_40, %c0_41, %c0_42], %53 {strides = array<i32>} : memref<4x8x8xf32, #tpu.memory_space<vmem>>, vector<4x8x8xf32>,
    %c0_43 = arith.constant 0 : index
    %c0_44 = arith.constant 0 : index
    %55 = vector.load %arg21[%c0_43, %c0_44] : memref<4x8xf32, #tpu.memory_space<vmem>>, vector<4x8xf32>
    tpu.vector_store %arg21[%c0_43, %c0_44], %35 {strides = array<i32>} : memref<4x8xf32, #tpu.memory_space<vmem>>, vector<4x8xf32>,
    %c1_i32_45 = arith.constant 1 : i32
    %c0_46 = arith.constant 0 : index
    %c0_47 = arith.constant 0 : index
    %c0_48 = arith.constant 0 : index
    %56 = vector.load %arg23[%c0_46, %c0_47, %c0_48] : memref<4x8x8xf32, #tpu.memory_space<vmem>>, vector<4x8x8xf32>
    %c0_49 = arith.constant 0 : index
    %c0_50 = arith.constant 0 : index
    %57 = vector.load %arg22[%c0_49, %c0_50] : memref<4x8xf32, #tpu.memory_space<vmem>>, vector<4x8xf32>
    %58 = tpu.reciprocal %57 {approx = true} : vector<4x8xf32> -> vector<4x8xf32>
    %59 = vector.shape_cast %58 : vector<4x8xf32> to vector<4x8x1xf32>
    %60 = vector.broadcast %59 : vector<4x8x1xf32> to vector<4x8x8xf32>
    %61 = arith.mulf %56, %60 : vector<4x8x8xf32>
    %62 = arith.truncf %61 : vector<4x8x8xf32> to vector<4x8x8xbf16>
    %c0_51 = arith.constant 0 : index
    %c0_52 = arith.constant 0 : index
    %c0_53 = arith.constant 0 : index
    %63 = vector.load %arg8[%c0_51, %c0_52, %c0_53] : memref<4x8x32xbf16, #tpu.memory_space<vmem>>, vector<4x8x32xbf16>
    "tpu.trace_start"() <{level = 10 : i32, message = "hqd,hdD->hqD"}> : () -> ()
    %cst_54 = arith.constant dense<0.000000e+00> : vector<4x8x32xf32>
    %64 = tpu.matmul %62, %63, %cst_54 {dimension_numbers = #tpu.dot_dimension_numbers<[2], [1], [1], [2], [0, 0, 0, 1, 1, 2], [0], [0]>} : vector<4x8x8xbf16>, vector<4x8x32xbf16>, vector<4x8x32xf32> -> vector<4x8x32xf32>
    "tpu.trace_stop"() : () -> ()
    %cst_55 = arith.constant dense<0.000000e+00> : vector<8x32xf32>
    %65 = vector.multi_reduction <add>, %64, %cst_55 [0] : vector<4x8x32xf32> to vector<8x32xf32>
    %c0_56 = arith.constant 0 : index
    %c0_57 = arith.constant 0 : index
    %66 = vector.load %arg9[%c0_56, %c0_57] : memref<1x32xf32, #tpu.memory_space<vmem>>, vector<1x32xf32>
    %67 = vector.broadcast %66 : vector<1x32xf32> to vector<8x32xf32>
    %68 = arith.addf %65, %67 : vector<8x32xf32>
    %69 = arith.addf %4, %68 : vector<8x32xf32>
    %cst_58 = arith.constant dense<0.000000e+00> : vector<8xf32>
    %70 = vector.multi_reduction <add>, %69, %cst_58 [1] : vector<8x32xf32> to vector<8xf32>
    %71 = vector.shape_cast %70 : vector<8xf32> to vector<8x1xf32>
    %cst_59 = arith.constant 3.200000e+01 : f32
    %72 = vector.broadcast %cst_59 : f32 to vector<8x1xf32>
    %73 = arith.divf %71, %72 : vector<8x1xf32>
    %74 = vector.broadcast %73 : vector<8x1xf32> to vector<8x32xf32>
    %75 = arith.subf %69, %74 : vector<8x32xf32>
    %76 = arith.mulf %75, %75 : vector<8x32xf32>
    %cst_60 = arith.constant dense<0.000000e+00> : vector<8xf32>
    %77 = vector.multi_reduction <add>, %76, %cst_60 [1] : vector<8x32xf32> to vector<8xf32>
    %78 = vector.shape_cast %77 : vector<8xf32> to vector<8x1xf32>
    %cst_61 = arith.constant 3.200000e+01 : f32
    %79 = vector.broadcast %cst_61 : f32 to vector<8x1xf32>
    %80 = arith.divf %78, %79 : vector<8x1xf32>
    %81 = vector.broadcast %73 : vector<8x1xf32> to vector<8x32xf32>
    %82 = arith.subf %69, %81 : vector<8x32xf32>
    %cst_62 = arith.constant 9.99999974E-6 : f32
    %83 = vector.broadcast %cst_62 : f32 to vector<8x1xf32>
    %84 = arith.addf %80, %83 : vector<8x1xf32>
    %85 = math.rsqrt %84 : vector<8x1xf32>
    %86 = vector.broadcast %85 : vector<8x1xf32> to vector<8x32xf32>
    %87 = arith.mulf %82, %86 : vector<8x32xf32>
    %c0_63 = arith.constant 0 : index
    %c0_64 = arith.constant 0 : index
    %88 = vector.load %arg10[%c0_63, %c0_64] : memref<1x32xf32, #tpu.memory_space<vmem>>, vector<1x32xf32>
    %89 = vector.broadcast %88 : vector<1x32xf32> to vector<8x32xf32>
    %90 = arith.mulf %87, %89 : vector<8x32xf32>
    %c0_65 = arith.constant 0 : index
    %c0_66 = arith.constant 0 : index
    %91 = vector.load %arg11[%c0_65, %c0_66] : memref<1x32xf32, #tpu.memory_space<vmem>>, vector<1x32xf32>
    %92 = vector.broadcast %91 : vector<1x32xf32> to vector<8x32xf32>
    %93 = arith.addf %90, %92 : vector<8x32xf32>
    %94 = arith.truncf %93 : vector<8x32xf32> to vector<8x32xbf16>
    %c0_67 = arith.constant 0 : index
    %c0_68 = arith.constant 0 : index
    %95 = vector.load %arg12[%c0_67, %c0_68] : memref<32x64xbf16, #tpu.memory_space<vmem>>, vector<32x64xbf16>
    %cst_69 = arith.constant dense<0.000000e+00> : vector<8x64xf32>
    %96 = tpu.matmul %94, %95, %cst_69 {dimension_numbers = #tpu.dot_dimension_numbers<[1], [0], [0], [1], [0, 0, 1, 1], [], []>} : vector<8x32xbf16>, vector<32x64xbf16>, vector<8x64xf32> -> vector<8x64xf32>
    %c0_70 = arith.constant 0 : index
    %c0_71 = arith.constant 0 : index
    %97 = vector.load %arg13[%c0_70, %c0_71] : memref<1x64xf32, #tpu.memory_space<vmem>>, vector<1x64xf32>
    %98 = vector.broadcast %97 : vector<1x64xf32> to vector<8x64xf32>
    %99 = arith.addf %96, %98 : vector<8x64xf32>
    %cst_72 = arith.constant 0.000000e+00 : f32
    %100 = vector.broadcast %cst_72 : f32 to vector<8x64xf32>
    %101 = arith.maximumf %99, %100 : vector<8x64xf32>
    %102 = arith.truncf %101 : vector<8x64xf32> to vector<8x64xbf16>
    %c0_73 = arith.constant 0 : index
    %c0_74 = arith.constant 0 : index
    %103 = vector.load %arg14[%c0_73, %c0_74] : memref<64x32xbf16, #tpu.memory_space<vmem>>, vector<64x32xbf16>
    %cst_75 = arith.constant dense<0.000000e+00> : vector<8x32xf32>
    %104 = tpu.matmul %102, %103, %cst_75 {dimension_numbers = #tpu.dot_dimension_numbers<[1], [0], [0], [1], [0, 0, 1, 1], [], []>} : vector<8x64xbf16>, vector<64x32xbf16>, vector<8x32xf32> -> vector<8x32xf32>
    %c0_76 = arith.constant 0 : index
    %c0_77 = arith.constant 0 : index
    %105 = vector.load %arg15[%c0_76, %c0_77] : memref<1x32xf32, #tpu.memory_space<vmem>>, vector<1x32xf32>
    %106 = vector.broadcast %105 : vector<1x32xf32> to vector<8x32xf32>
    %107 = arith.addf %104, %106 : vector<8x32xf32>
    %108 = arith.addf %93, %107 : vector<8x32xf32>
    %cst_78 = arith.constant dense<0.000000e+00> : vector<8xf32>
    %109 = vector.multi_reduction <add>, %108, %cst_78 [1] : vector<8x32xf32> to vector<8xf32>
    %110 = vector.shape_cast %109 : vector<8xf32> to vector<8x1xf32>
    %cst_79 = arith.constant 3.200000e+01 : f32
    %111 = vector.broadcast %cst_79 : f32 to vector<8x1xf32>
    %112 = arith.divf %110, %111 : vector<8x1xf32>
    %113 = vector.broadcast %112 : vector<8x1xf32> to vector<8x32xf32>
    %114 = arith.subf %108, %113 : vector<8x32xf32>
    %115 = arith.mulf %114, %114 : vector<8x32xf32>
    %cst_80 = arith.constant dense<0.000000e+00> : vector<8xf32>
    %116 = vector.multi_reduction <add>, %115, %cst_80 [1] : vector<8x32xf32> to vector<8xf32>
    %117 = vector.shape_cast %116 : vector<8xf32> to vector<8x1xf32>
    %cst_81 = arith.constant 3.200000e+01 : f32
    %118 = vector.broadcast %cst_81 : f32 to vector<8x1xf32>
    %119 = arith.divf %117, %118 : vector<8x1xf32>
    %120 = vector.broadcast %112 : vector<8x1xf32> to vector<8x32xf32>
    %121 = arith.subf %108, %120 : vector<8x32xf32>
    %cst_82 = arith.constant 9.99999974E-6 : f32
    %122 = vector.broadcast %cst_82 : f32 to vector<8x1xf32>
    %123 = arith.addf %119, %122 : vector<8x1xf32>
    %124 = math.rsqrt %123 : vector<8x1xf32>
    %125 = vector.broadcast %124 : vector<8x1xf32> to vector<8x32xf32>
    %126 = arith.mulf %121, %125 : vector<8x32xf32>
    %c0_83 = arith.constant 0 : index
    %c0_84 = arith.constant 0 : index
    %127 = vector.load %arg16[%c0_83, %c0_84] : memref<1x32xf32, #tpu.memory_space<vmem>>, vector<1x32xf32>
    %128 = vector.broadcast %127 : vector<1x32xf32> to vector<8x32xf32>
    %129 = arith.mulf %126, %128 : vector<8x32xf32>
    %c0_85 = arith.constant 0 : index
    %c0_86 = arith.constant 0 : index
    %130 = vector.load %arg17[%c0_85, %c0_86] : memref<1x32xf32, #tpu.memory_space<vmem>>, vector<1x32xf32>
    %131 = vector.broadcast %130 : vector<1x32xf32> to vector<8x32xf32>
    %132 = arith.addf %129, %131 : vector<8x32xf32>
    %c0_87 = arith.constant 0 : index
    %c0_88 = arith.constant 0 : index
    %c0_89 = arith.constant 0 : index
    %133 = vector.load %arg18[%c0_87, %c0_88, %c0_89] : memref<1x8x32xf32, #tpu.memory_space<vmem>>, vector<1x8x32xf32>
    %134 = vector.shape_cast %133 : vector<1x8x32xf32> to vector<8x32xf32>
    %135 = vector.shape_cast %132 : vector<8x32xf32> to vector<1x8x32xf32>
    tpu.vector_store %arg18[%c0_87, %c0_88, %c0_89], %135 {strides = array<i32>} : memref<1x8x32xf32, #tpu.memory_space<vmem>>, vector<1x8x32xf32>,
    return
  }
  func.func @transform_0(%arg0: i32, %arg1: i32) -> (i32, i32, i32) {
    %c0_i32 = arith.constant 0 : i32
    %c0_i32_0 = arith.constant 0 : i32
    return %arg0, %arg1, %c0_i32 : i32, i32, i32
  }
  func.func @transform_1(%arg0: i32, %arg1: i32) -> (i32, i32, i32) {
    %c0_i32 = arith.constant 0 : i32
    %c0_i32_0 = arith.constant 0 : i32
    %c0_i32_1 = arith.constant 0 : i32
    return %arg0, %c0_i32, %c0_i32_0 : i32, i32, i32
  }
  func.func @transform_2(%arg0: i32, %arg1: i32) -> (i32, i32) {
    %c0_i32 = arith.constant 0 : i32
    %c0_i32_0 = arith.constant 0 : i32
    %c0_i32_1 = arith.constant 0 : i32
    return %c0_i32, %c0_i32_0 : i32, i32
  }
  func.func @transform_3(%arg0: i32, %arg1: i32) -> (i32, i32) {
    %c0_i32 = arith.constant 0 : i32
    %c0_i32_0 = arith.constant 0 : i32
    %c0_i32_1 = arith.constant 0 : i32
    return %c0_i32, %c0_i32_0 : i32, i32
  }
  func.func @transform_4(%arg0: i32, %arg1: i32) -> (i32, i32) {
    %c0_i32 = arith.constant 0 : i32
    %c0_i32_0 = arith.constant 0 : i32
    %c0_i32_1 = arith.constant 0 : i32
    return %c0_i32, %c0_i32_0 : i32, i32
  }
  func.func @transform_5(%arg0: i32, %arg1: i32) -> (i32, i32) {
    %c0_i32 = arith.constant 0 : i32
    %c0_i32_0 = arith.constant 0 : i32
    %c0_i32_1 = arith.constant 0 : i32
    return %c0_i32, %c0_i32_0 : i32, i32
  }
  func.func @transform_6(%arg0: i32, %arg1: i32) -> (i32, i32, i32) {
    %c0_i32 = arith.constant 0 : i32
    %c0_i32_0 = arith.constant 0 : i32
    %c0_i32_1 = arith.constant 0 : i32
    %c0_i32_2 = arith.constant 0 : i32
    return %c0_i32, %c0_i32_0, %c0_i32_1 : i32, i32, i32
  }
  func.func @transform_7(%arg0: i32, %arg1: i32) -> (i32, i32) {
    %c0_i32 = arith.constant 0 : i32
    %c0_i32_0 = arith.constant 0 : i32
    %c0_i32_1 = arith.constant 0 : i32
    return %c0_i32, %c0_i32_0 : i32, i32
  }
  func.func @transform_8(%arg0: i32, %arg1: i32) -> (i32, i32) {
    %c0_i32 = arith.constant 0 : i32
    %c0_i32_0 = arith.constant 0 : i32
    %c0_i32_1 = arith.constant 0 : i32
    return %c0_i32, %c0_i32_0 : i32, i32
  }
  func.func @transform_9(%arg0: i32, %arg1: i32) -> (i32, i32) {
    %c0_i32 = arith.constant 0 : i32
    %c0_i32_0 = arith.constant 0 : i32
    %c0_i32_1 = arith.constant 0 : i32
    return %c0_i32, %c0_i32_0 : i32, i32
  }
  func.func @transform_10(%arg0: i32, %arg1: i32) -> (i32, i32) {
    %c0_i32 = arith.constant 0 : i32
    %c0_i32_0 = arith.constant 0 : i32
    %c0_i32_1 = arith.constant 0 : i32
    return %c0_i32, %c0_i32_0 : i32, i32
  }
  func.func @transform_11(%arg0: i32, %arg1: i32) -> (i32, i32) {
    %c0_i32 = arith.constant 0 : i32
    %c0_i32_0 = arith.constant 0 : i32
    %c0_i32_1 = arith.constant 0 : i32
    return %c0_i32, %c0_i32_0 : i32, i32
  }
  func.func @transform_12(%arg0: i32, %arg1: i32) -> (i32, i32) {
    %c0_i32 = arith.constant 0 : i32
    %c0_i32_0 = arith.constant 0 : i32
    %c0_i32_1 = arith.constant 0 : i32
    return %c0_i32, %c0_i32_0 : i32, i32
  }
  func.func @transform_13(%arg0: i32, %arg1: i32) -> (i32, i32) {
    %c0_i32 = arith.constant 0 : i32
    %c0_i32_0 = arith.constant 0 : i32
    %c0_i32_1 = arith.constant 0 : i32
    return %c0_i32, %c0_i32_0 : i32, i32
  }
  func.func @transform_14(%arg0: i32, %arg1: i32) -> (i32, i32) {
    %c0_i32 = arith.constant 0 : i32
    %c0_i32_0 = arith.constant 0 : i32
    %c0_i32_1 = arith.constant 0 : i32
    return %c0_i32, %c0_i32_0 : i32, i32
  }
  func.func @transform_15(%arg0: i32, %arg1: i32) -> (i32, i32) {
    %c0_i32 = arith.constant 0 : i32
    %c0_i32_0 = arith.constant 0 : i32
    %c0_i32_1 = arith.constant 0 : i32
    return %c0_i32, %c0_i32_0 : i32, i32
  }
  func.func @transform_16(%arg0: i32, %arg1: i32) -> (i32, i32, i32) {
    %c0_i32 = arith.constant 0 : i32
    %c0_i32_0 = arith.constant 0 : i32
    return %arg0, %arg1, %c0_i32 : i32, i32, i32
  }
}

</mosaic_0001>

<llo_original>
// kernel: tpu_custom_call.1
$region0: #{tpu_custom_call.1}
  #allocation0 [shape = 'u32[]', space=smem, size = 0x4, offset = 0x4, fixed_abs, tag = 'smem constant byte address 0x4 - core index']
  #allocation1 [shape = 'u32[72,128]{1,0:T(1,128)}', space=vmem, size = 0x9000, scoped, tag = 'internal scratch']
  #allocation2 [shape = 'bf16[4,8,8]{2,1,0:T(8,128)(2,1)}', space=vmem, size = 0x2000, scoped, tag = 'scratch operand']
  #allocation3 [shape = 'bf16[4,8,8]{2,1,0:T(8,128)(2,1)}', space=vmem, size = 0x2000, scoped, tag = 'scratch operand']
  #allocation4 [shape = 'f32[4,8]{1,0:T(4,128)}', space=vmem, size = 0x800, scoped, tag = 'scratch operand']
  #allocation5 [shape = 'f32[4,8]{1,0:T(4,128)}', space=vmem, size = 0x800, scoped, tag = 'scratch operand']
  #allocation6 [shape = 'f32[4,8,8]{2,1,0:T(8,128)}', space=vmem, size = 0x4000, scoped, tag = 'scratch operand']
  %s0 = inlined_call_operand.vmem [shape: f32[2,8,32], index: 0, kind: input, shape index: {}]
  %s1 = inlined_call_operand.hbm [shape: bf16[2,8,32], index: 1, kind: input, shape index: {}]
  %s2 = inlined_call_operand.vmem [shape: bf16[32,32], index: 2, kind: input, shape index: {}]
  %s3 = inlined_call_operand.vmem [shape: f32[1,32], index: 3, kind: input, shape index: {}]
  %s4 = inlined_call_operand.vmem [shape: bf16[32,64], index: 4, kind: input, shape index: {}]
  %s5 = inlined_call_operand.vmem [shape: f32[1,64], index: 5, kind: input, shape index: {}]
  %s6 = inlined_call_operand.hbm [shape: bf16[4,8,32], index: 6, kind: input, shape index: {}]
  %s7 = inlined_call_operand.vmem [shape: f32[1,32], index: 7, kind: input, shape index: {}]
  %s8 = inlined_call_operand.vmem [shape: f32[1,32], index: 8, kind: input, shape index: {}]
  %s9 = inlined_call_operand.vmem [shape: f32[1,32], index: 9, kind: input, shape index: {}]
  %s10 = inlined_call_operand.hbm [shape: bf16[32,64], index: 10, kind: input, shape index: {}]
  %s11 = inlined_call_operand.vmem [shape: f32[1,64], index: 11, kind: input, shape index: {}]
  %s12 = inlined_call_operand.vmem [shape: bf16[64,32], index: 12, kind: input, shape index: {}]
  %s13 = inlined_call_operand.vmem [shape: f32[1,32], index: 13, kind: input, shape index: {}]
  %s14 = inlined_call_operand.vmem [shape: f32[1,32], index: 14, kind: input, shape index: {}]
  %s15 = inlined_call_operand.vmem [shape: f32[1,32], index: 15, kind: input, shape index: {}]
  %s16 = inlined_call_operand.hbm [shape: f32[2,8,32], index: 16, kind: output, shape index: {}]
  %s17 = sld [smem:[#allocation0]]
  $region113: #{tpu_custom_call.1} parent=0
    _
  %s19 = ssub.s32 1, %s17
  %s20 = scalar_select 0, %s19, %s17
  $region1: #{tpu_custom_call.1} parent=0
    #allocation7 [shape = 'u8[4096]{0}', space=vmem, size = 0x1000, scoped, tag = 'input window, operand 1']
    #allocation8 [shape = 's32[2]{0}', space=sflag, size = 0x8, scoped, tag = 'scoped memory for tpu_custom_call.1']
    #allocation9 [shape = 's32[2]{0}', space=sflag, size = 0x8, scoped, tag = 'scoped memory for tpu_custom_call.1']
    #allocation10 [shape = 'u8[8192]{0}', space=vmem, size = 0x2000, scoped, tag = 'input window, operand 6, single buffered']
    #allocation11 [shape = 's32[1]{0}', space=sflag, size = 0x4, scoped, tag = 'scoped memory for tpu_custom_call.1']
    #allocation12 [shape = 'u8[8192]{0}', space=vmem, size = 0x2000, scoped, tag = 'input window, operand 10, single buffered']
    #allocation13 [shape = 'u8[8192]{0}', space=vmem, size = 0x2000, scoped, tag = 'output window, operand 0']
    %21 = vsyncpa [#allocation8], 0
    %s22 = scalar_lea.sflag [#allocation8], 1
    %23 = vsyncpa %s22, 0
    %24 = vsyncpa [#allocation11], 0
    %25 = vsyncpa [#allocation9], 0
    %s26 = scalar_lea.sflag [#allocation9], 1
    %27 = vsyncpa %s26, 0
    loop: start=0, step=1, limit=4
    $region2: #{tpu_custom_call.1} parent=1 // loop_pre_header
      _
    $region3: #{tpu_custom_call.1} parent=1 // loop_header
      %s29 = sphi 0, %s33
      %p30 = scmp.ge.s32.totalorder %s29, 4
      %s36 = sphi 0, %s48
      %s37 = sphi 0, %s44
      %s38 = sphi 0, %s36
      %s39 = sphi 0, %s37
      %s40 = sphi 0, %s38
      %s41 = sphi 0, %s39
      %s53 = sphi 0, %s55
      %s56 = sphi 0, %s53
      %s57 = sphi 0, %s56
      %s73 = sphi 0, %s57
      %s79 = sphi 0, %s81
      %s82 = sphi 0, %s79
      %s83 = sphi 0, %s82
      %s99 = sphi 0, %s83
      %s103 = sphi 0, %s103
      %s105 = sphi 0, %s103
      %s106 = sphi 0, %s105
      %s120 = sphi 0, %s106
      %s124 = sphi 0, %s124
      %s126 = sphi 0, %s124
      %s127 = sphi 0, %s126
      %s141 = sphi 0, %s127
      %s145 = sphi 0, %s145
      %s147 = sphi 0, %s145
      %s148 = sphi 0, %s147
      %s162 = sphi 0, %s148
      %s166 = sphi 0, %s166
      %s168 = sphi 0, %s166
      %s169 = sphi 0, %s168
      %s183 = sphi 0, %s169
      %s187 = sphi 0, %s187
      %s189 = sphi 0, %s187
      %s190 = sphi 0, %s189
      %s204 = sphi 0, %s190
      %s208 = sphi 0, %s208
      %s210 = sphi 0, %s208
      %s211 = sphi 0, %s210
      %s225 = sphi 0, %s211
      %s229 = sphi 0, %s229
      %s231 = sphi 0, %s229
      %s232 = sphi 0, %s231
      %s246 = sphi 0, %s232
      %s250 = sphi 0, %s250
      %s252 = sphi 0, %s250
      %s253 = sphi 0, %s252
      %s267 = sphi 0, %s253
      %s271 = sphi 0, %s271
      %s273 = sphi 0, %s271
      %s274 = sphi 0, %s273
      %s288 = sphi 0, %s274
      %s292 = sphi 0, %s292
      %s294 = sphi 0, %s292
      %s295 = sphi 0, %s294
      %s309 = sphi 0, %s295
      %s313 = sphi 0, %s313
      %s315 = sphi 0, %s313
      %s316 = sphi 0, %s315
      %s330 = sphi 0, %s316
      %s334 = sphi 0, %s334
      %s336 = sphi 0, %s334
      %s337 = sphi 0, %s336
      %s351 = sphi 0, %s337
      %s355 = sphi 0, %s355
      %s357 = sphi 0, %s355
      %s358 = sphi 0, %s357
      %s372 = sphi 0, %s358
      %s376 = sphi 0, %s376
      %s378 = sphi 0, %s376
      %s379 = sphi 0, %s378
      %s393 = sphi 0, %s379
      %s401 = sphi 0, %s403
      %s404 = sphi 0, %s401
      %s405 = sphi 0, %s404
      %s421 = sphi 0, %s405
    $region4: #{tpu_custom_call.1} parent=1 // loop_header_branch
      %32 = sbr.rel (%p30) target = $region8
    $region5: #{tpu_custom_call.1} parent=1 // loop_body
      %s34 = ssub.s32 %s29, 1
      %s35 = ssub.s32 %s29, 2
      %s42 = sadd.s32 1, %s37
      %p43 = scmp.ge.s32.totalorder %s42, 1
      %s44 = scalar_select %p43, 0, %s42
      %s45 = sadd.s32 1, %s36
      %s46 = scalar_select %p43, %s45, %s36
      %p47 = scmp.ge.s32.totalorder %s46, 2
      %s48 = scalar_select %p47, 0, %s46
      %s49 = ssub.s32 %s36, %s48
      %s50 = ssub.s32 %s37, %s44
      %s51 = sor.u32 %s49, %s50
      %p52 = scmp.eq.s32.totalorder %s51, 0
      %s54 = sadd.s32 %s53, 1
      %s55 = scalar_select %p52, %s53, %s54
      %p58 = pneg %p52
      %p59 = scmp.eq.s32.totalorder %s29, 1
      %p60 = por %p58, %p59
      %p61 = scmp.ne.s32.totalorder %s53, %s56
      %p62 = scmp.eq.s32.totalorder %s29, 0
      %p63 = por %p61, %p62
      %p64 = scmp.ne.s32.totalorder %s53, %s56
      %p65 = scmp.eq.s32.totalorder %s34, 1
      %p66 = por %p64, %p65
      %p67 = scmp.ne.s32.totalorder %s56, %s57
      %p68 = scmp.eq.s32.totalorder %s34, 0
      %p69 = por %p67, %p68
      %p70 = scmp.ne.s32.totalorder %s56, %s57
      %p71 = scmp.eq.s32.totalorder %s35, 1
      %p72 = por %p70, %p71
      %p74 = scmp.ne.s32.totalorder %s57, %s73
      %p75 = scmp.eq.s32.totalorder %s35, 0
      %p76 = por %p74, %p75
      %s77 = ssub.s32 %s36, %s48
      %p78 = scmp.eq.s32.totalorder %s77, 0
      %s80 = sadd.s32 %s79, 1
      %s81 = scalar_select %p78, %s79, %s80
      %p84 = pneg %p78
      %p85 = scmp.eq.s32.totalorder %s29, 1
      %p86 = por %p84, %p85
      %p87 = scmp.ne.s32.totalorder %s79, %s82
      %p88 = scmp.eq.s32.totalorder %s29, 0
      %p89 = por %p87, %p88
      %p90 = scmp.ne.s32.totalorder %s79, %s82
      %p91 = scmp.eq.s32.totalorder %s34, 1
      %p92 = por %p90, %p91
      %p93 = scmp.ne.s32.totalorder %s82, %s83
      %p94 = scmp.eq.s32.totalorder %s34, 0
      %p95 = por %p93, %p94
      %p96 = scmp.ne.s32.totalorder %s82, %s83
      %p97 = scmp.eq.s32.totalorder %s35, 1
      %p98 = por %p96, %p97
      %p100 = scmp.ne.s32.totalorder %s83, %s99
      %p101 = scmp.eq.s32.totalorder %s35, 0
      %p102 = por %p100, %p101
      %s104 = sadd.s32 %s103, 1
      %p107 = scmp.eq.s32.totalorder %s29, 1
      %p108 = scmp.ne.s32.totalorder %s103, %s105
      %p109 = scmp.eq.s32.totalorder %s29, 0
      %p110 = por %p108, %p109
      %p111 = scmp.ne.s32.totalorder %s103, %s105
      %p112 = scmp.eq.s32.totalorder %s34, 1
      %p113 = por %p111, %p112
      %p114 = scmp.ne.s32.totalorder %s105, %s106
      %p115 = scmp.eq.s32.totalorder %s34, 0
      %p116 = por %p114, %p115
      %p117 = scmp.ne.s32.totalorder %s105, %s106
      %p118 = scmp.eq.s32.totalorder %s35, 1
      %p119 = por %p117, %p118
      %p121 = scmp.ne.s32.totalorder %s106, %s120
      %p122 = scmp.eq.s32.totalorder %s35, 0
      %p123 = por %p121, %p122
      %s125 = sadd.s32 %s124, 1
      %p128 = scmp.eq.s32.totalorder %s29, 1
      %p129 = scmp.ne.s32.totalorder %s124, %s126
      %p130 = scmp.eq.s32.totalorder %s29, 0
      %p131 = por %p129, %p130
      %p132 = scmp.ne.s32.totalorder %s124, %s126
      %p133 = scmp.eq.s32.totalorder %s34, 1
      %p134 = por %p132, %p133
      %p135 = scmp.ne.s32.totalorder %s126, %s127
      %p136 = scmp.eq.s32.totalorder %s34, 0
      %p137 = por %p135, %p136
      %p138 = scmp.ne.s32.totalorder %s126, %s127
      %p139 = scmp.eq.s32.totalorder %s35, 1
      %p140 = por %p138, %p139
      %p142 = scmp.ne.s32.totalorder %s127, %s141
      %p143 = scmp.eq.s32.totalorder %s35, 0
      %p144 = por %p142, %p143
      %s146 = sadd.s32 %s145, 1
      %p149 = scmp.eq.s32.totalorder %s29, 1
      %p150 = scmp.ne.s32.totalorder %s145, %s147
      %p151 = scmp.eq.s32.totalorder %s29, 0
      %p152 = por %p150, %p151
      %p153 = scmp.ne.s32.totalorder %s145, %s147
      %p154 = scmp.eq.s32.totalorder %s34, 1
      %p155 = por %p153, %p154
      %p156 = scmp.ne.s32.totalorder %s147, %s148
      %p157 = scmp.eq.s32.totalorder %s34, 0
      %p158 = por %p156, %p157
      %p159 = scmp.ne.s32.totalorder %s147, %s148
      %p160 = scmp.eq.s32.totalorder %s35, 1
      %p161 = por %p159, %p160
      %p163 = scmp.ne.s32.totalorder %s148, %s162
      %p164 = scmp.eq.s32.totalorder %s35, 0
      %p165 = por %p163, %p164
      %s167 = sadd.s32 %s166, 1
      %p170 = scmp.eq.s32.totalorder %s29, 1
      %p171 = scmp.ne.s32.totalorder %s166, %s168
      %p172 = scmp.eq.s32.totalorder %s29, 0
      %p173 = por %p171, %p172
      %p174 = scmp.ne.s32.totalorder %s166, %s168
      %p175 = scmp.eq.s32.totalorder %s34, 1
      %p176 = por %p174, %p175
      %p177 = scmp.ne.s32.totalorder %s168, %s169
      %p178 = scmp.eq.s32.totalorder %s34, 0
      %p179 = por %p177, %p178
      %p180 = scmp.ne.s32.totalorder %s168, %s169
      %p181 = scmp.eq.s32.totalorder %s35, 1
      %p182 = por %p180, %p181
      %p184 = scmp.ne.s32.totalorder %s169, %s183
      %p185 = scmp.eq.s32.totalorder %s35, 0
      %p186 = por %p184, %p185
      %s188 = sadd.s32 %s187, 1
      %p191 = scmp.eq.s32.totalorder %s29, 1
      %p192 = scmp.ne.s32.totalorder %s187, %s189
      %p193 = scmp.eq.s32.totalorder %s29, 0
      %p194 = por %p192, %p193
      %p195 = scmp.ne.s32.totalorder %s187, %s189
      %p196 = scmp.eq.s32.totalorder %s34, 1
      %p197 = por %p195, %p196
      %p198 = scmp.ne.s32.totalorder %s189, %s190
      %p199 = scmp.eq.s32.totalorder %s34, 0
      %p200 = por %p198, %p199
      %p201 = scmp.ne.s32.totalorder %s189, %s190
      %p202 = scmp.eq.s32.totalorder %s35, 1
      %p203 = por %p201, %p202
      %p205 = scmp.ne.s32.totalorder %s190, %s204
      %p206 = scmp.eq.s32.totalorder %s35, 0
      %p207 = por %p205, %p206
      %s209 = sadd.s32 %s208, 1
      %p212 = scmp.eq.s32.totalorder %s29, 1
      %p213 = scmp.ne.s32.totalorder %s208, %s210
      %p214 = scmp.eq.s32.totalorder %s29, 0
      %p215 = por %p213, %p214
      %p216 = scmp.ne.s32.totalorder %s208, %s210
      %p217 = scmp.eq.s32.totalorder %s34, 1
      %p218 = por %p216, %p217
      %p219 = scmp.ne.s32.totalorder %s210, %s211
      %p220 = scmp.eq.s32.totalorder %s34, 0
      %p221 = por %p219, %p220
      %p222 = scmp.ne.s32.totalorder %s210, %s211
      %p223 = scmp.eq.s32.totalorder %s35, 1
      %p224 = por %p222, %p223
      %p226 = scmp.ne.s32.totalorder %s211, %s225
      %p227 = scmp.eq.s32.totalorder %s35, 0
      %p228 = por %p226, %p227
      %s230 = sadd.s32 %s229, 1
      %p233 = scmp.eq.s32.totalorder %s29, 1
      %p234 = scmp.ne.s32.totalorder %s229, %s231
      %p235 = scmp.eq.s32.totalorder %s29, 0
      %p236 = por %p234, %p235
      %p237 = scmp.ne.s32.totalorder %s229, %s231
      %p238 = scmp.eq.s32.totalorder %s34, 1
      %p239 = por %p237, %p238
      %p240 = scmp.ne.s32.totalorder %s231, %s232
      %p241 = scmp.eq.s32.totalorder %s34, 0
      %p242 = por %p240, %p241
      %p243 = scmp.ne.s32.totalorder %s231, %s232
      %p244 = scmp.eq.s32.totalorder %s35, 1
      %p245 = por %p243, %p244
      %p247 = scmp.ne.s32.totalorder %s232, %s246
      %p248 = scmp.eq.s32.totalorder %s35, 0
      %p249 = por %p247, %p248
      %s251 = sadd.s32 %s250, 1
      %p254 = scmp.eq.s32.totalorder %s29, 1
      %p255 = scmp.ne.s32.totalorder %s250, %s252
      %p256 = scmp.eq.s32.totalorder %s29, 0
      %p257 = por %p255, %p256
      %p258 = scmp.ne.s32.totalorder %s250, %s252
      %p259 = scmp.eq.s32.totalorder %s34, 1
      %p260 = por %p258, %p259
      %p261 = scmp.ne.s32.totalorder %s252, %s253
      %p262 = scmp.eq.s32.totalorder %s34, 0
      %p263 = por %p261, %p262
      %p264 = scmp.ne.s32.totalorder %s252, %s253
      %p265 = scmp.eq.s32.totalorder %s35, 1
      %p266 = por %p264, %p265
      %p268 = scmp.ne.s32.totalorder %s253, %s267
      %p269 = scmp.eq.s32.totalorder %s35, 0
      %p270 = por %p268, %p269
      %s272 = sadd.s32 %s271, 1
      %p275 = scmp.eq.s32.totalorder %s29, 1
      %p276 = scmp.ne.s32.totalorder %s271, %s273
      %p277 = scmp.eq.s32.totalorder %s29, 0
      %p278 = por %p276, %p277
      %p279 = scmp.ne.s32.totalorder %s271, %s273
      %p280 = scmp.eq.s32.totalorder %s34, 1
      %p281 = por %p279, %p280
      %p282 = scmp.ne.s32.totalorder %s273, %s274
      %p283 = scmp.eq.s32.totalorder %s34, 0
      %p284 = por %p282, %p283
      %p285 = scmp.ne.s32.totalorder %s273, %s274
      %p286 = scmp.eq.s32.totalorder %s35, 1
      %p287 = por %p285, %p286
      %p289 = scmp.ne.s32.totalorder %s274, %s288
      %p290 = scmp.eq.s32.totalorder %s35, 0
      %p291 = por %p289, %p290
      %s293 = sadd.s32 %s292, 1
      %p296 = scmp.eq.s32.totalorder %s29, 1
      %p297 = scmp.ne.s32.totalorder %s292, %s294
      %p298 = scmp.eq.s32.totalorder %s29, 0
      %p299 = por %p297, %p298
      %p300 = scmp.ne.s32.totalorder %s292, %s294
      %p301 = scmp.eq.s32.totalorder %s34, 1
      %p302 = por %p300, %p301
      %p303 = scmp.ne.s32.totalorder %s294, %s295
      %p304 = scmp.eq.s32.totalorder %s34, 0
      %p305 = por %p303, %p304
      %p306 = scmp.ne.s32.totalorder %s294, %s295
      %p307 = scmp.eq.s32.totalorder %s35, 1
      %p308 = por %p306, %p307
      %p310 = scmp.ne.s32.totalorder %s295, %s309
      %p311 = scmp.eq.s32.totalorder %s35, 0
      %p312 = por %p310, %p311
      %s314 = sadd.s32 %s313, 1
      %p317 = scmp.eq.s32.totalorder %s29, 1
      %p318 = scmp.ne.s32.totalorder %s313, %s315
      %p319 = scmp.eq.s32.totalorder %s29, 0
      %p320 = por %p318, %p319
      %p321 = scmp.ne.s32.totalorder %s313, %s315
      %p322 = scmp.eq.s32.totalorder %s34, 1
      %p323 = por %p321, %p322
      %p324 = scmp.ne.s32.totalorder %s315, %s316
      %p325 = scmp.eq.s32.totalorder %s34, 0
      %p326 = por %p324, %p325
      %p327 = scmp.ne.s32.totalorder %s315, %s316
      %p328 = scmp.eq.s32.totalorder %s35, 1
      %p329 = por %p327, %p328
      %p331 = scmp.ne.s32.totalorder %s316, %s330
      %p332 = scmp.eq.s32.totalorder %s35, 0
      %p333 = por %p331, %p332
      %s335 = sadd.s32 %s334, 1
      %p338 = scmp.eq.s32.totalorder %s29, 1
      %p339 = scmp.ne.s32.totalorder %s334, %s336
      %p340 = scmp.eq.s32.totalorder %s29, 0
      %p341 = por %p339, %p340
      %p342 = scmp.ne.s32.totalorder %s334, %s336
      %p343 = scmp.eq.s32.totalorder %s34, 1
      %p344 = por %p342, %p343
      %p345 = scmp.ne.s32.totalorder %s336, %s337
      %p346 = scmp.eq.s32.totalorder %s34, 0
      %p347 = por %p345, %p346
      %p348 = scmp.ne.s32.totalorder %s336, %s337
      %p349 = scmp.eq.s32.totalorder %s35, 1
      %p350 = por %p348, %p349
      %p352 = scmp.ne.s32.totalorder %s337, %s351
      %p353 = scmp.eq.s32.totalorder %s35, 0
      %p354 = por %p352, %p353
      %s356 = sadd.s32 %s355, 1
      %p359 = scmp.eq.s32.totalorder %s29, 1
      %p360 = scmp.ne.s32.totalorder %s355, %s357
      %p361 = scmp.eq.s32.totalorder %s29, 0
      %p362 = por %p360, %p361
      %p363 = scmp.ne.s32.totalorder %s355, %s357
      %p364 = scmp.eq.s32.totalorder %s34, 1
      %p365 = por %p363, %p364
      %p366 = scmp.ne.s32.totalorder %s357, %s358
      %p367 = scmp.eq.s32.totalorder %s34, 0
      %p368 = por %p366, %p367
      %p369 = scmp.ne.s32.totalorder %s357, %s358
      %p370 = scmp.eq.s32.totalorder %s35, 1
      %p371 = por %p369, %p370
      %p373 = scmp.ne.s32.totalorder %s358, %s372
      %p374 = scmp.eq.s32.totalorder %s35, 0
      %p375 = por %p373, %p374
      %s377 = sadd.s32 %s376, 1
      %p380 = scmp.eq.s32.totalorder %s29, 1
      %p381 = scmp.ne.s32.totalorder %s376, %s378
      %p382 = scmp.eq.s32.totalorder %s29, 0
      %p383 = por %p381, %p382
      %p384 = scmp.ne.s32.totalorder %s376, %s378
      %p385 = scmp.eq.s32.totalorder %s34, 1
      %p386 = por %p384, %p385
      %p387 = scmp.ne.s32.totalorder %s378, %s379
      %p388 = scmp.eq.s32.totalorder %s34, 0
      %p389 = por %p387, %p388
      %p390 = scmp.ne.s32.totalorder %s378, %s379
      %p391 = scmp.eq.s32.totalorder %s35, 1
      %p392 = por %p390, %p391
      %p394 = scmp.ne.s32.totalorder %s379, %s393
      %p395 = scmp.eq.s32.totalorder %s35, 0
      %p396 = por %p394, %p395
      %s397 = ssub.s32 %s36, %s48
      %s398 = ssub.s32 %s37, %s44
      %s399 = sor.u32 %s397, %s398
      %p400 = scmp.eq.s32.totalorder %s399, 0
      %s402 = sadd.s32 %s401, 1
      %s403 = scalar_select %p400, %s401, %s402
      %p406 = pneg %p400
      %p407 = scmp.eq.s32.totalorder %s29, 1
      %p408 = por %p406, %p407
      %p409 = scmp.ne.s32.totalorder %s401, %s404
      %p410 = scmp.eq.s32.totalorder %s29, 0
      %p411 = por %p409, %p410
      %p412 = scmp.ne.s32.totalorder %s401, %s404
      %p413 = scmp.eq.s32.totalorder %s34, 1
      %p414 = por %p412, %p413
      %p415 = scmp.ne.s32.totalorder %s404, %s405
      %p416 = scmp.eq.s32.totalorder %s34, 0
      %p417 = por %p415, %p416
      %p418 = scmp.ne.s32.totalorder %s404, %s405
      %p419 = scmp.eq.s32.totalorder %s35, 1
      %p420 = por %p418, %p419
      %p422 = scmp.ne.s32.totalorder %s405, %s421
      %p423 = scmp.eq.s32.totalorder %s35, 0
      %p424 = por %p422, %p423
      %p425 = scmp.le.s32.totalorder 1, %s29
      %p426 = scmp.lt.s32.totalorder %s29, 3
      %p427 = pnand %p425, %p426
      %p428 = pneg %p427
      // Predicated region
      $region9: #{tpu_custom_call.1} parent=5 // pred_check
        _
      $region10: #{tpu_custom_call.1} parent=5 // pred_check_branch
        %430 = sbr.rel (%p427) target = $region12
      $region11: #{tpu_custom_call.1} parent=5 // pred_region
        %s431 = ssub.s32 %s29, 1
        // Predicated region
        $region13: #{tpu_custom_call.1} parent=11 // pred_check
          %p432 = pneg %p116
        $region14: #{tpu_custom_call.1} parent=11 // pred_check_branch
          %434 = sbr.rel (%p432) target = $region16
        $region15: #{tpu_custom_call.1} parent=11 // pred_region
          _
        $region16: #{tpu_custom_call.1} parent=11 // pred_fallthru
          _
        // Predicated region
        $region17: #{tpu_custom_call.1} parent=11 // pred_check
          %p435 = pneg %p137
        $region18: #{tpu_custom_call.1} parent=11 // pred_check_branch
          %437 = sbr.rel (%p435) target = $region20
        $region19: #{tpu_custom_call.1} parent=11 // pred_region
          _
        $region20: #{tpu_custom_call.1} parent=11 // pred_fallthru
          _
        // Predicated region
        $region21: #{tpu_custom_call.1} parent=11 // pred_check
          %p438 = pneg %p158
        $region22: #{tpu_custom_call.1} parent=11 // pred_check_branch
          %440 = sbr.rel (%p438) target = $region24
        $region23: #{tpu_custom_call.1} parent=11 // pred_region
          _
        $region24: #{tpu_custom_call.1} parent=11 // pred_fallthru
          _
        // Predicated region
        $region25: #{tpu_custom_call.1} parent=11 // pred_check
          %p441 = pneg %p179
        $region26: #{tpu_custom_call.1} parent=11 // pred_check_branch
          %443 = sbr.rel (%p441) target = $region28
        $region27: #{tpu_custom_call.1} parent=11 // pred_region
          _
        $region28: #{tpu_custom_call.1} parent=11 // pred_fallthru
          _
        // Predicated region
        $region29: #{tpu_custom_call.1} parent=11 // pred_check
          %p444 = pneg %p200
        $region30: #{tpu_custom_call.1} parent=11 // pred_check_branch
          %446 = sbr.rel (%p444) target = $region32
        $region31: #{tpu_custom_call.1} parent=11 // pred_region
          %448 = vsyncadd [#allocation11], 0
          %s449 = sshll.u32 %s6, 4
          %s450 = int_to_ptr.hbm [resolvable:$true] %s449
          %s451 = sshll.u32 [#allocation10], 4
          %s452 = int_to_ptr.vmem [resolvable:$true] %s451
          %457 = dma.hbm_to_vmem [thread:$0]  %s450, 256, %s452, [#allocation11], 64, 64, 4
        $region32: #{tpu_custom_call.1} parent=11 // pred_fallthru
          _
        // Predicated region
        $region33: #{tpu_custom_call.1} parent=11 // pred_check
          %p458 = pneg %p221
        $region34: #{tpu_custom_call.1} parent=11 // pred_check_branch
          %460 = sbr.rel (%p458) target = $region36
        $region35: #{tpu_custom_call.1} parent=11 // pred_region
          _
        $region36: #{tpu_custom_call.1} parent=11 // pred_fallthru
          _
        // Predicated region
        $region37: #{tpu_custom_call.1} parent=11 // pred_check
          %p461 = pneg %p242
        $region38: #{tpu_custom_call.1} parent=11 // pred_check_branch
          %463 = sbr.rel (%p461) target = $region40
        $region39: #{tpu_custom_call.1} parent=11 // pred_region
          _
        $region40: #{tpu_custom_call.1} parent=11 // pred_fallthru
          _
        // Predicated region
        $region41: #{tpu_custom_call.1} parent=11 // pred_check
          %p464 = pneg %p263
        $region42: #{tpu_custom_call.1} parent=11 // pred_check_branch
          %466 = sbr.rel (%p464) target = $region44
        $region43: #{tpu_custom_call.1} parent=11 // pred_region
          _
        $region44: #{tpu_custom_call.1} parent=11 // pred_fallthru
          _
        // Predicated region
        $region45: #{tpu_custom_call.1} parent=11 // pred_check
          %p467 = pneg %p284
        $region46: #{tpu_custom_call.1} parent=11 // pred_check_branch
          %469 = sbr.rel (%p467) target = $region48
        $region47: #{tpu_custom_call.1} parent=11 // pred_region
          %471 = vsyncadd [#allocation11], 0
          %s472 = sshll.u32 %s10, 4
          %s473 = int_to_ptr.hbm [resolvable:$true] %s472
          %s474 = sshll.u32 [#allocation12], 4
          %s475 = int_to_ptr.vmem [resolvable:$true] %s474
          %480 = dma.hbm_to_vmem [thread:$0]  %s473, 256, %s475, [#allocation11], 64, 64, 4
        $region48: #{tpu_custom_call.1} parent=11 // pred_fallthru
          _
        // Predicated region
        $region49: #{tpu_custom_call.1} parent=11 // pred_check
          %p481 = pneg %p305
        $region50: #{tpu_custom_call.1} parent=11 // pred_check_branch
          %483 = sbr.rel (%p481) target = $region52
        $region51: #{tpu_custom_call.1} parent=11 // pred_region
          _
        $region52: #{tpu_custom_call.1} parent=11 // pred_fallthru
          _
        // Predicated region
        $region53: #{tpu_custom_call.1} parent=11 // pred_check
          %p484 = pneg %p326
        $region54: #{tpu_custom_call.1} parent=11 // pred_check_branch
          %486 = sbr.rel (%p484) target = $region56
        $region55: #{tpu_custom_call.1} parent=11 // pred_region
          _
        $region56: #{tpu_custom_call.1} parent=11 // pred_fallthru
          _
        // Predicated region
        $region57: #{tpu_custom_call.1} parent=11 // pred_check
          %p487 = pneg %p347
        $region58: #{tpu_custom_call.1} parent=11 // pred_check_branch
          %489 = sbr.rel (%p487) target = $region60
        $region59: #{tpu_custom_call.1} parent=11 // pred_region
          _
        $region60: #{tpu_custom_call.1} parent=11 // pred_fallthru
          _
        // Predicated region
        $region61: #{tpu_custom_call.1} parent=11 // pred_check
          %p490 = pneg %p368
        $region62: #{tpu_custom_call.1} parent=11 // pred_check_branch
          %492 = sbr.rel (%p490) target = $region64
        $region63: #{tpu_custom_call.1} parent=11 // pred_region
          _
        $region64: #{tpu_custom_call.1} parent=11 // pred_fallthru
          _
        // Predicated region
        $region65: #{tpu_custom_call.1} parent=11 // pred_check
          %p493 = pneg %p389
        $region66: #{tpu_custom_call.1} parent=11 // pred_check_branch
          %495 = sbr.rel (%p493) target = $region68
        $region67: #{tpu_custom_call.1} parent=11 // pred_region
          _
        $region68: #{tpu_custom_call.1} parent=11 // pred_fallthru
          _
      $region12: #{tpu_custom_call.1} parent=5 // pred_fallthru
        _
      %p496 = scmp.lt.s32.totalorder %s29, 2
      // Predicated region
      $region69: #{tpu_custom_call.1} parent=5 // pred_check
        %p497 = pneg %p496
      $region70: #{tpu_custom_call.1} parent=5 // pred_check_branch
        %499 = sbr.rel (%p497) target = $region72
      $region71: #{tpu_custom_call.1} parent=5 // pred_region
        // Predicated region
        $region73: #{tpu_custom_call.1} parent=71 // pred_check
          %p500 = pneg %p63
        $region74: #{tpu_custom_call.1} parent=71 // pred_check_branch
          %502 = sbr.rel (%p500) target = $region76
        $region75: #{tpu_custom_call.1} parent=71 // pred_region
          %p503 = scmp.lt.s32.totalorder %s36, 1
          %s504 = scalar_select %p503, %s36, 1
          %p505 = scmp.lt.s32.totalorder %s37, 0
          %s506 = scalar_select %p505, %s37, 0
          %s507 = sadd.s32 %s506, %s504
          %s508 = smul.addr %s507, 8
          %s509 = scalar_lea.vmem %s0, %s508
        $region76: #{tpu_custom_call.1} parent=71 // pred_fallthru
          _
        // Predicated region
        $region77: #{tpu_custom_call.1} parent=71 // pred_check
          %p510 = pneg %p89
        $region78: #{tpu_custom_call.1} parent=71 // pred_check_branch
          %512 = sbr.rel (%p510) target = $region80
        $region79: #{tpu_custom_call.1} parent=71 // pred_region
          %s513 = sand.u32 %s79, 1
          %s514 = scalar_lea.sflag [#allocation8], %s513
          %s515 = sand.u32 %s79, 1
          %s516 = smul.addr %s515, 4
          %s517 = scalar_lea.vmem [#allocation7], %s516
          %519 = vsyncadd %s514, 0
          %s520 = smul.addr %s36, 4
          %s521 = scalar_lea.hbm %s1, %s520
          %s523 = sshll.u32 %s521, 4
          %s524 = int_to_ptr.hbm [resolvable:$true] %s523
          %s525 = sshll.u32 %s517, 4
          %s526 = int_to_ptr.vmem [resolvable:$true] %s525
          %528 = dma.hbm_to_vmem [thread:$0]  %s524, 64, %s526, %s514
        $region80: #{tpu_custom_call.1} parent=71 // pred_fallthru
          _
      $region72: #{tpu_custom_call.1} parent=5 // pred_fallthru
        _
      %p529 = scmp.le.s32.totalorder 1, %s29
      %p530 = scmp.lt.s32.totalorder %s29, 3
      %p531 = pnand %p529, %p530
      %p532 = pneg %p531
      // Predicated region
      $region81: #{tpu_custom_call.1} parent=5 // pred_check
        _
      $region82: #{tpu_custom_call.1} parent=5 // pred_check_branch
        %534 = sbr.rel (%p531) target = $region84
      $region83: #{tpu_custom_call.1} parent=5 // pred_region
        %s535 = ssub.s32 %s29, 1
        %s536 = sand.u32 %s82, 1
        %s537 = scalar_lea.sflag [#allocation8], %s536
        %s538 = sand.u32 %s82, 1
        %s539 = smul.addr %s538, 4
        %s540 = scalar_lea.vmem [#allocation7], %s539
        // Predicated region
        $region85: #{tpu_custom_call.1} parent=83 // pred_check
          %p541 = pneg %p95
        $region86: #{tpu_custom_call.1} parent=83 // pred_check_branch
          %543 = sbr.rel (%p541) target = $region88
        $region87: #{tpu_custom_call.1} parent=83 // pred_region
          %545 = dma.done %s537, 64
        $region88: #{tpu_custom_call.1} parent=83 // pred_fallthru
          _
        // Predicated region
        $region89: #{tpu_custom_call.1} parent=83 // pred_check
          %p546 = pneg %p200
        $region90: #{tpu_custom_call.1} parent=83 // pred_check_branch
          %548 = sbr.rel (%p546) target = $region92
        $region91: #{tpu_custom_call.1} parent=83 // pred_region
          %550 = dma.done [#allocation11], 256
        $region92: #{tpu_custom_call.1} parent=83 // pred_fallthru
          _
        // Predicated region
        $region93: #{tpu_custom_call.1} parent=83 // pred_check
          %p551 = pneg %p284
        $region94: #{tpu_custom_call.1} parent=83 // pred_check_branch
          %553 = sbr.rel (%p551) target = $region96
        $region95: #{tpu_custom_call.1} parent=83 // pred_region
          %555 = dma.done [#allocation11], 256
        $region96: #{tpu_custom_call.1} parent=83 // pred_fallthru
          _
        %p556 = scmp.lt.s32.totalorder %s38, 1
        %s557 = scalar_select %p556, %s38, 1
        %p558 = scmp.lt.s32.totalorder %s39, 0
        %s559 = scalar_select %p558, %s39, 0
        %s560 = sadd.s32 %s559, %s557
        %s561 = smul.addr %s560, 8
        %s562 = scalar_lea.vmem %s0, %s561
        %p563 = pneg %p69
        %p564 = pneg %p66
        %s565 = sand.u32 %s82, 1
        %s566 = scalar_lea.sflag [#allocation8], %s565
        %s567 = sand.u32 %s82, 1
        %s568 = smul.addr %s567, 4
        %s569 = scalar_lea.vmem [#allocation7], %s568
        %p570 = pneg %p95
        %p571 = pneg %p92
        %p572 = pneg %p116
        %p573 = pneg %p113
        %p574 = pneg %p137
        %p575 = pneg %p134
        %p576 = pneg %p158
        %p577 = pneg %p155
        %p578 = pneg %p179
        %p579 = pneg %p176
        %p580 = pneg %p200
        %p581 = pneg %p197
        %p582 = pneg %p221
        %p583 = pneg %p218
        %p584 = pneg %p242
        %p585 = pneg %p239
        %p586 = pneg %p263
        %p587 = pneg %p260
        %p588 = pneg %p284
        %p589 = pneg %p281
        %p590 = pneg %p305
        %p591 = pneg %p302
        %p592 = pneg %p326
        %p593 = pneg %p323
        %p594 = pneg %p347
        %p595 = pneg %p344
        %p596 = pneg %p368
        %p597 = pneg %p365
        %p598 = pneg %p389
        %p599 = pneg %p386
        %p600 = pneg %p417
        %p601 = pneg %p414
        %s602 = sand.u32 %s404, 1
        %s603 = scalar_lea.sflag [#allocation9], %s602
        %s604 = sand.u32 %s404, 1
        %s605 = smul.addr %s604, 8
        %s606 = scalar_lea.vmem [#allocation13], %s605
        %p607 = scmp.lt.s32.totalorder %s38, 1
        %s608 = scalar_select %p607, %s38, 1
        %p609 = scmp.lt.s32.totalorder %s39, 0
        %s610 = scalar_select %p609, %s39, 0
        %s611 = sadd.s32 %s610, %s608
        %s612 = smul.addr %s611, 8
        %s613 = scalar_lea.vmem %s0, %s612
        %p615 = scmp.eq.s32.totalorder %s39, 0
        // Predicated region
        $region97: #{tpu_custom_call.1} parent=83 // pred_check
          %p616 = pneg %p615
        $region98: #{tpu_custom_call.1} parent=83 // pred_check_branch
          %618 = sbr.rel (%p616) target = $region100
        $region99: #{tpu_custom_call.1} parent=83 // pred_region
          %v619 = vld [vmem:[%s540] sm:$0xf]
          %v620 = vld [vmem:[%s4] sm:$0xf]
          %v621 = vld [vmem:[%s4 + $0x4] sm:$0xf]
          %v622 = vld [vmem:[%s4 + $0x8] sm:$0xf]
          %v623 = vld [vmem:[%s4 + $0xc] sm:$0xf]
          %v624 = vld [vmem:[%s5] sm:$0x1]
          %v626 = vperm.slane %v624, 0
          %v632 = vunpack.c.l.b16 %v620
          %v633 = vunpack.c.l.b16 %v621
          %v634 = vunpack.c.l.b16 %v622
          %v635 = vunpack.c.l.b16 %v623
          %v636 = vpack.c.b16 %v633, %v632
          %v637 = vpack.c.b16 %v635, %v634
          %vm640 = vcmask 261120
          %v642 = vsel %vm640, %v619, 0
          %644 = vmatpush.bf16.msra.mxu0 0
          %645 = vmatpush.bf16.msra.mxu0 0
          %646 = vmatpush.bf16.msra.mxu0 0
          %647 = vmatpush.bf16.msra.mxu0 0
          %648 = vmatpush.bf16.msra.mxu0 0
          %649 = vmatpush.bf16.msra.mxu0 0
          %650 = vmatpush.bf16.msra.mxu0 %v637
          %651 = vmatpush.bf16.msra.mxu0 %v636
          %652 = vmatmul.bf16.gmra.mxu0 %v642
          %v653 = vpop.f32.mrf.mxu0
          %v654 = vadd.f32 %v626, %v653
          %v655 = vpop.f32.mrf.mxu0
          %656 = vdwg.mxu0
          %658 = vrot.lane.b32.xlu0 %v654, 120
          %v659 = vpop.permute.xlu0 %658
          %661 = vrot.lane.b32.xlu0 %v654, 112
          %v662 = vpop.permute.xlu0 %661
          %664 = vrot.lane.b32.xlu0 %v654, 104
          %v665 = vpop.permute.xlu0 %664
          %v667 = vrot.slane %v662, 4
          %vm668 = vcmask 1047556
          %v669 = vsel %vm668, %v667, %v654
          %v670 = vrot.slane %v654, 4
          %v671 = vsel %vm668, %v662, %v670
          %v673 = vunpack.c.l.s4 1983009808
          %v674 = vunpack.c.0.s8 %v673
          %v675 = vperm.slane %v669, %v674
          %v677 = vunpack.c.l.s4 1983009808
          %v678 = vunpack.c.0.s8 %v677
          %v679 = vperm.slane %v671, %v678
          %v680 = vrot.slane %v665, 4
          %v681 = vsel %vm668, %v680, %v659
          %v682 = vrot.slane %v659, 4
          %v683 = vsel %vm668, %v665, %v682
          %v685 = vunpack.c.l.s4 1983009808
          %v686 = vunpack.c.0.s8 %v685
          %v687 = vperm.slane %v681, %v686
          %v689 = vunpack.c.l.s4 1983009808
          %v690 = vunpack.c.0.s8 %v689
          %v691 = vperm.slane %v683, %v690
          %v692 = vrot.slane %v687, 4
          %v693 = vsel %vm668, %v692, %v675
          %v694 = vrot.slane %v675, 4
          %v695 = vsel %vm668, %v687, %v694
          %v697 = vunpack.c.l.s4 1934713408
          %v698 = vunpack.c.0.s8 %v697
          %v699 = vperm.slane %v693, %v698
          %v701 = vunpack.c.l.s4 1934713408
          %v702 = vunpack.c.0.s8 %v701
          %v703 = vperm.slane %v695, %v702
          %v704 = vrot.slane %v691, 4
          %v705 = vsel %vm668, %v704, %v679
          %v706 = vrot.slane %v679, 4
          %v707 = vsel %vm668, %v691, %v706
          %v709 = vunpack.c.l.s4 1934713408
          %v710 = vunpack.c.0.s8 %v709
          %v711 = vperm.slane %v705, %v710
          %v713 = vunpack.c.l.s4 1934713408
          %v714 = vunpack.c.0.s8 %v713
          %v715 = vperm.slane %v707, %v714
          %v716 = vrot.slane %v699, 4
          %v717 = vsel %vm668, 0.0, %v716
          %v718 = vrot.slane %v703, 4
          %v719 = vsel %vm668, 0.0, %v718
          %v720 = vrot.slane %v711, 4
          %v721 = vsel %vm668, 0.0, %v720
          %v722 = vrot.slane %v715, 4
          %v723 = vsel %vm668, 0.0, %v722
          %724 = vrot.lane.b32.xlu0 %v654, 96
          %v725 = vpop.permute.xlu0 %724
          %726 = vrot.lane.b32.xlu0 %v659, 96
          %v727 = vpop.permute.xlu0 %726
          %728 = vrot.lane.b32.xlu0 %v662, 96
          %v729 = vpop.permute.xlu0 %728
          %730 = vrot.lane.b32.xlu0 %v665, 96
          %v731 = vpop.permute.xlu0 %730
          %v736 = vrot.slane %v729, 4
          %v737 = vsel %vm668, %v736, %v725
          %v738 = vrot.slane %v725, 4
          %v739 = vsel %vm668, %v729, %v738
          %v741 = vunpack.c.l.s4 1983009808
          %v742 = vunpack.c.0.s8 %v741
          %v743 = vperm.slane %v737, %v742
          %v745 = vunpack.c.l.s4 1983009808
          %v746 = vunpack.c.0.s8 %v745
          %v747 = vperm.slane %v739, %v746
          %v748 = vrot.slane %v731, 4
          %v749 = vsel %vm668, %v748, %v727
          %v750 = vrot.slane %v727, 4
          %v751 = vsel %vm668, %v731, %v750
          %v753 = vunpack.c.l.s4 1983009808
          %v754 = vunpack.c.0.s8 %v753
          %v755 = vperm.slane %v749, %v754
          %v757 = vunpack.c.l.s4 1983009808
          %v758 = vunpack.c.0.s8 %v757
          %v759 = vperm.slane %v751, %v758
          %v760 = vrot.slane %v755, 4
          %v761 = vsel %vm668, %v760, %v743
          %v762 = vrot.slane %v743, 4
          %v763 = vsel %vm668, %v755, %v762
          %v765 = vunpack.c.l.s4 1934713408
          %v766 = vunpack.c.0.s8 %v765
          %v767 = vperm.slane %v761, %v766
          %v769 = vunpack.c.l.s4 1934713408
          %v770 = vunpack.c.0.s8 %v769
          %v771 = vperm.slane %v763, %v770
          %v772 = vrot.slane %v759, 4
          %v773 = vsel %vm668, %v772, %v747
          %v774 = vrot.slane %v747, 4
          %v775 = vsel %vm668, %v759, %v774
          %v777 = vunpack.c.l.s4 1934713408
          %v778 = vunpack.c.0.s8 %v777
          %v779 = vperm.slane %v773, %v778
          %v781 = vunpack.c.l.s4 1934713408
          %v782 = vunpack.c.0.s8 %v781
          %v783 = vperm.slane %v775, %v782
          %v784 = vrot.slane %v767, 4
          %v785 = vsel %vm668, 0.0, %v784
          %v786 = vrot.slane %v771, 4
          %v787 = vsel %vm668, 0.0, %v786
          %v788 = vrot.slane %v779, 4
          %v789 = vsel %vm668, 0.0, %v788
          %v790 = vrot.slane %v783, 4
          %v791 = vsel %vm668, 0.0, %v790
          %v792 = vsel %vm668, %v718, %v699
          %v794 = vunpack.c.l.s4 1983009808
          %v795 = vunpack.c.0.s8 %v794
          %v796 = vperm.slane %v792, %v795
          %v797 = vrot.slane %v719, 4
          %v798 = vsel %vm668, %v797, %v717
          %v800 = vunpack.c.l.s4 1983009808
          %v801 = vunpack.c.0.s8 %v800
          %v802 = vperm.slane %v798, %v801
          %v803 = vsel %vm668, %v722, %v711
          %v805 = vunpack.c.l.s4 1983009808
          %v806 = vunpack.c.0.s8 %v805
          %v807 = vperm.slane %v803, %v806
          %v808 = vrot.slane %v723, 4
          %v809 = vsel %vm668, %v808, %v721
          %v811 = vunpack.c.l.s4 1983009808
          %v812 = vunpack.c.0.s8 %v811
          %v813 = vperm.slane %v809, %v812
          %v814 = vrot.slane %v802, 4
          %v815 = vsel %vm668, %v814, %v796
          %v816 = vrot.slane %v796, 4
          %v817 = vsel %vm668, %v802, %v816
          %v819 = vunpack.c.l.s4 1934713408
          %v820 = vunpack.c.0.s8 %v819
          %v821 = vperm.slane %v815, %v820
          %v823 = vunpack.c.l.s4 1934713408
          %v824 = vunpack.c.0.s8 %v823
          %v825 = vperm.slane %v817, %v824
          %v826 = vrot.slane %v813, 4
          %v827 = vsel %vm668, %v826, %v807
          %v828 = vrot.slane %v807, 4
          %v829 = vsel %vm668, %v813, %v828
          %v831 = vunpack.c.l.s4 1934713408
          %v832 = vunpack.c.0.s8 %v831
          %v833 = vperm.slane %v827, %v832
          %v835 = vunpack.c.l.s4 1934713408
          %v836 = vunpack.c.0.s8 %v835
          %v837 = vperm.slane %v829, %v836
          %v838 = vrot.slane %v833, 4
          %v839 = vsel %vm668, %v838, %v821
          %v840 = vrot.slane %v821, 4
          %v841 = vsel %vm668, %v833, %v840
          %v842 = vrot.slane %v837, 4
          %v843 = vsel %vm668, %v842, %v825
          %v844 = vrot.slane %v825, 4
          %v845 = vsel %vm668, %v837, %v844
          %v846 = vpack.c.bf16 %v839, %v839
          %v847 = vpack.c.bf16 %v841, %v841
          %v848 = vpack.c.bf16 %v843, %v843
          %v849 = vpack.c.bf16 %v845, %v845
          %vm850 = vcmask 60416
          %851 = vst.msk [vmem:[#allocation2] sm:$0xf] %vm850, %v846
          %852 = vst.msk [vmem:[#allocation2 + $0x4] sm:$0xf] %vm850, %v847
          %853 = vst.msk [vmem:[#allocation2 + $0x8] sm:$0xf] %vm850, %v848
          %854 = vst.msk [vmem:[#allocation2 + $0xc] sm:$0xf] %vm850, %v849
          %v855 = vsel %vm668, %v786, %v767
          %v857 = vunpack.c.l.s4 1983009808
          %v858 = vunpack.c.0.s8 %v857
          %v859 = vperm.slane %v855, %v858
          %v860 = vrot.slane %v787, 4
          %v861 = vsel %vm668, %v860, %v785
          %v863 = vunpack.c.l.s4 1983009808
          %v864 = vunpack.c.0.s8 %v863
          %v865 = vperm.slane %v861, %v864
          %v866 = vsel %vm668, %v790, %v779
          %v868 = vunpack.c.l.s4 1983009808
          %v869 = vunpack.c.0.s8 %v868
          %v870 = vperm.slane %v866, %v869
          %v871 = vrot.slane %v791, 4
          %v872 = vsel %vm668, %v871, %v789
          %v874 = vunpack.c.l.s4 1983009808
          %v875 = vunpack.c.0.s8 %v874
          %v876 = vperm.slane %v872, %v875
          %v877 = vrot.slane %v865, 4
          %v878 = vsel %vm668, %v877, %v859
          %v879 = vrot.slane %v859, 4
          %v880 = vsel %vm668, %v865, %v879
          %v882 = vunpack.c.l.s4 1934713408
          %v883 = vunpack.c.0.s8 %v882
          %v884 = vperm.slane %v878, %v883
          %v886 = vunpack.c.l.s4 1934713408
          %v887 = vunpack.c.0.s8 %v886
          %v888 = vperm.slane %v880, %v887
          %v889 = vrot.slane %v876, 4
          %v890 = vsel %vm668, %v889, %v870
          %v891 = vrot.slane %v870, 4
          %v892 = vsel %vm668, %v876, %v891
          %v894 = vunpack.c.l.s4 1934713408
          %v895 = vunpack.c.0.s8 %v894
          %v896 = vperm.slane %v890, %v895
          %v898 = vunpack.c.l.s4 1934713408
          %v899 = vunpack.c.0.s8 %v898
          %v900 = vperm.slane %v892, %v899
          %v901 = vrot.slane %v896, 4
          %v902 = vsel %vm668, %v901, %v884
          %v903 = vrot.slane %v884, 4
          %v904 = vsel %vm668, %v896, %v903
          %v905 = vrot.slane %v900, 4
          %v906 = vsel %vm668, %v905, %v888
          %v907 = vrot.slane %v888, 4
          %v908 = vsel %vm668, %v900, %v907
          %v909 = vpack.c.bf16 %v902, %v902
          %v910 = vpack.c.bf16 %v904, %v904
          %v911 = vpack.c.bf16 %v906, %v906
          %v912 = vpack.c.bf16 %v908, %v908
          %913 = vst.msk [vmem:[#allocation3] sm:$0xf] %vm850, %v909
          %914 = vst.msk [vmem:[#allocation3 + $0x4] sm:$0xf] %vm850, %v910
          %915 = vst.msk [vmem:[#allocation3 + $0x8] sm:$0xf] %vm850, %v911
          %916 = vst.msk [vmem:[#allocation3 + $0xc] sm:$0xf] %vm850, %v912
        $region100: #{tpu_custom_call.1} parent=83 // pred_fallthru
          _
        %v917 = vld [vmem:[%s613] sm:$0xff]
        %v918 = vpack.c.bf16 %v917, %v917
        %v919 = vld [vmem:[%s2] sm:$0xf]
        %v920 = vld [vmem:[%s2 + $0x4] sm:$0xf]
        %v921 = vld [vmem:[%s2 + $0x8] sm:$0xf]
        %v922 = vld [vmem:[%s2 + $0xc] sm:$0xf]
        %v923 = vld [vmem:[%s3] sm:$0x1]
        %v925 = vperm.slane %v923, 0
        %v931 = vunpack.c.l.b16 %v919
        %v932 = vunpack.c.l.b16 %v920
        %v933 = vunpack.c.l.b16 %v921
        %v934 = vunpack.c.l.b16 %v922
        %v935 = vpack.c.b16 %v932, %v931
        %v936 = vpack.c.b16 %v934, %v933
        %vm939 = vcmask 261120
        %v941 = vsel %vm939, %v918, 0
        %943 = vmatpush.bf16.msra.mxu0 0
        %944 = vmatpush.bf16.msra.mxu0 0
        %945 = vmatpush.bf16.msra.mxu0 0
        %946 = vmatpush.bf16.msra.mxu0 0
        %947 = vmatpush.bf16.msra.mxu0 0
        %948 = vmatpush.bf16.msra.mxu0 0
        %949 = vmatpush.bf16.msra.mxu0 %v936
        %950 = vmatpush.bf16.msra.mxu0 %v935
        %951 = vmatmul.bf16.gmra.mxu0 %v941
        %v952 = vpop.f32.mrf.mxu0
        %v953 = vadd.f32 %v925, %v952
        %v954 = vpop.f32.mrf.mxu0
        %955 = vdwg.mxu0
        %957 = vrot.lane.b32.xlu0 %v953, 120
        %v958 = vpop.permute.xlu0 %957
        %960 = vrot.lane.b32.xlu0 %v953, 112
        %v961 = vpop.permute.xlu0 %960
        %963 = vrot.lane.b32.xlu0 %v953, 104
        %v964 = vpop.permute.xlu0 %963
        %v966 = vrot.slane %v961, 4
        %vm967 = vcmask 1047556
        %v968 = vsel %vm967, %v966, %v953
        %v969 = vrot.slane %v953, 4
        %v970 = vsel %vm967, %v961, %v969
        %v972 = vunpack.c.l.s4 1983009808
        %v973 = vunpack.c.0.s8 %v972
        %v974 = vperm.slane %v968, %v973
        %v976 = vunpack.c.l.s4 1983009808
        %v977 = vunpack.c.0.s8 %v976
        %v978 = vperm.slane %v970, %v977
        %v979 = vrot.slane %v964, 4
        %v980 = vsel %vm967, %v979, %v958
        %v981 = vrot.slane %v958, 4
        %v982 = vsel %vm967, %v964, %v981
        %v984 = vunpack.c.l.s4 1983009808
        %v985 = vunpack.c.0.s8 %v984
        %v986 = vperm.slane %v980, %v985
        %v988 = vunpack.c.l.s4 1983009808
        %v989 = vunpack.c.0.s8 %v988
        %v990 = vperm.slane %v982, %v989
        %v991 = vrot.slane %v986, 4
        %v992 = vsel %vm967, %v991, %v974
        %v993 = vrot.slane %v974, 4
        %v994 = vsel %vm967, %v986, %v993
        %v996 = vunpack.c.l.s4 1934713408
        %v997 = vunpack.c.0.s8 %v996
        %v998 = vperm.slane %v992, %v997
        %v1000 = vunpack.c.l.s4 1934713408
        %v1001 = vunpack.c.0.s8 %v1000
        %v1002 = vperm.slane %v994, %v1001
        %v1003 = vrot.slane %v990, 4
        %v1004 = vsel %vm967, %v1003, %v978
        %v1005 = vrot.slane %v978, 4
        %v1006 = vsel %vm967, %v990, %v1005
        %v1008 = vunpack.c.l.s4 1934713408
        %v1009 = vunpack.c.0.s8 %v1008
        %v1010 = vperm.slane %v1004, %v1009
        %v1012 = vunpack.c.l.s4 1934713408
        %v1013 = vunpack.c.0.s8 %v1012
        %v1014 = vperm.slane %v1006, %v1013
        %v1015 = vrot.slane %v998, 4
        %v1016 = vsel %vm967, 0.0, %v1015
        %v1017 = vrot.slane %v1002, 4
        %v1018 = vsel %vm967, 0.0, %v1017
        %v1019 = vrot.slane %v1010, 4
        %v1020 = vsel %vm967, 0.0, %v1019
        %v1021 = vrot.slane %v1014, 4
        %v1022 = vsel %vm967, 0.0, %v1021
        %v1023 = vsel %vm967, %v1017, %v998
        %v1025 = vunpack.c.l.s4 1983009808
        %v1026 = vunpack.c.0.s8 %v1025
        %v1027 = vperm.slane %v1023, %v1026
        %v1028 = vrot.slane %v1018, 4
        %v1029 = vsel %vm967, %v1028, %v1016
        %v1031 = vunpack.c.l.s4 1983009808
        %v1032 = vunpack.c.0.s8 %v1031
        %v1033 = vperm.slane %v1029, %v1032
        %v1034 = vsel %vm967, %v1021, %v1010
        %v1036 = vunpack.c.l.s4 1983009808
        %v1037 = vunpack.c.0.s8 %v1036
        %v1038 = vperm.slane %v1034, %v1037
        %v1039 = vrot.slane %v1022, 4
        %v1040 = vsel %vm967, %v1039, %v1020
        %v1042 = vunpack.c.l.s4 1983009808
        %v1043 = vunpack.c.0.s8 %v1042
        %v1044 = vperm.slane %v1040, %v1043
        %v1045 = vrot.slane %v1033, 4
        %v1046 = vsel %vm967, %v1045, %v1027
        %v1047 = vrot.slane %v1027, 4
        %v1048 = vsel %vm967, %v1033, %v1047
        %v1050 = vunpack.c.l.s4 1934713408
        %v1051 = vunpack.c.0.s8 %v1050
        %v1052 = vperm.slane %v1046, %v1051
        %v1054 = vunpack.c.l.s4 1934713408
        %v1055 = vunpack.c.0.s8 %v1054
        %v1056 = vperm.slane %v1048, %v1055
        %v1057 = vrot.slane %v1044, 4
        %v1058 = vsel %vm967, %v1057, %v1038
        %v1059 = vrot.slane %v1038, 4
        %v1060 = vsel %vm967, %v1044, %v1059
        %v1062 = vunpack.c.l.s4 1934713408
        %v1063 = vunpack.c.0.s8 %v1062
        %v1064 = vperm.slane %v1058, %v1063
        %v1066 = vunpack.c.l.s4 1934713408
        %v1067 = vunpack.c.0.s8 %v1066
        %v1068 = vperm.slane %v1060, %v1067
        %v1069 = vrot.slane %v1064, 4
        %v1070 = vsel %vm967, %v1069, %v1052
        %v1071 = vrot.slane %v1052, 4
        %v1072 = vsel %vm967, %v1064, %v1071
        %v1073 = vrot.slane %v1068, 4
        %v1074 = vsel %vm967, %v1073, %v1056
        %v1075 = vrot.slane %v1056, 4
        %v1076 = vsel %vm967, %v1068, %v1075
        %v1077 = vpack.c.bf16 %v1070, %v1070
        %v1078 = vpack.c.bf16 %v1072, %v1072
        %v1079 = vpack.c.bf16 %v1074, %v1074
        %v1080 = vpack.c.bf16 %v1076, %v1076
        %vm1081 = vcmask 60416
        %1082 = vst.msk [vmem:[#allocation4] sm:$0xf] %vm1081, -inf
        %1083 = vst.msk [vmem:[#allocation5] sm:$0xf] %vm1081, 0.0
        %vm1084 = vcmask 64512
        %1085 = vst.msk [vmem:[#allocation6] sm:$0xff] %vm1084, 0.0
        %1086 = vst.msk [vmem:[#allocation6 + $0x8] sm:$0xff] %vm1084, 0.0
        %1087 = vst.msk [vmem:[#allocation6 + $0x10] sm:$0xff] %vm1084, 0.0
        %1088 = vst.msk [vmem:[#allocation6 + $0x18] sm:$0xff] %vm1084, 0.0
        %v1089 = vld [vmem:[#allocation2] sm:$0xf]
        %v1090 = vld [vmem:[#allocation2 + $0x4] sm:$0xf]
        %v1091 = vld [vmem:[#allocation2 + $0x8] sm:$0xf]
        %v1092 = vld [vmem:[#allocation2 + $0xc] sm:$0xf]
        %v1093 = vld [vmem:[#allocation3] sm:$0xf]
        %v1094 = vld [vmem:[#allocation3 + $0x4] sm:$0xf]
        %v1095 = vld [vmem:[#allocation3 + $0x8] sm:$0xf]
        %v1096 = vld [vmem:[#allocation3 + $0xc] sm:$0xf]
        %v1098 = vsel %vm1084, %v1077, 0
        %v1101 = vsel %vm1084, %v1089, 0
        %1103 = vmatpush.bf16.xpose.msra.mxu0 0
        %1104 = vmatpush.bf16.xpose.msra.mxu0 0
        %1105 = vmatpush.bf16.xpose.msra.mxu0 0
        %1106 = vmatpush.bf16.xpose.msra.mxu0 0
        %1107 = vmatpush.bf16.xpose.msra.mxu0 0
        %1108 = vmatpush.bf16.xpose.msra.mxu0 0
        %1109 = vmatpush.bf16.xpose.msra.mxu0 0
        %1110 = vmatpush.bf16.xpose.msra.mxu0 %v1101
        %1111 = vmatmul.bf16.gmra.mxu0 %v1098
        %v1112 = vpop.f32.mrf.mxu0
        %v1113 = vadd.f32 0.0, %v1112
        %v1114 = vpop.f32.mrf.mxu0
        %1115 = vdwg.mxu0
        %v1117 = vsel %vm1084, %v1078, 0
        %v1120 = vsel %vm1084, %v1090, 0
        %1122 = vmatpush.bf16.xpose.msra.mxu0 0
        %1123 = vmatpush.bf16.xpose.msra.mxu0 0
        %1124 = vmatpush.bf16.xpose.msra.mxu0 0
        %1125 = vmatpush.bf16.xpose.msra.mxu0 0
        %1126 = vmatpush.bf16.xpose.msra.mxu0 0
        %1127 = vmatpush.bf16.xpose.msra.mxu0 0
        %1128 = vmatpush.bf16.xpose.msra.mxu0 0
        %1129 = vmatpush.bf16.xpose.msra.mxu0 %v1120
        %1130 = vmatmul.bf16.gmra.mxu0 %v1117
        %v1131 = vpop.f32.mrf.mxu0
        %v1132 = vadd.f32 0.0, %v1131
        %v1133 = vpop.f32.mrf.mxu0
        %1134 = vdwg.mxu0
        %v1136 = vsel %vm1084, %v1079, 0
        %v1139 = vsel %vm1084, %v1091, 0
        %1141 = vmatpush.bf16.xpose.msra.mxu0 0
        %1142 = vmatpush.bf16.xpose.msra.mxu0 0
        %1143 = vmatpush.bf16.xpose.msra.mxu0 0
        %1144 = vmatpush.bf16.xpose.msra.mxu0 0
        %1145 = vmatpush.bf16.xpose.msra.mxu0 0
        %1146 = vmatpush.bf16.xpose.msra.mxu0 0
        %1147 = vmatpush.bf16.xpose.msra.mxu0 0
        %1148 = vmatpush.bf16.xpose.msra.mxu0 %v1139
        %1149 = vmatmul.bf16.gmra.mxu0 %v1136
        %v1150 = vpop.f32.mrf.mxu0
        %v1151 = vadd.f32 0.0, %v1150
        %v1152 = vpop.f32.mrf.mxu0
        %1153 = vdwg.mxu0
        %v1155 = vsel %vm1084, %v1080, 0
        %v1158 = vsel %vm1084, %v1092, 0
        %1160 = vmatpush.bf16.xpose.msra.mxu0 0
        %1161 = vmatpush.bf16.xpose.msra.mxu0 0
        %1162 = vmatpush.bf16.xpose.msra.mxu0 0
        %1163 = vmatpush.bf16.xpose.msra.mxu0 0
        %1164 = vmatpush.bf16.xpose.msra.mxu0 0
        %1165 = vmatpush.bf16.xpose.msra.mxu0 0
        %1166 = vmatpush.bf16.xpose.msra.mxu0 0
        %1167 = vmatpush.bf16.xpose.msra.mxu0 %v1158
        %1168 = vmatmul.bf16.gmra.mxu0 %v1155
        %v1169 = vpop.f32.mrf.mxu0
        %v1170 = vadd.f32 0.0, %v1169
        %v1171 = vpop.f32.mrf.mxu0
        %1172 = vdwg.mxu0
        %v1173 = vmul.f32 %v1113, 0.35355338
        %v1174 = vmul.f32 %v1132, 0.35355338
        %v1175 = vmul.f32 %v1151, 0.35355338
        %v1176 = vmul.f32 %v1170, 0.35355338
        %v1177 = vld [vmem:[#allocation4] sm:$0xf]
        %v1178 = vsel %vm1084, %v1173, -inf
        %1179 = vmax.xlane.f32.xlu0 %v1178
        %v1180 = vpop.xlane.xlu0 %1179
        %v1181 = vsel %vm1084, %v1174, -inf
        %1182 = vmax.xlane.f32.xlu0 %v1181
        %v1183 = vpop.xlane.xlu0 %1182
        %v1184 = vsel %vm1084, %v1175, -inf
        %1185 = vmax.xlane.f32.xlu0 %v1184
        %v1186 = vpop.xlane.xlu0 %1185
        %v1187 = vsel %vm1084, %v1176, -inf
        %1188 = vmax.xlane.f32.xlu0 %v1187
        %v1189 = vpop.xlane.xlu0 %1188
        %v1194 = vlaneseq
        %v1195 = vand.u32 %v1194, 127
        %v1196 = vperm.slane %v1180, %v1195
        %v1197 = vperm.slane %v1183, %v1195
        %v1198 = vperm.slane %v1186, %v1195
        %v1199 = vperm.slane %v1189, %v1195
        %vm1200 = vcmask 1041409
        %v1201 = vsel %vm1200, %v1197, %v1196
        %vm1202 = vcmask 1042434
        %v1203 = vsel %vm1202, %v1198, %v1201
        %vm1204 = vcmask 1043459
        %v1205 = vsel %vm1204, %v1199, %v1203
        %v1207 = vmax.f32 %v1177, %v1205
        %v1208 = vsub.f32 %v1177, %v1207
        %v1209 = vmul.f32 %v1208, 1.442695
        %v1210 = vpow.pop %v1209
        %v1211 = vperm.slane %v1207, 0
        %v1212 = vlaneseq
        %v1213 = vshrl.u32 %v1212, 7
        %1215 = vset.pattern.permute.xlu0 %v1213
        %1216 = vperm.xlu0 %1215, %v1211
        %v1217 = vpop.permute.xlu0 %1216
        %v1218 = vperm.slane %v1207, 1
        %v1219 = vlaneseq
        %v1220 = vshrl.u32 %v1219, 7
        %1222 = vset.pattern.permute.xlu0 %v1220
        %1223 = vperm.xlu0 %1222, %v1218
        %v1224 = vpop.permute.xlu0 %1223
        %v1225 = vperm.slane %v1207, 2
        %v1226 = vlaneseq
        %v1227 = vshrl.u32 %v1226, 7
        %1229 = vset.pattern.permute.xlu0 %v1227
        %1230 = vperm.xlu0 %1229, %v1225
        %v1231 = vpop.permute.xlu0 %1230
        %v1232 = vperm.slane %v1207, 3
        %v1233 = vlaneseq
        %v1234 = vshrl.u32 %v1233, 7
        %1236 = vset.pattern.permute.xlu0 %v1234
        %1237 = vperm.xlu0 %1236, %v1232
        %v1238 = vpop.permute.xlu0 %1237
        %v1239 = vsub.f32 %v1173, %v1217
        %v1240 = vsub.f32 %v1174, %v1224
        %v1241 = vsub.f32 %v1175, %v1231
        %v1242 = vsub.f32 %v1176, %v1238
        %v1243 = vmul.f32 %v1239, 1.442695
        %v1244 = vpow.pop %v1243
        %v1245 = vmul.f32 %v1240, 1.442695
        %v1246 = vpow.pop %v1245
        %v1247 = vmul.f32 %v1241, 1.442695
        %v1248 = vpow.pop %v1247
        %v1249 = vmul.f32 %v1242, 1.442695
        %v1250 = vpow.pop %v1249
        %v1251 = vld [vmem:[#allocation5] sm:$0xf]
        %v1252 = vmul.f32 %v1210, %v1251
        %v1253 = vsel %vm1084, %v1244, 0.0
        %1254 = vadd.xlane.f32.xlu0 %v1253
        %v1255 = vpop.xlane.xlu0 %1254
        %v1256 = vsel %vm1084, %v1246, 0.0
        %1257 = vadd.xlane.f32.xlu0 %v1256
        %v1258 = vpop.xlane.xlu0 %1257
        %v1259 = vsel %vm1084, %v1248, 0.0
        %1260 = vadd.xlane.f32.xlu0 %v1259
        %v1261 = vpop.xlane.xlu0 %1260
        %v1262 = vsel %vm1084, %v1250, 0.0
        %1263 = vadd.xlane.f32.xlu0 %v1262
        %v1264 = vpop.xlane.xlu0 %1263
        %v1269 = vperm.slane %v1255, %v1195
        %v1270 = vperm.slane %v1258, %v1195
        %v1271 = vperm.slane %v1261, %v1195
        %v1272 = vperm.slane %v1264, %v1195
        %v1273 = vsel %vm1200, %v1270, %v1269
        %v1274 = vsel %vm1202, %v1271, %v1273
        %v1275 = vsel %vm1204, %v1272, %v1274
        %v1277 = vadd.f32 %v1252, %v1275
        %1278 = vst.msk [vmem:[#allocation5] sm:$0xf] %vm1081, %v1277
        %v1279 = vperm.slane %v1210, 0
        %v1280 = vlaneseq
        %v1281 = vshrl.u32 %v1280, 7
        %1283 = vset.pattern.permute.xlu0 %v1281
        %1284 = vperm.xlu0 %1283, %v1279
        %v1285 = vpop.permute.xlu0 %1284
        %v1286 = vperm.slane %v1210, 1
        %v1287 = vlaneseq
        %v1288 = vshrl.u32 %v1287, 7
        %1290 = vset.pattern.permute.xlu0 %v1288
        %1291 = vperm.xlu0 %1290, %v1286
        %v1292 = vpop.permute.xlu0 %1291
        %v1293 = vperm.slane %v1210, 2
        %v1294 = vlaneseq
        %v1295 = vshrl.u32 %v1294, 7
        %1297 = vset.pattern.permute.xlu0 %v1295
        %1298 = vperm.xlu0 %1297, %v1293
        %v1299 = vpop.permute.xlu0 %1298
        %v1300 = vperm.slane %v1210, 3
        %v1301 = vlaneseq
        %v1302 = vshrl.u32 %v1301, 7
        %1304 = vset.pattern.permute.xlu0 %v1302
        %1305 = vperm.xlu0 %1304, %v1300
        %v1306 = vpop.permute.xlu0 %1305
        %v1307 = vld [vmem:[#allocation6] sm:$0xff]
        %v1308 = vld [vmem:[#allocation6 + $0x8] sm:$0xff]
        %v1309 = vld [vmem:[#allocation6 + $0x10] sm:$0xff]
        %v1310 = vld [vmem:[#allocation6 + $0x18] sm:$0xff]
        %v1311 = vmul.f32 %v1285, %v1307
        %v1312 = vmul.f32 %v1292, %v1308
        %v1313 = vmul.f32 %v1299, %v1309
        %v1314 = vmul.f32 %v1306, %v1310
        %v1315 = vpack.c.bf16 %v1244, %v1244
        %v1316 = vpack.c.bf16 %v1246, %v1246
        %v1317 = vpack.c.bf16 %v1248, %v1248
        %v1318 = vpack.c.bf16 %v1250, %v1250
        %v1320 = vsel %vm1084, %v1315, 0
        %vm1322 = vcmask 1043456
        %v1324 = vsel %vm1322, %v1093, 0
        %1326 = vmatpush.bf16.msra.mxu0 0
        %1327 = vmatpush.bf16.msra.mxu0 0
        %1328 = vmatpush.bf16.msra.mxu0 0
        %1329 = vmatpush.bf16.msra.mxu0 0
        %1330 = vmatpush.bf16.msra.mxu0 0
        %1331 = vmatpush.bf16.msra.mxu0 0
        %1332 = vmatpush.bf16.msra.mxu0 0
        %1333 = vmatpush.bf16.msra.mxu0 %v1324
        %1334 = vmatmul.bf16.gmra.mxu0 %v1320
        %v1335 = vpop.f32.mrf.mxu0
        %v1336 = vadd.f32 0.0, %v1335
        %v1337 = vpop.f32.mrf.mxu0
        %1338 = vdwg.mxu0
        %v1340 = vsel %vm1084, %v1316, 0
        %v1343 = vsel %vm1322, %v1094, 0
        %1345 = vmatpush.bf16.msra.mxu0 0
        %1346 = vmatpush.bf16.msra.mxu0 0
        %1347 = vmatpush.bf16.msra.mxu0 0
        %1348 = vmatpush.bf16.msra.mxu0 0
        %1349 = vmatpush.bf16.msra.mxu0 0
        %1350 = vmatpush.bf16.msra.mxu0 0
        %1351 = vmatpush.bf16.msra.mxu0 0
        %1352 = vmatpush.bf16.msra.mxu0 %v1343
        %1353 = vmatmul.bf16.gmra.mxu0 %v1340
        %v1354 = vpop.f32.mrf.mxu0
        %v1355 = vadd.f32 0.0, %v1354
        %v1356 = vpop.f32.mrf.mxu0
        %1357 = vdwg.mxu0
        %v1359 = vsel %vm1084, %v1317, 0
        %v1362 = vsel %vm1322, %v1095, 0
        %1364 = vmatpush.bf16.msra.mxu0 0
        %1365 = vmatpush.bf16.msra.mxu0 0
        %1366 = vmatpush.bf16.msra.mxu0 0
        %1367 = vmatpush.bf16.msra.mxu0 0
        %1368 = vmatpush.bf16.msra.mxu0 0
        %1369 = vmatpush.bf16.msra.mxu0 0
        %1370 = vmatpush.bf16.msra.mxu0 0
        %1371 = vmatpush.bf16.msra.mxu0 %v1362
        %1372 = vmatmul.bf16.gmra.mxu0 %v1359
        %v1373 = vpop.f32.mrf.mxu0
        %v1374 = vadd.f32 0.0, %v1373
        %v1375 = vpop.f32.mrf.mxu0
        %1376 = vdwg.mxu0
        %v1378 = vsel %vm1084, %v1318, 0
        %v1381 = vsel %vm1322, %v1096, 0
        %1383 = vmatpush.bf16.msra.mxu0 0
        %1384 = vmatpush.bf16.msra.mxu0 0
        %1385 = vmatpush.bf16.msra.mxu0 0
        %1386 = vmatpush.bf16.msra.mxu0 0
        %1387 = vmatpush.bf16.msra.mxu0 0
        %1388 = vmatpush.bf16.msra.mxu0 0
        %1389 = vmatpush.bf16.msra.mxu0 0
        %1390 = vmatpush.bf16.msra.mxu0 %v1381
        %1391 = vmatmul.bf16.gmra.mxu0 %v1378
        %v1392 = vpop.f32.mrf.mxu0
        %v1393 = vadd.f32 0.0, %v1392
        %v1394 = vpop.f32.mrf.mxu0
        %1395 = vdwg.mxu0
        %v1396 = vadd.f32 %v1311, %v1336
        %v1397 = vadd.f32 %v1312, %v1355
        %v1398 = vadd.f32 %v1313, %v1374
        %v1399 = vadd.f32 %v1314, %v1393
        %1400 = vst.msk [vmem:[#allocation6] sm:$0xff] %vm1084, %v1396
        %1401 = vst.msk [vmem:[#allocation6 + $0x8] sm:$0xff] %vm1084, %v1397
        %1402 = vst.msk [vmem:[#allocation6 + $0x10] sm:$0xff] %vm1084, %v1398
        %1403 = vst.msk [vmem:[#allocation6 + $0x18] sm:$0xff] %vm1084, %v1399
        %1404 = vst.msk [vmem:[#allocation4] sm:$0xf] %vm1081, %v1207
        %v1405 = vld [vmem:[#allocation6] sm:$0xff]
        %v1406 = vld [vmem:[#allocation6 + $0x8] sm:$0xff]
        %v1407 = vld [vmem:[#allocation6 + $0x10] sm:$0xff]
        %v1408 = vld [vmem:[#allocation6 + $0x18] sm:$0xff]
        %v1409 = vld [vmem:[#allocation5] sm:$0xf]
        %v1410 = vrcp.pop %v1409
        %v1411 = vperm.slane %v1410, 0
        %v1412 = vlaneseq
        %v1413 = vshrl.u32 %v1412, 7
        %1415 = vset.pattern.permute.xlu0 %v1413
        %1416 = vperm.xlu0 %1415, %v1411
        %v1417 = vpop.permute.xlu0 %1416
        %v1418 = vperm.slane %v1410, 1
        %v1419 = vlaneseq
        %v1420 = vshrl.u32 %v1419, 7
        %1422 = vset.pattern.permute.xlu0 %v1420
        %1423 = vperm.xlu0 %1422, %v1418
        %v1424 = vpop.permute.xlu0 %1423
        %v1425 = vperm.slane %v1410, 2
        %v1426 = vlaneseq
        %v1427 = vshrl.u32 %v1426, 7
        %1429 = vset.pattern.permute.xlu0 %v1427
        %1430 = vperm.xlu0 %1429, %v1425
        %v1431 = vpop.permute.xlu0 %1430
        %v1432 = vperm.slane %v1410, 3
        %v1433 = vlaneseq
        %v1434 = vshrl.u32 %v1433, 7
        %1436 = vset.pattern.permute.xlu0 %v1434
        %1437 = vperm.xlu0 %1436, %v1432
        %v1438 = vpop.permute.xlu0 %1437
        %v1439 = vmul.f32 %v1405, %v1417
        %v1440 = vmul.f32 %v1406, %v1424
        %v1441 = vmul.f32 %v1407, %v1431
        %v1442 = vmul.f32 %v1408, %v1438
        %v1443 = vpack.c.bf16 %v1439, %v1439
        %v1444 = vpack.c.bf16 %v1440, %v1440
        %v1445 = vpack.c.bf16 %v1441, %v1441
        %v1446 = vpack.c.bf16 %v1442, %v1442
        %v1447 = vld [vmem:[#allocation10] sm:$0xf]
        %v1448 = vld [vmem:[#allocation10 + $0x4] sm:$0xf]
        %v1449 = vld [vmem:[#allocation10 + $0x8] sm:$0xf]
        %v1450 = vld [vmem:[#allocation10 + $0xc] sm:$0xf]
        %v1452 = vsel %vm1084, %v1443, 0
        %v1455 = vsel %vm1322, %v1447, 0
        %1457 = vmatpush.bf16.msra.mxu0 0
        %1458 = vmatpush.bf16.msra.mxu0 0
        %1459 = vmatpush.bf16.msra.mxu0 0
        %1460 = vmatpush.bf16.msra.mxu0 0
        %1461 = vmatpush.bf16.msra.mxu0 0
        %1462 = vmatpush.bf16.msra.mxu0 0
        %1463 = vmatpush.bf16.msra.mxu0 0
        %1464 = vmatpush.bf16.msra.mxu0 %v1455
        %1465 = vmatmul.bf16.gmra.mxu0 %v1452
        %v1466 = vpop.f32.mrf.mxu0
        %v1467 = vadd.f32 0.0, %v1466
        %v1468 = vpop.f32.mrf.mxu0
        %1469 = vdwg.mxu0
        %v1471 = vsel %vm1084, %v1444, 0
        %v1474 = vsel %vm1322, %v1448, 0
        %1476 = vmatpush.bf16.msra.mxu0 0
        %1477 = vmatpush.bf16.msra.mxu0 0
        %1478 = vmatpush.bf16.msra.mxu0 0
        %1479 = vmatpush.bf16.msra.mxu0 0
        %1480 = vmatpush.bf16.msra.mxu0 0
        %1481 = vmatpush.bf16.msra.mxu0 0
        %1482 = vmatpush.bf16.msra.mxu0 0
        %1483 = vmatpush.bf16.msra.mxu0 %v1474
        %1484 = vmatmul.bf16.gmra.mxu0 %v1471
        %v1485 = vpop.f32.mrf.mxu0
        %v1486 = vadd.f32 0.0, %v1485
        %v1487 = vpop.f32.mrf.mxu0
        %1488 = vdwg.mxu0
        %v1490 = vsel %vm1084, %v1445, 0
        %v1493 = vsel %vm1322, %v1449, 0
        %1495 = vmatpush.bf16.msra.mxu0 0
        %1496 = vmatpush.bf16.msra.mxu0 0
        %1497 = vmatpush.bf16.msra.mxu0 0
        %1498 = vmatpush.bf16.msra.mxu0 0
        %1499 = vmatpush.bf16.msra.mxu0 0
        %1500 = vmatpush.bf16.msra.mxu0 0
        %1501 = vmatpush.bf16.msra.mxu0 0
        %1502 = vmatpush.bf16.msra.mxu0 %v1493
        %1503 = vmatmul.bf16.gmra.mxu0 %v1490
        %v1504 = vpop.f32.mrf.mxu0
        %v1505 = vadd.f32 0.0, %v1504
        %v1506 = vpop.f32.mrf.mxu0
        %1507 = vdwg.mxu0
        %v1509 = vsel %vm1084, %v1446, 0
        %v1512 = vsel %vm1322, %v1450, 0
        %1514 = vmatpush.bf16.msra.mxu0 0
        %1515 = vmatpush.bf16.msra.mxu0 0
        %1516 = vmatpush.bf16.msra.mxu0 0
        %1517 = vmatpush.bf16.msra.mxu0 0
        %1518 = vmatpush.bf16.msra.mxu0 0
        %1519 = vmatpush.bf16.msra.mxu0 0
        %1520 = vmatpush.bf16.msra.mxu0 0
        %1521 = vmatpush.bf16.msra.mxu0 %v1512
        %1522 = vmatmul.bf16.gmra.mxu0 %v1509
        %v1523 = vpop.f32.mrf.mxu0
        %v1524 = vadd.f32 0.0, %v1523
        %v1525 = vpop.f32.mrf.mxu0
        %1526 = vdwg.mxu0
        %v1527 = vsel %vm939, %v1467, 0.0
        %v1528 = vsel %vm939, %v1486, 0.0
        %v1529 = vadd.f32 %v1527, %v1528
        %v1530 = vsel %vm939, %v1505, 0.0
        %v1531 = vadd.f32 %v1529, %v1530
        %v1532 = vsel %vm939, %v1524, 0.0
        %v1533 = vadd.f32 %v1531, %v1532
        %v1534 = vld [vmem:[%s7] sm:$0x1]
        %v1536 = vperm.slane %v1534, 0
        %v1538 = vadd.f32 %v1533, %v1536
        %v1539 = vadd.f32 %v917, %v1538
        %v1540 = vsel %vm939, %v1539, 0.0
        %1541 = vadd.xlane.f32.xlu0 %v1540
        %v1542 = vpop.xlane.xlu0 %1541
        %v1543 = vrcp.pop 32.0
        %v1544 = vmul.f32 32.0, %v1543
        %v1545 = vsub.f32 1.0, %v1544
        %v1546 = vmul.f32 %v1543, %v1545
        %v1547 = vadd.f32 %v1543, %v1546
        %vm1548 = vweird.f32 %v1543
        %v1549 = vsel %vm1548, %v1543, %v1547
        %v1550 = vmul.f32 %v1542, %v1549
        %v1551 = vsub.f32 %v1539, %v1550
        %v1552 = vmul.f32 %v1551, %v1551
        %v1553 = vsel %vm939, %v1552, 0.0
        %1554 = vadd.xlane.f32.xlu0 %v1553
        %v1555 = vpop.xlane.xlu0 %1554
        %v1556 = vmul.f32 %v1555, %v1549
        %v1557 = vadd.f32 %v1556, 1e-05
        %v1558 = vrsqrt.pop %v1557
        %v1559 = vmul.f32 %v1558, %v1557
        %v1560 = vmul.f32 %v1559, %v1558
        %v1561 = vmul.f32 0.5, %v1560
        %v1562 = vsub.f32 1.5, %v1561
        %v1563 = vmul.f32 %v1558, %v1562
        %vm1564 = vweird.f32 %v1557
        %vm1565 = vweird.f32 %v1558
        %vm1566 = vmor %vm1564, %vm1565
        %v1567 = vsel %vm1566, %v1558, %v1563
        %v1568 = vmul.f32 %v1551, %v1567
        %v1569 = vld [vmem:[%s8] sm:$0x1]
        %v1571 = vperm.slane %v1569, 0
        %v1573 = vmul.f32 %v1568, %v1571
        %v1574 = vld [vmem:[%s9] sm:$0x1]
        %v1576 = vperm.slane %v1574, 0
        %v1578 = vadd.f32 %v1573, %v1576
        %v1579 = vpack.c.bf16 %v1578, %v1578
        %v1580 = vld [vmem:[#allocation12] sm:$0xf]
        %v1581 = vld [vmem:[#allocation12 + $0x4] sm:$0xf]
        %v1582 = vld [vmem:[#allocation12 + $0x8] sm:$0xf]
        %v1583 = vld [vmem:[#allocation12 + $0xc] sm:$0xf]
        %v1584 = vld [vmem:[%s11] sm:$0x1]
        %v1586 = vperm.slane %v1584, 0
        %v1592 = vunpack.c.l.b16 %v1580
        %v1593 = vunpack.c.l.b16 %v1581
        %v1594 = vunpack.c.l.b16 %v1582
        %v1595 = vunpack.c.l.b16 %v1583
        %v1596 = vpack.c.b16 %v1593, %v1592
        %v1597 = vpack.c.b16 %v1595, %v1594
        %v1601 = vsel %vm939, %v1579, 0
        %1603 = vmatpush.bf16.msra.mxu0 0
        %1604 = vmatpush.bf16.msra.mxu0 0
        %1605 = vmatpush.bf16.msra.mxu0 0
        %1606 = vmatpush.bf16.msra.mxu0 0
        %1607 = vmatpush.bf16.msra.mxu0 0
        %1608 = vmatpush.bf16.msra.mxu0 0
        %1609 = vmatpush.bf16.msra.mxu0 %v1597
        %1610 = vmatpush.bf16.msra.mxu0 %v1596
        %1611 = vmatmul.bf16.gmra.mxu0 %v1601
        %v1612 = vpop.f32.mrf.mxu0
        %v1613 = vadd.f32 %v1586, %v1612
        %v1614 = vpop.f32.mrf.mxu0
        %1615 = vdwg.mxu0
        %v1616 = vmax.f32 %v1613, 0.0
        %v1617 = vpack.c.bf16 %v1616, %v1616
        %v1618 = vld [vmem:[%s12] sm:$0xf]
        %v1619 = vld [vmem:[%s12 + $0x4] sm:$0xf]
        %v1620 = vld [vmem:[%s12 + $0x8] sm:$0xf]
        %v1621 = vld [vmem:[%s12 + $0xc] sm:$0xf]
        %v1622 = vld [vmem:[%s12 + $0x10] sm:$0xf]
        %v1623 = vld [vmem:[%s12 + $0x14] sm:$0xf]
        %v1624 = vld [vmem:[%s12 + $0x18] sm:$0xf]
        %v1625 = vld [vmem:[%s12 + $0x1c] sm:$0xf]
        %v1626 = vld [vmem:[%s13] sm:$0x1]
        %v1628 = vperm.slane %v1626, 0
        %v1638 = vunpack.c.l.b16 %v1618
        %v1639 = vunpack.c.l.b16 %v1619
        %v1640 = vunpack.c.l.b16 %v1620
        %v1641 = vunpack.c.l.b16 %v1621
        %v1642 = vunpack.c.l.b16 %v1622
        %v1643 = vunpack.c.l.b16 %v1623
        %v1644 = vunpack.c.l.b16 %v1624
        %v1645 = vunpack.c.l.b16 %v1625
        %v1646 = vpack.c.b16 %v1639, %v1638
        %v1647 = vpack.c.b16 %v1641, %v1640
        %v1648 = vpack.c.b16 %v1643, %v1642
        %v1649 = vpack.c.b16 %v1645, %v1644
        %vm1654 = vcmask 523264
        %v1656 = vsel %vm1654, %v1617, 0
        %1658 = vmatpush.bf16.msra.mxu0 0
        %1659 = vmatpush.bf16.msra.mxu0 0
        %1660 = vmatpush.bf16.msra.mxu0 0
        %1661 = vmatpush.bf16.msra.mxu0 0
        %1662 = vmatpush.bf16.msra.mxu0 %v1649
        %1663 = vmatpush.bf16.msra.mxu0 %v1648
        %1664 = vmatpush.bf16.msra.mxu0 %v1647
        %1665 = vmatpush.bf16.msra.mxu0 %v1646
        %1666 = vmatmul.bf16.gmra.mxu0 %v1656
        %v1667 = vpop.f32.mrf.mxu0
        %v1668 = vadd.f32 %v1628, %v1667
        %v1669 = vpop.f32.mrf.mxu0
        %1670 = vdwg.mxu0
        %v1671 = vadd.f32 %v1578, %v1668
        %v1672 = vsel %vm939, %v1671, 0.0
        %1673 = vadd.xlane.f32.xlu0 %v1672
        %v1674 = vpop.xlane.xlu0 %1673
        %v1675 = vmul.f32 %v1674, %v1549
        %v1676 = vsub.f32 %v1671, %v1675
        %v1677 = vmul.f32 %v1676, %v1676
        %v1678 = vsel %vm939, %v1677, 0.0
        %1679 = vadd.xlane.f32.xlu0 %v1678
        %v1680 = vpop.xlane.xlu0 %1679
        %v1681 = vmul.f32 %v1680, %v1549
        %v1682 = vadd.f32 %v1681, 1e-05
        %v1683 = vrsqrt.pop %v1682
        %v1684 = vmul.f32 %v1683, %v1682
        %v1685 = vmul.f32 %v1684, %v1683
        %v1686 = vmul.f32 0.5, %v1685
        %v1687 = vsub.f32 1.5, %v1686
        %v1688 = vmul.f32 %v1683, %v1687
        %vm1689 = vweird.f32 %v1682
        %vm1690 = vweird.f32 %v1683
        %vm1691 = vmor %vm1689, %vm1690
        %v1692 = vsel %vm1691, %v1683, %v1688
        %v1693 = vmul.f32 %v1676, %v1692
        %v1694 = vld [vmem:[%s14] sm:$0x1]
        %v1696 = vperm.slane %v1694, 0
        %v1698 = vmul.f32 %v1693, %v1696
        %v1699 = vld [vmem:[%s15] sm:$0x1]
        %v1701 = vperm.slane %v1699, 0
        %v1703 = vadd.f32 %v1698, %v1701
        %1704 = vst.msk [vmem:[%s606] sm:$0xff] %vm939, %v1703
        %s1705 = sand.u32 %s404, 1
        %s1706 = scalar_lea.sflag [#allocation9], %s1705
        %s1707 = sand.u32 %s404, 1
        %s1708 = smul.addr %s1707, 8
        %s1709 = scalar_lea.vmem [#allocation13], %s1708
        // Predicated region
        $region101: #{tpu_custom_call.1} parent=83 // pred_check
          %p1710 = pneg %p414
        $region102: #{tpu_custom_call.1} parent=83 // pred_check_branch
          %1712 = sbr.rel (%p1710) target = $region104
        $region103: #{tpu_custom_call.1} parent=83 // pred_region
          %1714 = vsyncadd %s1706, 0
          %s1715 = sadd.s32 %s39, %s38
          %s1716 = smul.addr %s1715, 8
          %s1717 = scalar_lea.hbm %s16, %s1716
          %s1719 = sshll.u32 %s1709, 4
          %s1720 = int_to_ptr.vmem [resolvable:$true] %s1719
          %s1721 = sshll.u32 %s1717, 4
          %s1722 = int_to_ptr.hbm [resolvable:$true] %s1721
          %1724 = dma.vmem_to_hbm [thread:$0]  %s1720, 128, %s1722, %s1706
        $region104: #{tpu_custom_call.1} parent=83 // pred_fallthru
          _
      $region84: #{tpu_custom_call.1} parent=5 // pred_fallthru
        _
      %p1725 = scmp.le.s32.totalorder 2, %s29
      // Predicated region
      $region105: #{tpu_custom_call.1} parent=5 // pred_check
        %p1726 = pneg %p1725
      $region106: #{tpu_custom_call.1} parent=5 // pred_check_branch
        %1728 = sbr.rel (%p1726) target = $region108
      $region107: #{tpu_custom_call.1} parent=5 // pred_region
        %s1729 = ssub.s32 %s29, 2
        // Predicated region
        $region109: #{tpu_custom_call.1} parent=107 // pred_check
          %p1730 = pneg %p420
        $region110: #{tpu_custom_call.1} parent=107 // pred_check_branch
          %1732 = sbr.rel (%p1730) target = $region112
        $region111: #{tpu_custom_call.1} parent=107 // pred_region
          %s1733 = sand.u32 %s405, 1
          %s1734 = scalar_lea.sflag [#allocation9], %s1733
          %s1735 = sand.u32 %s405, 1
          %s1736 = smul.addr %s1735, 8
          %s1737 = scalar_lea.vmem [#allocation13], %s1736
          %1739 = dma.done %s1734, 128
        $region112: #{tpu_custom_call.1} parent=107 // pred_fallthru
          _
      $region108: #{tpu_custom_call.1} parent=5 // pred_fallthru
        _
    $region6: #{tpu_custom_call.1} parent=1 // loop_footer
      %s33 = sadd.s32 1, %s29
    $region7: #{tpu_custom_call.1} parent=1 // loop_footer_branch
      %28 = sbr.rel target = $region3
    $region8: #{tpu_custom_call.1} parent=1 // loop_exit
      _
    %1740 = vsyncpa [#allocation8], 1
    %s1741 = scalar_lea.sflag [#allocation8], 1
    %1742 = vsyncpa %s1741, 1
    %1743 = vsyncpa [#allocation11], 1
    %1744 = vsyncpa [#allocation9], 1
    %s1745 = scalar_lea.sflag [#allocation9], 1
    %1746 = vsyncpa %s1745, 1

// kernel: tpu_custom_call.1
$region0: #{tpu_custom_call.1}
  #allocation0 [shape = 'u32[]', space=smem, size = 0x4, offset = 0x4, fixed_abs, tag = 'smem constant byte address 0x4 - core index']
  #allocation1 [shape = 'u32[72,128]{1,0:T(1,128)}', space=vmem, size = 0x9000, scoped, tag = 'internal scratch']
  #allocation2 [shape = 'bf16[4,8,8]{2,1,0:T(8,128)(2,1)}', space=vmem, size = 0x2000, scoped, tag = 'scratch operand']
  #allocation3 [shape = 'bf16[4,8,8]{2,1,0:T(8,128)(2,1)}', space=vmem, size = 0x2000, scoped, tag = 'scratch operand']
  #allocation4 [shape = 'f32[4,8]{1,0:T(4,128)}', space=vmem, size = 0x800, scoped, tag = 'scratch operand']
  #allocation5 [shape = 'f32[4,8]{1,0:T(4,128)}', space=vmem, size = 0x800, scoped, tag = 'scratch operand']
  #allocation6 [shape = 'f32[4,8,8]{2,1,0:T(8,128)}', space=vmem, size = 0x4000, scoped, tag = 'scratch operand']
  %s0 = inlined_call_operand.vmem [shape: f32[2,8,32], index: 0, kind: input, shape index: {}]
  %s1 = inlined_call_operand.hbm [shape: bf16[2,8,32], index: 1, kind: input, shape index: {}]
  %s2 = inlined_call_operand.vmem [shape: bf16[32,32], index: 2, kind: input, shape index: {}]
  %s3 = inlined_call_operand.vmem [shape: f32[1,32], index: 3, kind: input, shape index: {}]
  %s4 = inlined_call_operand.vmem [shape: bf16[32,64], index: 4, kind: input, shape index: {}]
  %s5 = inlined_call_operand.vmem [shape: f32[1,64], index: 5, kind: input, shape index: {}]
  %s6 = inlined_call_operand.hbm [shape: bf16[4,8,32], index: 6, kind: input, shape index: {}]
  %s7 = inlined_call_operand.vmem [shape: f32[1,32], index: 7, kind: input, shape index: {}]
  %s8 = inlined_call_operand.vmem [shape: f32[1,32], index: 8, kind: input, shape index: {}]
  %s9 = inlined_call_operand.vmem [shape: f32[1,32], index: 9, kind: input, shape index: {}]
  %s10 = inlined_call_operand.hbm [shape: bf16[32,64], index: 10, kind: input, shape index: {}]
  %s11 = inlined_call_operand.vmem [shape: f32[1,64], index: 11, kind: input, shape index: {}]
  %s12 = inlined_call_operand.vmem [shape: bf16[64,32], index: 12, kind: input, shape index: {}]
  %s13 = inlined_call_operand.vmem [shape: f32[1,32], index: 13, kind: input, shape index: {}]
  %s14 = inlined_call_operand.vmem [shape: f32[1,32], index: 14, kind: input, shape index: {}]
  %s15 = inlined_call_operand.vmem [shape: f32[1,32], index: 15, kind: input, shape index: {}]
  %s16 = inlined_call_operand.hbm [shape: f32[2,8,32], index: 16, kind: output, shape index: {}]
  %s17 = sld [smem:[#allocation0]]
  $region113: #{tpu_custom_call.1} parent=0
    _
  %s19 = ssub.s32 1, %s17
  %s20 = scalar_select 0, %s19, %s17
  $region1: #{tpu_custom_call.1} parent=0
    #allocation7 [shape = 'u8[4096]{0}', space=vmem, size = 0x1000, scoped, tag = 'input window, operand 1']
    #allocation8 [shape = 's32[2]{0}', space=sflag, size = 0x8, scoped, tag = 'scoped memory for tpu_custom_call.1']
    #allocation9 [shape = 's32[2]{0}', space=sflag, size = 0x8, scoped, tag = 'scoped memory for tpu_custom_call.1']
    #allocation10 [shape = 'u8[8192]{0}', space=vmem, size = 0x2000, scoped, tag = 'input window, operand 6, single buffered']
    #allocation11 [shape = 's32[1]{0}', space=sflag, size = 0x4, scoped, tag = 'scoped memory for tpu_custom_call.1']
    #allocation12 [shape = 'u8[8192]{0}', space=vmem, size = 0x2000, scoped, tag = 'input window, operand 10, single buffered']
    #allocation13 [shape = 'u8[8192]{0}', space=vmem, size = 0x2000, scoped, tag = 'output window, operand 0']
    %21 = vsyncpa [#allocation8], 0
    %s22 = scalar_lea.sflag [#allocation8], 1
    %23 = vsyncpa %s22, 0
    %24 = vsyncpa [#allocation11], 0
    %25 = vsyncpa [#allocation9], 0
    %s26 = scalar_lea.sflag [#allocation9], 1
    %27 = vsyncpa %s26, 0
    loop: start=0, step=1, limit=4
    $region2: #{tpu_custom_call.1} parent=1 // loop_pre_header
      _
    $region3: #{tpu_custom_call.1} parent=1 // loop_header
      %s29 = sphi 0, %s33
      %p30 = scmp.ge.s32.totalorder %s29, 4
      %s36 = sphi 0, %s48
      %s37 = sphi 0, %s44
      %s38 = sphi 0, %s36
      %s39 = sphi 0, %s37
      %s40 = sphi 0, %s38
      %s41 = sphi 0, %s39
      %s53 = sphi 0, %s55
      %s56 = sphi 0, %s53
      %s57 = sphi 0, %s56
      %s73 = sphi 0, %s57
      %s79 = sphi 0, %s81
      %s82 = sphi 0, %s79
      %s83 = sphi 0, %s82
      %s99 = sphi 0, %s83
      %s103 = sphi 0, %s103
      %s105 = sphi 0, %s103
      %s106 = sphi 0, %s105
      %s120 = sphi 0, %s106
      %s124 = sphi 0, %s124
      %s126 = sphi 0, %s124
      %s127 = sphi 0, %s126
      %s141 = sphi 0, %s127
      %s145 = sphi 0, %s145
      %s147 = sphi 0, %s145
      %s148 = sphi 0, %s147
      %s162 = sphi 0, %s148
      %s166 = sphi 0, %s166
      %s168 = sphi 0, %s166
      %s169 = sphi 0, %s168
      %s183 = sphi 0, %s169
      %s187 = sphi 0, %s187
      %s189 = sphi 0, %s187
      %s190 = sphi 0, %s189
      %s204 = sphi 0, %s190
      %s208 = sphi 0, %s208
      %s210 = sphi 0, %s208
      %s211 = sphi 0, %s210
      %s225 = sphi 0, %s211
      %s229 = sphi 0, %s229
      %s231 = sphi 0, %s229
      %s232 = sphi 0, %s231
      %s246 = sphi 0, %s232
      %s250 = sphi 0, %s250
      %s252 = sphi 0, %s250
      %s253 = sphi 0, %s252
      %s267 = sphi 0, %s253
      %s271 = sphi 0, %s271
      %s273 = sphi 0, %s271
      %s274 = sphi 0, %s273
      %s288 = sphi 0, %s274
      %s292 = sphi 0, %s292
      %s294 = sphi 0, %s292
      %s295 = sphi 0, %s294
      %s309 = sphi 0, %s295
      %s313 = sphi 0, %s313
      %s315 = sphi 0, %s313
      %s316 = sphi 0, %s315
      %s330 = sphi 0, %s316
      %s334 = sphi 0, %s334
      %s336 = sphi 0, %s334
      %s337 = sphi 0, %s336
      %s351 = sphi 0, %s337
      %s355 = sphi 0, %s355
      %s357 = sphi 0, %s355
      %s358 = sphi 0, %s357
      %s372 = sphi 0, %s358
      %s376 = sphi 0, %s376
      %s378 = sphi 0, %s376
      %s379 = sphi 0, %s378
      %s393 = sphi 0, %s379
      %s401 = sphi 0, %s403
      %s404 = sphi 0, %s401
      %s405 = sphi 0, %s404
      %s421 = sphi 0, %s405
    $region4: #{tpu_custom_call.1} parent=1 // loop_header_branch
      %32 = sbr.rel (%p30) target = $region8
    $region5: #{tpu_custom_call.1} parent=1 // loop_body
      %s34 = ssub.s32 %s29, 1
      %s35 = ssub.s32 %s29, 2
      %s42 = sadd.s32 1, %s37
      %p43 = scmp.ge.s32.totalorder %s42, 1
      %s44 = scalar_select %p43, 0, %s42
      %s45 = sadd.s32 1, %s36
      %s46 = scalar_select %p43, %s45, %s36
      %p47 = scmp.ge.s32.totalorder %s46, 2
      %s48 = scalar_select %p47, 0, %s46
      %s49 = ssub.s32 %s36, %s48
      %s50 = ssub.s32 %s37, %s44
      %s51 = sor.u32 %s49, %s50
      %p52 = scmp.eq.s32.totalorder %s51, 0
      %s54 = sadd.s32 %s53, 1
      %s55 = scalar_select %p52, %s53, %s54
      %p58 = pneg %p52
      %p59 = scmp.eq.s32.totalorder %s29, 1
      %p60 = por %p58, %p59
      %p61 = scmp.ne.s32.totalorder %s53, %s56
      %p62 = scmp.eq.s32.totalorder %s29, 0
      %p63 = por %p61, %p62
      %p64 = scmp.ne.s32.totalorder %s53, %s56
      %p65 = scmp.eq.s32.totalorder %s34, 1
      %p66 = por %p64, %p65
      %p67 = scmp.ne.s32.totalorder %s56, %s57
      %p68 = scmp.eq.s32.totalorder %s34, 0
      %p69 = por %p67, %p68
      %p70 = scmp.ne.s32.totalorder %s56, %s57
      %p71 = scmp.eq.s32.totalorder %s35, 1
      %p72 = por %p70, %p71
      %p74 = scmp.ne.s32.totalorder %s57, %s73
      %p75 = scmp.eq.s32.totalorder %s35, 0
      %p76 = por %p74, %p75
      %s77 = ssub.s32 %s36, %s48
      %p78 = scmp.eq.s32.totalorder %s77, 0
      %s80 = sadd.s32 %s79, 1
      %s81 = scalar_select %p78, %s79, %s80
      %p84 = pneg %p78
      %p85 = scmp.eq.s32.totalorder %s29, 1
      %p86 = por %p84, %p85
      %p87 = scmp.ne.s32.totalorder %s79, %s82
      %p88 = scmp.eq.s32.totalorder %s29, 0
      %p89 = por %p87, %p88
      %p90 = scmp.ne.s32.totalorder %s79, %s82
      %p91 = scmp.eq.s32.totalorder %s34, 1
      %p92 = por %p90, %p91
      %p93 = scmp.ne.s32.totalorder %s82, %s83
      %p94 = scmp.eq.s32.totalorder %s34, 0
      %p95 = por %p93, %p94
      %p96 = scmp.ne.s32.totalorder %s82, %s83
      %p97 = scmp.eq.s32.totalorder %s35, 1
      %p98 = por %p96, %p97
      %p100 = scmp.ne.s32.totalorder %s83, %s99
      %p101 = scmp.eq.s32.totalorder %s35, 0
      %p102 = por %p100, %p101
      %s104 = sadd.s32 %s103, 1
      %p107 = scmp.eq.s32.totalorder %s29, 1
      %p108 = scmp.ne.s32.totalorder %s103, %s105
      %p109 = scmp.eq.s32.totalorder %s29, 0
      %p110 = por %p108, %p109
      %p111 = scmp.ne.s32.totalorder %s103, %s105
      %p112 = scmp.eq.s32.totalorder %s34, 1
      %p113 = por %p111, %p112
      %p114 = scmp.ne.s32.totalorder %s105, %s106
      %p115 = scmp.eq.s32.totalorder %s34, 0
      %p116 = por %p114, %p115
      %p117 = scmp.ne.s32.totalorder %s105, %s106
      %p118 = scmp.eq.s32.totalorder %s35, 1
      %p119 = por %p117, %p118
      %p121 = scmp.ne.s32.totalorder %s106, %s120
      %p122 = scmp.eq.s32.totalorder %s35, 0
      %p123 = por %p121, %p122
      %s125 = sadd.s32 %s124, 1
      %p128 = scmp.eq.s32.totalorder %s29, 1
      %p129 = scmp.ne.s32.totalorder %s124, %s126
      %p130 = scmp.eq.s32.totalorder %s29, 0
      %p131 = por %p129, %p130
      %p132 = scmp.ne.s32.totalorder %s124, %s126
      %p133 = scmp.eq.s32.totalorder %s34, 1
      %p134 = por %p132, %p133
      %p135 = scmp.ne.s32.totalorder %s126, %s127
      %p136 = scmp.eq.s32.totalorder %s34, 0
      %p137 = por %p135, %p136
      %p138 = scmp.ne.s32.totalorder %s126, %s127
      %p139 = scmp.eq.s32.totalorder %s35, 1
      %p140 = por %p138, %p139
      %p142 = scmp.ne.s32.totalorder %s127, %s141
      %p143 = scmp.eq.s32.totalorder %s35, 0
      %p144 = por %p142, %p143
      %s146 = sadd.s32 %s145, 1
      %p149 = scmp.eq.s32.totalorder %s29, 1
      %p150 = scmp.ne.s32.totalorder %s145, %s147
      %p151 = scmp.eq.s32.totalorder %s29, 0
      %p152 = por %p150, %p151
      %p153 = scmp.ne.s32.totalorder %s145, %s147
      %p154 = scmp.eq.s32.totalorder %s34, 1
      %p155 = por %p153, %p154
      %p156 = scmp.ne.s32.totalorder %s147, %s148
      %p157 = scmp.eq.s32.totalorder %s34, 0
      %p158 = por %p156, %p157
      %p159 = scmp.ne.s32.totalorder %s147, %s148
      %p160 = scmp.eq.s32.totalorder %s35, 1
      %p161 = por %p159, %p160
      %p163 = scmp.ne.s32.totalorder %s148, %s162
      %p164 = scmp.eq.s32.totalorder %s35, 0
      %p165 = por %p163, %p164
      %s167 = sadd.s32 %s166, 1
      %p170 = scmp.eq.s32.totalorder %s29, 1
      %p171 = scmp.ne.s32.totalorder %s166, %s168
      %p172 = scmp.eq.s32.totalorder %s29, 0
      %p173 = por %p171, %p172
      %p174 = scmp.ne.s32.totalorder %s166, %s168
      %p175 = scmp.eq.s32.totalorder %s34, 1
      %p176 = por %p174, %p175
      %p177 = scmp.ne.s32.totalorder %s168, %s169
      %p178 = scmp.eq.s32.totalorder %s34, 0
      %p179 = por %p177, %p178
      %p180 = scmp.ne.s32.totalorder %s168, %s169
      %p181 = scmp.eq.s32.totalorder %s35, 1
      %p182 = por %p180, %p181
      %p184 = scmp.ne.s32.totalorder %s169, %s183
      %p185 = scmp.eq.s32.totalorder %s35, 0
      %p186 = por %p184, %p185
      %s188 = sadd.s32 %s187, 1
      %p191 = scmp.eq.s32.totalorder %s29, 1
      %p192 = scmp.ne.s32.totalorder %s187, %s189
      %p193 = scmp.eq.s32.totalorder %s29, 0
      %p194 = por %p192, %p193
      %p195 = scmp.ne.s32.totalorder %s187, %s189
      %p196 = scmp.eq.s32.totalorder %s34, 1
      %p197 = por %p195, %p196
      %p198 = scmp.ne.s32.totalorder %s189, %s190
      %p199 = scmp.eq.s32.totalorder %s34, 0
      %p200 = por %p198, %p199
      %p201 = scmp.ne.s32.totalorder %s189, %s190
      %p202 = scmp.eq.s32.totalorder %s35, 1
      %p203 = por %p201, %p202
      %p205 = scmp.ne.s32.totalorder %s190, %s204
      %p206 = scmp.eq.s32.totalorder %s35, 0
      %p207 = por %p205, %p206
      %s209 = sadd.s32 %s208, 1
      %p212 = scmp.eq.s32.totalorder %s29, 1
      %p213 = scmp.ne.s32.totalorder %s208, %s210
      %p214 = scmp.eq.s32.totalorder %s29, 0
      %p215 = por %p213, %p214
      %p216 = scmp.ne.s32.totalorder %s208, %s210
      %p217 = scmp.eq.s32.totalorder %s34, 1
      %p218 = por %p216, %p217
      %p219 = scmp.ne.s32.totalorder %s210, %s211
      %p220 = scmp.eq.s32.totalorder %s34, 0
      %p221 = por %p219, %p220
      %p222 = scmp.ne.s32.totalorder %s210, %s211
      %p223 = scmp.eq.s32.totalorder %s35, 1
      %p224 = por %p222, %p223
      %p226 = scmp.ne.s32.totalorder %s211, %s225
      %p227 = scmp.eq.s32.totalorder %s35, 0
      %p228 = por %p226, %p227
      %s230 = sadd.s32 %s229, 1
      %p233 = scmp.eq.s32.totalorder %s29, 1
      %p234 = scmp.ne.s32.totalorder %s229, %s231
      %p235 = scmp.eq.s32.totalorder %s29, 0
      %p236 = por %p234, %p235
      %p237 = scmp.ne.s32.totalorder %s229, %s231
      %p238 = scmp.eq.s32.totalorder %s34, 1
      %p239 = por %p237, %p238
      %p240 = scmp.ne.s32.totalorder %s231, %s232
      %p241 = scmp.eq.s32.totalorder %s34, 0
      %p242 = por %p240, %p241
      %p243 = scmp.ne.s32.totalorder %s231, %s232
      %p244 = scmp.eq.s32.totalorder %s35, 1
      %p245 = por %p243, %p244
      %p247 = scmp.ne.s32.totalorder %s232, %s246
      %p248 = scmp.eq.s32.totalorder %s35, 0
      %p249 = por %p247, %p248
      %s251 = sadd.s32 %s250, 1
      %p254 = scmp.eq.s32.totalorder %s29, 1
      %p255 = scmp.ne.s32.totalorder %s250, %s252
      %p256 = scmp.eq.s32.totalorder %s29, 0
      %p257 = por %p255, %p256
      %p258 = scmp.ne.s32.totalorder %s250, %s252
      %p259 = scmp.eq.s32.totalorder %s34, 1
      %p260 = por %p258, %p259
      %p261 = scmp.ne.s32.totalorder %s252, %s253
      %p262 = scmp.eq.s32.totalorder %s34, 0
      %p263 = por %p261, %p262
      %p264 = scmp.ne.s32.totalorder %s252, %s253
      %p265 = scmp.eq.s32.totalorder %s35, 1
      %p266 = por %p264, %p265
      %p268 = scmp.ne.s32.totalorder %s253, %s267
      %p269 = scmp.eq.s32.totalorder %s35, 0
      %p270 = por %p268, %p269
      %s272 = sadd.s32 %s271, 1
      %p275 = scmp.eq.s32.totalorder %s29, 1
      %p276 = scmp.ne.s32.totalorder %s271, %s273
      %p277 = scmp.eq.s32.totalorder %s29, 0
      %p278 = por %p276, %p277
      %p279 = scmp.ne.s32.totalorder %s271, %s273
      %p280 = scmp.eq.s32.totalorder %s34, 1
      %p281 = por %p279, %p280
      %p282 = scmp.ne.s32.totalorder %s273, %s274
      %p283 = scmp.eq.s32.totalorder %s34, 0
      %p284 = por %p282, %p283
      %p285 = scmp.ne.s32.totalorder %s273, %s274
      %p286 = scmp.eq.s32.totalorder %s35, 1
      %p287 = por %p285, %p286
      %p289 = scmp.ne.s32.totalorder %s274, %s288
      %p290 = scmp.eq.s32.totalorder %s35, 0
      %p291 = por %p289, %p290
      %s293 = sadd.s32 %s292, 1
      %p296 = scmp.eq.s32.totalorder %s29, 1
      %p297 = scmp.ne.s32.totalorder %s292, %s294
      %p298 = scmp.eq.s32.totalorder %s29, 0
      %p299 = por %p297, %p298
      %p300 = scmp.ne.s32.totalorder %s292, %s294
      %p301 = scmp.eq.s32.totalorder %s34, 1
      %p302 = por %p300, %p301
      %p303 = scmp.ne.s32.totalorder %s294, %s295
      %p304 = scmp.eq.s32.totalorder %s34, 0
      %p305 = por %p303, %p304
      %p306 = scmp.ne.s32.totalorder %s294, %s295
      %p307 = scmp.eq.s32.totalorder %s35, 1
      %p308 = por %p306, %p307
      %p310 = scmp.ne.s32.totalorder %s295, %s309
      %p311 = scmp.eq.s32.totalorder %s35, 0
      %p312 = por %p310, %p311
      %s314 = sadd.s32 %s313, 1
      %p317 = scmp.eq.s32.totalorder %s29, 1
      %p318 = scmp.ne.s32.totalorder %s313, %s315
      %p319 = scmp.eq.s32.totalorder %s29, 0
      %p320 = por %p318, %p319
      %p321 = scmp.ne.s32.totalorder %s313, %s315
      %p322 = scmp.eq.s32.totalorder %s34, 1
      %p323 = por %p321, %p322
      %p324 = scmp.ne.s32.totalorder %s315, %s316
      %p325 = scmp.eq.s32.totalorder %s34, 0
      %p326 = por %p324, %p325
      %p327 = scmp.ne.s32.totalorder %s315, %s316
      %p328 = scmp.eq.s32.totalorder %s35, 1
      %p329 = por %p327, %p328
      %p331 = scmp.ne.s32.totalorder %s316, %s330
      %p332 = scmp.eq.s32.totalorder %s35, 0
      %p333 = por %p331, %p332
      %s335 = sadd.s32 %s334, 1
      %p338 = scmp.eq.s32.totalorder %s29, 1
      %p339 = scmp.ne.s32.totalorder %s334, %s336
      %p340 = scmp.eq.s32.totalorder %s29, 0
      %p341 = por %p339, %p340
      %p342 = scmp.ne.s32.totalorder %s334, %s336
      %p343 = scmp.eq.s32.totalorder %s34, 1
      %p344 = por %p342, %p343
      %p345 = scmp.ne.s32.totalorder %s336, %s337
      %p346 = scmp.eq.s32.totalorder %s34, 0
      %p347 = por %p345, %p346
      %p348 = scmp.ne.s32.totalorder %s336, %s337
      %p349 = scmp.eq.s32.totalorder %s35, 1
      %p350 = por %p348, %p349
      %p352 = scmp.ne.s32.totalorder %s337, %s351
      %p353 = scmp.eq.s32.totalorder %s35, 0
      %p354 = por %p352, %p353
      %s356 = sadd.s32 %s355, 1
      %p359 = scmp.eq.s32.totalorder %s29, 1
      %p360 = scmp.ne.s32.totalorder %s355, %s357
      %p361 = scmp.eq.s32.totalorder %s29, 0
      %p362 = por %p360, %p361
      %p363 = scmp.ne.s32.totalorder %s355, %s357
      %p364 = scmp.eq.s32.totalorder %s34, 1
      %p365 = por %p363, %p364
      %p366 = scmp.ne.s32.totalorder %s357, %s358
      %p367 = scmp.eq.s32.totalorder %s34, 0
      %p368 = por %p366, %p367
      %p369 = scmp.ne.s32.totalorder %s357, %s358
      %p370 = scmp.eq.s32.totalorder %s35, 1
      %p371 = por %p369, %p370
      %p373 = scmp.ne.s32.totalorder %s358, %s372
      %p374 = scmp.eq.s32.totalorder %s35, 0
      %p375 = por %p373, %p374
      %s377 = sadd.s32 %s376, 1
      %p380 = scmp.eq.s32.totalorder %s29, 1
      %p381 = scmp.ne.s32.totalorder %s376, %s378
      %p382 = scmp.eq.s32.totalorder %s29, 0
      %p383 = por %p381, %p382
      %p384 = scmp.ne.s32.totalorder %s376, %s378
      %p385 = scmp.eq.s32.totalorder %s34, 1
      %p386 = por %p384, %p385
      %p387 = scmp.ne.s32.totalorder %s378, %s379
      %p388 = scmp.eq.s32.totalorder %s34, 0
      %p389 = por %p387, %p388
      %p390 = scmp.ne.s32.totalorder %s378, %s379
      %p391 = scmp.eq.s32.totalorder %s35, 1
      %p392 = por %p390, %p391
      %p394 = scmp.ne.s32.totalorder %s379, %s393
      %p395 = scmp.eq.s32.totalorder %s35, 0
      %p396 = por %p394, %p395
      %s397 = ssub.s32 %s36, %s48
      %s398 = ssub.s32 %s37, %s44
      %s399 = sor.u32 %s397, %s398
      %p400 = scmp.eq.s32.totalorder %s399, 0
      %s402 = sadd.s32 %s401, 1
      %s403 = scalar_select %p400, %s401, %s402
      %p406 = pneg %p400
      %p407 = scmp.eq.s32.totalorder %s29, 1
      %p408 = por %p406, %p407
      %p409 = scmp.ne.s32.totalorder %s401, %s404
      %p410 = scmp.eq.s32.totalorder %s29, 0
      %p411 = por %p409, %p410
      %p412 = scmp.ne.s32.totalorder %s401, %s404
      %p413 = scmp.eq.s32.totalorder %s34, 1
      %p414 = por %p412, %p413
      %p415 = scmp.ne.s32.totalorder %s404, %s405
      %p416 = scmp.eq.s32.totalorder %s34, 0
      %p417 = por %p415, %p416
      %p418 = scmp.ne.s32.totalorder %s404, %s405
      %p419 = scmp.eq.s32.totalorder %s35, 1
      %p420 = por %p418, %p419
      %p422 = scmp.ne.s32.totalorder %s405, %s421
      %p423 = scmp.eq.s32.totalorder %s35, 0
      %p424 = por %p422, %p423
      %p425 = scmp.le.s32.totalorder 1, %s29
      %p426 = scmp.lt.s32.totalorder %s29, 3
      %p427 = pnand %p425, %p426
      %p428 = pneg %p427
      // Predicated region
      $region9: #{tpu_custom_call.1} parent=5 // pred_check
        _
      $region10: #{tpu_custom_call.1} parent=5 // pred_check_branch
        %430 = sbr.rel (%p427) target = $region12
      $region11: #{tpu_custom_call.1} parent=5 // pred_region
        %s431 = ssub.s32 %s29, 1
        // Predicated region
        $region13: #{tpu_custom_call.1} parent=11 // pred_check
          %p432 = pneg %p116
        $region14: #{tpu_custom_call.1} parent=11 // pred_check_branch
          %434 = sbr.rel (%p432) target = $region16
        $region15: #{tpu_custom_call.1} parent=11 // pred_region
          _
        $region16: #{tpu_custom_call.1} parent=11 // pred_fallthru
          _
        // Predicated region
        $region17: #{tpu_custom_call.1} parent=11 // pred_check
          %p435 = pneg %p137
        $region18: #{tpu_custom_call.1} parent=11 // pred_check_branch
          %437 = sbr.rel (%p435) target = $region20
        $region19: #{tpu_custom_call.1} parent=11 // pred_region
          _
        $region20: #{tpu_custom_call.1} parent=11 // pred_fallthru
          _
        // Predicated region
        $region21: #{tpu_custom_call.1} parent=11 // pred_check
          %p438 = pneg %p158
        $region22: #{tpu_custom_call.1} parent=11 // pred_check_branch
          %440 = sbr.rel (%p438) target = $region24
        $region23: #{tpu_custom_call.1} parent=11 // pred_region
          _
        $region24: #{tpu_custom_call.1} parent=11 // pred_fallthru
          _
        // Predicated region
        $region25: #{tpu_custom_call.1} parent=11 // pred_check
          %p441 = pneg %p179
        $region26: #{tpu_custom_call.1} parent=11 // pred_check_branch
          %443 = sbr.rel (%p441) target = $region28
        $region27: #{tpu_custom_call.1} parent=11 // pred_region
          _
        $region28: #{tpu_custom_call.1} parent=11 // pred_fallthru
          _
        // Predicated region
        $region29: #{tpu_custom_call.1} parent=11 // pred_check
          %p444 = pneg %p200
        $region30: #{tpu_custom_call.1} parent=11 // pred_check_branch
          %446 = sbr.rel (%p444) target = $region32
        $region31: #{tpu_custom_call.1} parent=11 // pred_region
          %448 = vsyncadd [#allocation11], 0
          %s449 = sshll.u32 %s6, 4
          %s450 = int_to_ptr.hbm [resolvable:$true] %s449
          %s451 = sshll.u32 [#allocation10], 4
          %s452 = int_to_ptr.vmem [resolvable:$true] %s451
          %457 = dma.hbm_to_vmem [thread:$0]  %s450, 256, %s452, [#allocation11], 64, 64, 4
        $region32: #{tpu_custom_call.1} parent=11 // pred_fallthru
          _
        // Predicated region
        $region33: #{tpu_custom_call.1} parent=11 // pred_check
          %p458 = pneg %p221
        $region34: #{tpu_custom_call.1} parent=11 // pred_check_branch
          %460 = sbr.rel (%p458) target = $region36
        $region35: #{tpu_custom_call.1} parent=11 // pred_region
          _
        $region36: #{tpu_custom_call.1} parent=11 // pred_fallthru
          _
        // Predicated region
        $region37: #{tpu_custom_call.1} parent=11 // pred_check
          %p461 = pneg %p242
        $region38: #{tpu_custom_call.1} parent=11 // pred_check_branch
          %463 = sbr.rel (%p461) target = $region40
        $region39: #{tpu_custom_call.1} parent=11 // pred_region
          _
        $region40: #{tpu_custom_call.1} parent=11 // pred_fallthru
          _
        // Predicated region
        $region41: #{tpu_custom_call.1} parent=11 // pred_check
          %p464 = pneg %p263
        $region42: #{tpu_custom_call.1} parent=11 // pred_check_branch
          %466 = sbr.rel (%p464) target = $region44
        $region43: #{tpu_custom_call.1} parent=11 // pred_region
          _
        $region44: #{tpu_custom_call.1} parent=11 // pred_fallthru
          _
        // Predicated region
        $region45: #{tpu_custom_call.1} parent=11 // pred_check
          %p467 = pneg %p284
        $region46: #{tpu_custom_call.1} parent=11 // pred_check_branch
          %469 = sbr.rel (%p467) target = $region48
        $region47: #{tpu_custom_call.1} parent=11 // pred_region
          %471 = vsyncadd [#allocation11], 0
          %s472 = sshll.u32 %s10, 4
          %s473 = int_to_ptr.hbm [resolvable:$true] %s472
          %s474 = sshll.u32 [#allocation12], 4
          %s475 = int_to_ptr.vmem [resolvable:$true] %s474
          %480 = dma.hbm_to_vmem [thread:$0]  %s473, 256, %s475, [#allocation11], 64, 64, 4
        $region48: #{tpu_custom_call.1} parent=11 // pred_fallthru
          _
        // Predicated region
        $region49: #{tpu_custom_call.1} parent=11 // pred_check
          %p481 = pneg %p305
        $region50: #{tpu_custom_call.1} parent=11 // pred_check_branch
          %483 = sbr.rel (%p481) target = $region52
        $region51: #{tpu_custom_call.1} parent=11 // pred_region
          _
        $region52: #{tpu_custom_call.1} parent=11 // pred_fallthru
          _
        // Predicated region
        $region53: #{tpu_custom_call.1} parent=11 // pred_check
          %p484 = pneg %p326
        $region54: #{tpu_custom_call.1} parent=11 // pred_check_branch
          %486 = sbr.rel (%p484) target = $region56
        $region55: #{tpu_custom_call.1} parent=11 // pred_region
          _
        $region56: #{tpu_custom_call.1} parent=11 // pred_fallthru
          _
        // Predicated region
        $region57: #{tpu_custom_call.1} parent=11 // pred_check
          %p487 = pneg %p347
        $region58: #{tpu_custom_call.1} parent=11 // pred_check_branch
          %489 = sbr.rel (%p487) target = $region60
        $region59: #{tpu_custom_call.1} parent=11 // pred_region
          _
        $region60: #{tpu_custom_call.1} parent=11 // pred_fallthru
          _
        // Predicated region
        $region61: #{tpu_custom_call.1} parent=11 // pred_check
          %p490 = pneg %p368
        $region62: #{tpu_custom_call.1} parent=11 // pred_check_branch
          %492 = sbr.rel (%p490) target = $region64
        $region63: #{tpu_custom_call.1} parent=11 // pred_region
          _
        $region64: #{tpu_custom_call.1} parent=11 // pred_fallthru
          _
        // Predicated region
        $region65: #{tpu_custom_call.1} parent=11 // pred_check
          %p493 = pneg %p389
        $region66: #{tpu_custom_call.1} parent=11 // pred_check_branch
          %495 = sbr.rel (%p493) target = $region68
        $region67: #{tpu_custom_call.1} parent=11 // pred_region
          _
        $region68: #{tpu_custom_call.1} parent=11 // pred_fallthru
          _
      $region12: #{tpu_custom_call.1} parent=5 // pred_fallthru
        _
      %p496 = scmp.lt.s32.totalorder %s29, 2
      // Predicated region
      $region69: #{tpu_custom_call.1} parent=5 // pred_check
        %p497 = pneg %p496
      $region70: #{tpu_custom_call.1} parent=5 // pred_check_branch
        %499 = sbr.rel (%p497) target = $region72
      $region71: #{tpu_custom_call.1} parent=5 // pred_region
        // Predicated region
        $region73: #{tpu_custom_call.1} parent=71 // pred_check
          %p500 = pneg %p63
        $region74: #{tpu_custom_call.1} parent=71 // pred_check_branch
          %502 = sbr.rel (%p500) target = $region76
        $region75: #{tpu_custom_call.1} parent=71 // pred_region
          %p503 = scmp.lt.s32.totalorder %s36, 1
          %s504 = scalar_select %p503, %s36, 1
          %p505 = scmp.lt.s32.totalorder %s37, 0
          %s506 = scalar_select %p505, %s37, 0
          %s507 = sadd.s32 %s506, %s504
          %s508 = smul.addr %s507, 8
          %s509 = scalar_lea.vmem %s0, %s508
        $region76: #{tpu_custom_call.1} parent=71 // pred_fallthru
          _
        // Predicated region
        $region77: #{tpu_custom_call.1} parent=71 // pred_check
          %p510 = pneg %p89
        $region78: #{tpu_custom_call.1} parent=71 // pred_check_branch
          %512 = sbr.rel (%p510) target = $region80
        $region79: #{tpu_custom_call.1} parent=71 // pred_region
          %s513 = sand.u32 %s79, 1
          %s514 = scalar_lea.sflag [#allocation8], %s513
          %s515 = sand.u32 %s79, 1
          %s516 = smul.addr %s515, 4
          %s517 = scalar_lea.vmem [#allocation7], %s516
          %519 = vsyncadd %s514, 0
          %s520 = smul.addr %s36, 4
          %s521 = scalar_lea.hbm %s1, %s520
          %s523 = sshll.u32 %s521, 4
          %s524 = int_to_ptr.hbm [resolvable:$true] %s523
          %s525 = sshll.u32 %s517, 4
          %s526 = int_to_ptr.vmem [resolvable:$true] %s525
          %528 = dma.hbm_to_vmem [thread:$0]  %s524, 64, %s526, %s514
        $region80: #{tpu_custom_call.1} parent=71 // pred_fallthru
          _
      $region72: #{tpu_custom_call.1} parent=5 // pred_fallthru
        _
      %p529 = scmp.le.s32.totalorder 1, %s29
      %p530 = scmp.lt.s32.totalorder %s29, 3
      %p531 = pnand %p529, %p530
      %p532 = pneg %p531
      // Predicated region
      $region81: #{tpu_custom_call.1} parent=5 // pred_check
        _
      $region82: #{tpu_custom_call.1} parent=5 // pred_check_branch
        %534 = sbr.rel (%p531) target = $region84
      $region83: #{tpu_custom_call.1} parent=5 // pred_region
        %s535 = ssub.s32 %s29, 1
        %s536 = sand.u32 %s82, 1
        %s537 = scalar_lea.sflag [#allocation8], %s536
        %s538 = sand.u32 %s82, 1
        %s539 = smul.addr %s538, 4
        %s540 = scalar_lea.vmem [#allocation7], %s539
        // Predicated region
        $region85: #{tpu_custom_call.1} parent=83 // pred_check
          %p541 = pneg %p95
        $region86: #{tpu_custom_call.1} parent=83 // pred_check_branch
          %543 = sbr.rel (%p541) target = $region88
        $region87: #{tpu_custom_call.1} parent=83 // pred_region
          %545 = dma.done %s537, 64
        $region88: #{tpu_custom_call.1} parent=83 // pred_fallthru
          _
        // Predicated region
        $region89: #{tpu_custom_call.1} parent=83 // pred_check
          %p546 = pneg %p200
        $region90: #{tpu_custom_call.1} parent=83 // pred_check_branch
          %548 = sbr.rel (%p546) target = $region92
        $region91: #{tpu_custom_call.1} parent=83 // pred_region
          %550 = dma.done [#allocation11], 256
        $region92: #{tpu_custom_call.1} parent=83 // pred_fallthru
          _
        // Predicated region
        $region93: #{tpu_custom_call.1} parent=83 // pred_check
          %p551 = pneg %p284
        $region94: #{tpu_custom_call.1} parent=83 // pred_check_branch
          %553 = sbr.rel (%p551) target = $region96
        $region95: #{tpu_custom_call.1} parent=83 // pred_region
          %555 = dma.done [#allocation11], 256
        $region96: #{tpu_custom_call.1} parent=83 // pred_fallthru
          _
        %p556 = scmp.lt.s32.totalorder %s38, 1
        %s557 = scalar_select %p556, %s38, 1
        %p558 = scmp.lt.s32.totalorder %s39, 0
        %s559 = scalar_select %p558, %s39, 0
        %s560 = sadd.s32 %s559, %s557
        %s561 = smul.addr %s560, 8
        %s562 = scalar_lea.vmem %s0, %s561
        %p563 = pneg %p69
        %p564 = pneg %p66
        %s565 = sand.u32 %s82, 1
        %s566 = scalar_lea.sflag [#allocation8], %s565
        %s567 = sand.u32 %s82, 1
        %s568 = smul.addr %s567, 4
        %s569 = scalar_lea.vmem [#allocation7], %s568
        %p570 = pneg %p95
        %p571 = pneg %p92
        %p572 = pneg %p116
        %p573 = pneg %p113
        %p574 = pneg %p137
        %p575 = pneg %p134
        %p576 = pneg %p158
        %p577 = pneg %p155
        %p578 = pneg %p179
        %p579 = pneg %p176
        %p580 = pneg %p200
        %p581 = pneg %p197
        %p582 = pneg %p221
        %p583 = pneg %p218
        %p584 = pneg %p242
        %p585 = pneg %p239
        %p586 = pneg %p263
        %p587 = pneg %p260
        %p588 = pneg %p284
        %p589 = pneg %p281
        %p590 = pneg %p305
        %p591 = pneg %p302
        %p592 = pneg %p326
        %p593 = pneg %p323
        %p594 = pneg %p347
        %p595 = pneg %p344
        %p596 = pneg %p368
        %p597 = pneg %p365
        %p598 = pneg %p389
        %p599 = pneg %p386
        %p600 = pneg %p417
        %p601 = pneg %p414
        %s602 = sand.u32 %s404, 1
        %s603 = scalar_lea.sflag [#allocation9], %s602
        %s604 = sand.u32 %s404, 1
        %s605 = smul.addr %s604, 8
        %s606 = scalar_lea.vmem [#allocation13], %s605
        %p607 = scmp.lt.s32.totalorder %s38, 1
        %s608 = scalar_select %p607, %s38, 1
        %p609 = scmp.lt.s32.totalorder %s39, 0
        %s610 = scalar_select %p609, %s39, 0
        %s611 = sadd.s32 %s610, %s608
        %s612 = smul.addr %s611, 8
        %s613 = scalar_lea.vmem %s0, %s612
        %p615 = scmp.eq.s32.totalorder %s39, 0
        // Predicated region
        $region97: #{tpu_custom_call.1} parent=83 // pred_check
          %p616 = pneg %p615
        $region98: #{tpu_custom_call.1} parent=83 // pred_check_branch
          %618 = sbr.rel (%p616) target = $region100
        $region99: #{tpu_custom_call.1} parent=83 // pred_region
          %v619 = vld [vmem:[%s540] sm:$0xf]
          %v620 = vld [vmem:[%s4] sm:$0xf]
          %v621 = vld [vmem:[%s4 + $0x4] sm:$0xf]
          %v622 = vld [vmem:[%s4 + $0x8] sm:$0xf]
          %v623 = vld [vmem:[%s4 + $0xc] sm:$0xf]
          %v624 = vld [vmem:[%s5] sm:$0x1]
          %v626 = vperm.slane %v624, 0
          %v632 = vunpack.c.l.b16 %v620
          %v633 = vunpack.c.l.b16 %v621
          %v634 = vunpack.c.l.b16 %v622
          %v635 = vunpack.c.l.b16 %v623
          %v636 = vpack.c.b16 %v633, %v632
          %v637 = vpack.c.b16 %v635, %v634
          %vm640 = vcmask 261120
          %v642 = vsel %vm640, %v619, 0
          %644 = vmatpush.bf16.msra.mxu0 0
          %645 = vmatpush.bf16.msra.mxu0 0
          %646 = vmatpush.bf16.msra.mxu0 0
          %647 = vmatpush.bf16.msra.mxu0 0
          %648 = vmatpush.bf16.msra.mxu0 0
          %649 = vmatpush.bf16.msra.mxu0 0
          %650 = vmatpush.bf16.msra.mxu0 %v637
          %651 = vmatpush.bf16.msra.mxu0 %v636
          %652 = vmatmul.bf16.gmra.mxu0 %v642
          %v653 = vpop.f32.mrf.mxu0
          %v654 = vadd.f32 %v626, %v653
          %v655 = vpop.f32.mrf.mxu0
          %656 = vdwg.mxu0
          %658 = vrot.lane.b32.xlu0 %v654, 120
          %v659 = vpop.permute.xlu0 %658
          %661 = vrot.lane.b32.xlu0 %v654, 112
          %v662 = vpop.permute.xlu0 %661
          %664 = vrot.lane.b32.xlu0 %v654, 104
          %v665 = vpop.permute.xlu0 %664
          %v667 = vrot.slane %v662, 4
          %vm668 = vcmask 1047556
          %v669 = vsel %vm668, %v667, %v654
          %v670 = vrot.slane %v654, 4
          %v671 = vsel %vm668, %v662, %v670
          %v673 = vunpack.c.l.s4 1983009808
          %v674 = vunpack.c.0.s8 %v673
          %v675 = vperm.slane %v669, %v674
          %v677 = vunpack.c.l.s4 1983009808
          %v678 = vunpack.c.0.s8 %v677
          %v679 = vperm.slane %v671, %v678
          %v680 = vrot.slane %v665, 4
          %v681 = vsel %vm668, %v680, %v659
          %v682 = vrot.slane %v659, 4
          %v683 = vsel %vm668, %v665, %v682
          %v685 = vunpack.c.l.s4 1983009808
          %v686 = vunpack.c.0.s8 %v685
          %v687 = vperm.slane %v681, %v686
          %v689 = vunpack.c.l.s4 1983009808
          %v690 = vunpack.c.0.s8 %v689
          %v691 = vperm.slane %v683, %v690
          %v692 = vrot.slane %v687, 4
          %v693 = vsel %vm668, %v692, %v675
          %v694 = vrot.slane %v675, 4
          %v695 = vsel %vm668, %v687, %v694
          %v697 = vunpack.c.l.s4 1934713408
          %v698 = vunpack.c.0.s8 %v697
          %v699 = vperm.slane %v693, %v698
          %v701 = vunpack.c.l.s4 1934713408
          %v702 = vunpack.c.0.s8 %v701
          %v703 = vperm.slane %v695, %v702
          %v704 = vrot.slane %v691, 4
          %v705 = vsel %vm668, %v704, %v679
          %v706 = vrot.slane %v679, 4
          %v707 = vsel %vm668, %v691, %v706
          %v709 = vunpack.c.l.s4 1934713408
          %v710 = vunpack.c.0.s8 %v709
          %v711 = vperm.slane %v705, %v710
          %v713 = vunpack.c.l.s4 1934713408
          %v714 = vunpack.c.0.s8 %v713
          %v715 = vperm.slane %v707, %v714
          %v716 = vrot.slane %v699, 4
          %v717 = vsel %vm668, 0.0, %v716
          %v718 = vrot.slane %v703, 4
          %v719 = vsel %vm668, 0.0, %v718
          %v720 = vrot.slane %v711, 4
          %v721 = vsel %vm668, 0.0, %v720
          %v722 = vrot.slane %v715, 4
          %v723 = vsel %vm668, 0.0, %v722
          %724 = vrot.lane.b32.xlu0 %v654, 96
          %v725 = vpop.permute.xlu0 %724
          %726 = vrot.lane.b32.xlu0 %v659, 96
          %v727 = vpop.permute.xlu0 %726
          %728 = vrot.lane.b32.xlu0 %v662, 96
          %v729 = vpop.permute.xlu0 %728
          %730 = vrot.lane.b32.xlu0 %v665, 96
          %v731 = vpop.permute.xlu0 %730
          %v736 = vrot.slane %v729, 4
          %v737 = vsel %vm668, %v736, %v725
          %v738 = vrot.slane %v725, 4
          %v739 = vsel %vm668, %v729, %v738
          %v741 = vunpack.c.l.s4 1983009808
          %v742 = vunpack.c.0.s8 %v741
          %v743 = vperm.slane %v737, %v742
          %v745 = vunpack.c.l.s4 1983009808
          %v746 = vunpack.c.0.s8 %v745
          %v747 = vperm.slane %v739, %v746
          %v748 = vrot.slane %v731, 4
          %v749 = vsel %vm668, %v748, %v727
          %v750 = vrot.slane %v727, 4
          %v751 = vsel %vm668, %v731, %v750
          %v753 = vunpack.c.l.s4 1983009808
          %v754 = vunpack.c.0.s8 %v753
          %v755 = vperm.slane %v749, %v754
          %v757 = vunpack.c.l.s4 1983009808
          %v758 = vunpack.c.0.s8 %v757
          %v759 = vperm.slane %v751, %v758
          %v760 = vrot.slane %v755, 4
          %v761 = vsel %vm668, %v760, %v743
          %v762 = vrot.slane %v743, 4
          %v763 = vsel %vm668, %v755, %v762
          %v765 = vunpack.c.l.s4 1934713408
          %v766 = vunpack.c.0.s8 %v765
          %v767 = vperm.slane %v761, %v766
          %v769 = vunpack.c.l.s4 1934713408
          %v770 = vunpack.c.0.s8 %v769
          %v771 = vperm.slane %v763, %v770
          %v772 = vrot.slane %v759, 4
          %v773 = vsel %vm668, %v772, %v747
          %v774 = vrot.slane %v747, 4
          %v775 = vsel %vm668, %v759, %v774
          %v777 = vunpack.c.l.s4 1934713408
          %v778 = vunpack.c.0.s8 %v777
          %v779 = vperm.slane %v773, %v778
          %v781 = vunpack.c.l.s4 1934713408
          %v782 = vunpack.c.0.s8 %v781
          %v783 = vperm.slane %v775, %v782
          %v784 = vrot.slane %v767, 4
          %v785 = vsel %vm668, 0.0, %v784
          %v786 = vrot.slane %v771, 4
          %v787 = vsel %vm668, 0.0, %v786
          %v788 = vrot.slane %v779, 4
          %v789 = vsel %vm668, 0.0, %v788
          %v790 = vrot.slane %v783, 4
          %v791 = vsel %vm668, 0.0, %v790
          %v792 = vsel %vm668, %v718, %v699
          %v794 = vunpack.c.l.s4 1983009808
          %v795 = vunpack.c.0.s8 %v794
          %v796 = vperm.slane %v792, %v795
          %v797 = vrot.slane %v719, 4
          %v798 = vsel %vm668, %v797, %v717
          %v800 = vunpack.c.l.s4 1983009808
          %v801 = vunpack.c.0.s8 %v800
          %v802 = vperm.slane %v798, %v801
          %v803 = vsel %vm668, %v722, %v711
          %v805 = vunpack.c.l.s4 1983009808
          %v806 = vunpack.c.0.s8 %v805
          %v807 = vperm.slane %v803, %v806
          %v808 = vrot.slane %v723, 4
          %v809 = vsel %vm668, %v808, %v721
          %v811 = vunpack.c.l.s4 1983009808
          %v812 = vunpack.c.0.s8 %v811
          %v813 = vperm.slane %v809, %v812
          %v814 = vrot.slane %v802, 4
          %v815 = vsel %vm668, %v814, %v796
          %v816 = vrot.slane %v796, 4
          %v817 = vsel %vm668, %v802, %v816
          %v819 = vunpack.c.l.s4 1934713408
          %v820 = vunpack.c.0.s8 %v819
          %v821 = vperm.slane %v815, %v820
          %v823 = vunpack.c.l.s4 1934713408
          %v824 = vunpack.c.0.s8 %v823
          %v825 = vperm.slane %v817, %v824
          %v826 = vrot.slane %v813, 4
          %v827 = vsel %vm668, %v826, %v807
          %v828 = vrot.slane %v807, 4
          %v829 = vsel %vm668, %v813, %v828
          %v831 = vunpack.c.l.s4 1934713408
          %v832 = vunpack.c.0.s8 %v831
          %v833 = vperm.slane %v827, %v832
          %v835 = vunpack.c.l.s4 1934713408
          %v836 = vunpack.c.0.s8 %v835
          %v837 = vperm.slane %v829, %v836
          %v838 = vrot.slane %v833, 4
          %v839 = vsel %vm668, %v838, %v821
          %v840 = vrot.slane %v821, 4
          %v841 = vsel %vm668, %v833, %v840
          %v842 = vrot.slane %v837, 4
          %v843 = vsel %vm668, %v842, %v825
          %v844 = vrot.slane %v825, 4
          %v845 = vsel %vm668, %v837, %v844
          %v846 = vpack.c.bf16 %v839, %v839
          %v847 = vpack.c.bf16 %v841, %v841
          %v848 = vpack.c.bf16 %v843, %v843
          %v849 = vpack.c.bf16 %v845, %v845
          %vm850 = vcmask 60416
          %851 = vst.msk [vmem:[#allocation2] sm:$0xf] %vm850, %v846
          %852 = vst.msk [vmem:[#allocation2 + $0x4] sm:$0xf] %vm850, %v847
          %853 = vst.msk [vmem:[#allocation2 + $0x8] sm:$0xf] %vm850, %v848
          %854 = vst.msk [vmem:[#allocation2 + $0xc] sm:$0xf] %vm850, %v849
          %v855 = vsel %vm668, %v786, %v767
          %v857 = vunpack.c.l.s4 1983009808
          %v858 = vunpack.c.0.s8 %v857
          %v859 = vperm.slane %v855, %v858
          %v860 = vrot.slane %v787, 4
          %v861 = vsel %vm668, %v860, %v785
          %v863 = vunpack.c.l.s4 1983009808
          %v864 = vunpack.c.0.s8 %v863
          %v865 = vperm.slane %v861, %v864
          %v866 = vsel %vm668, %v790, %v779
          %v868 = vunpack.c.l.s4 1983009808
          %v869 = vunpack.c.0.s8 %v868
          %v870 = vperm.slane %v866, %v869
          %v871 = vrot.slane %v791, 4
          %v872 = vsel %vm668, %v871, %v789
          %v874 = vunpack.c.l.s4 1983009808
          %v875 = vunpack.c.0.s8 %v874
          %v876 = vperm.slane %v872, %v875
          %v877 = vrot.slane %v865, 4
          %v878 = vsel %vm668, %v877, %v859
          %v879 = vrot.slane %v859, 4
          %v880 = vsel %vm668, %v865, %v879
          %v882 = vunpack.c.l.s4 1934713408
          %v883 = vunpack.c.0.s8 %v882
          %v884 = vperm.slane %v878, %v883
          %v886 = vunpack.c.l.s4 1934713408
          %v887 = vunpack.c.0.s8 %v886
          %v888 = vperm.slane %v880, %v887
          %v889 = vrot.slane %v876, 4
          %v890 = vsel %vm668, %v889, %v870
          %v891 = vrot.slane %v870, 4
          %v892 = vsel %vm668, %v876, %v891
          %v894 = vunpack.c.l.s4 1934713408
          %v895 = vunpack.c.0.s8 %v894
          %v896 = vperm.slane %v890, %v895
          %v898 = vunpack.c.l.s4 1934713408
          %v899 = vunpack.c.0.s8 %v898
          %v900 = vperm.slane %v892, %v899
          %v901 = vrot.slane %v896, 4
          %v902 = vsel %vm668, %v901, %v884
          %v903 = vrot.slane %v884, 4
          %v904 = vsel %vm668, %v896, %v903
          %v905 = vrot.slane %v900, 4
          %v906 = vsel %vm668, %v905, %v888
          %v907 = vrot.slane %v888, 4
          %v908 = vsel %vm668, %v900, %v907
          %v909 = vpack.c.bf16 %v902, %v902
          %v910 = vpack.c.bf16 %v904, %v904
          %v911 = vpack.c.bf16 %v906, %v906
          %v912 = vpack.c.bf16 %v908, %v908
          %913 = vst.msk [vmem:[#allocation3] sm:$0xf] %vm850, %v909
          %914 = vst.msk [vmem:[#allocation3 + $0x4] sm:$0xf] %vm850, %v910
          %915 = vst.msk [vmem:[#allocation3 + $0x8] sm:$0xf] %vm850, %v911
          %916 = vst.msk [vmem:[#allocation3 + $0xc] sm:$0xf] %vm850, %v912
        $region100: #{tpu_custom_call.1} parent=83 // pred_fallthru
          _
        %v917 = vld [vmem:[%s613] sm:$0xff]
        %v918 = vpack.c.bf16 %v917, %v917
        %v919 = vld [vmem:[%s2] sm:$0xf]
        %v920 = vld [vmem:[%s2 + $0x4] sm:$0xf]
        %v921 = vld [vmem:[%s2 + $0x8] sm:$0xf]
        %v922 = vld [vmem:[%s2 + $0xc] sm:$0xf]
        %v923 = vld [vmem:[%s3] sm:$0x1]
        %v925 = vperm.slane %v923, 0
        %v931 = vunpack.c.l.b16 %v919
        %v932 = vunpack.c.l.b16 %v920
        %v933 = vunpack.c.l.b16 %v921
        %v934 = vunpack.c.l.b16 %v922
        %v935 = vpack.c.b16 %v932, %v931
        %v936 = vpack.c.b16 %v934, %v933
        %vm939 = vcmask 261120
        %v941 = vsel %vm939, %v918, 0
        %943 = vmatpush.bf16.msra.mxu0 0
        %944 = vmatpush.bf16.msra.mxu0 0
        %945 = vmatpush.bf16.msra.mxu0 0
        %946 = vmatpush.bf16.msra.mxu0 0
        %947 = vmatpush.bf16.msra.mxu0 0
        %948 = vmatpush.bf16.msra.mxu0 0
        %949 = vmatpush.bf16.msra.mxu0 %v936
        %950 = vmatpush.bf16.msra.mxu0 %v935
        %951 = vmatmul.bf16.gmra.mxu0 %v941
        %v952 = vpop.f32.mrf.mxu0
        %v953 = vadd.f32 %v925, %v952
        %v954 = vpop.f32.mrf.mxu0
        %955 = vdwg.mxu0
        %957 = vrot.lane.b32.xlu0 %v953, 120
        %v958 = vpop.permute.xlu0 %957
        %960 = vrot.lane.b32.xlu0 %v953, 112
        %v961 = vpop.permute.xlu0 %960
        %963 = vrot.lane.b32.xlu0 %v953, 104
        %v964 = vpop.permute.xlu0 %963
        %v966 = vrot.slane %v961, 4
        %vm967 = vcmask 1047556
        %v968 = vsel %vm967, %v966, %v953
        %v969 = vrot.slane %v953, 4
        %v970 = vsel %vm967, %v961, %v969
        %v972 = vunpack.c.l.s4 1983009808
        %v973 = vunpack.c.0.s8 %v972
        %v974 = vperm.slane %v968, %v973
        %v976 = vunpack.c.l.s4 1983009808
        %v977 = vunpack.c.0.s8 %v976
        %v978 = vperm.slane %v970, %v977
        %v979 = vrot.slane %v964, 4
        %v980 = vsel %vm967, %v979, %v958
        %v981 = vrot.slane %v958, 4
        %v982 = vsel %vm967, %v964, %v981
        %v984 = vunpack.c.l.s4 1983009808
        %v985 = vunpack.c.0.s8 %v984
        %v986 = vperm.slane %v980, %v985
        %v988 = vunpack.c.l.s4 1983009808
        %v989 = vunpack.c.0.s8 %v988
        %v990 = vperm.slane %v982, %v989
        %v991 = vrot.slane %v986, 4
        %v992 = vsel %vm967, %v991, %v974
        %v993 = vrot.slane %v974, 4
        %v994 = vsel %vm967, %v986, %v993
        %v996 = vunpack.c.l.s4 1934713408
        %v997 = vunpack.c.0.s8 %v996
        %v998 = vperm.slane %v992, %v997
        %v1000 = vunpack.c.l.s4 1934713408
        %v1001 = vunpack.c.0.s8 %v1000
        %v1002 = vperm.slane %v994, %v1001
        %v1003 = vrot.slane %v990, 4
        %v1004 = vsel %vm967, %v1003, %v978
        %v1005 = vrot.slane %v978, 4
        %v1006 = vsel %vm967, %v990, %v1005
        %v1008 = vunpack.c.l.s4 1934713408
        %v1009 = vunpack.c.0.s8 %v1008
        %v1010 = vperm.slane %v1004, %v1009
        %v1012 = vunpack.c.l.s4 1934713408
        %v1013 = vunpack.c.0.s8 %v1012
        %v1014 = vperm.slane %v1006, %v1013
        %v1015 = vrot.slane %v998, 4
        %v1016 = vsel %vm967, 0.0, %v1015
        %v1017 = vrot.slane %v1002, 4
        %v1018 = vsel %vm967, 0.0, %v1017
        %v1019 = vrot.slane %v1010, 4
        %v1020 = vsel %vm967, 0.0, %v1019
        %v1021 = vrot.slane %v1014, 4
        %v1022 = vsel %vm967, 0.0, %v1021
        %v1023 = vsel %vm967, %v1017, %v998
        %v1025 = vunpack.c.l.s4 1983009808
        %v1026 = vunpack.c.0.s8 %v1025
        %v1027 = vperm.slane %v1023, %v1026
        %v1028 = vrot.slane %v1018, 4
        %v1029 = vsel %vm967, %v1028, %v1016
        %v1031 = vunpack.c.l.s4 1983009808
        %v1032 = vunpack.c.0.s8 %v1031
        %v1033 = vperm.slane %v1029, %v1032
        %v1034 = vsel %vm967, %v1021, %v1010
        %v1036 = vunpack.c.l.s4 1983009808
        %v1037 = vunpack.c.0.s8 %v1036
        %v1038 = vperm.slane %v1034, %v1037
        %v1039 = vrot.slane %v1022, 4
        %v1040 = vsel %vm967, %v1039, %v1020
        %v1042 = vunpack.c.l.s4 1983009808
        %v1043 = vunpack.c.0.s8 %v1042
        %v1044 = vperm.slane %v1040, %v1043
        %v1045 = vrot.slane %v1033, 4
        %v1046 = vsel %vm967, %v1045, %v1027
        %v1047 = vrot.slane %v1027, 4
        %v1048 = vsel %vm967, %v1033, %v1047
        %v1050 = vunpack.c.l.s4 1934713408
        %v1051 = vunpack.c.0.s8 %v1050
        %v1052 = vperm.slane %v1046, %v1051
        %v1054 = vunpack.c.l.s4 1934713408
        %v1055 = vunpack.c.0.s8 %v1054
        %v1056 = vperm.slane %v1048, %v1055
        %v1057 = vrot.slane %v1044, 4
        %v1058 = vsel %vm967, %v1057, %v1038
        %v1059 = vrot.slane %v1038, 4
        %v1060 = vsel %vm967, %v1044, %v1059
        %v1062 = vunpack.c.l.s4 1934713408
        %v1063 = vunpack.c.0.s8 %v1062
        %v1064 = vperm.slane %v1058, %v1063
        %v1066 = vunpack.c.l.s4 1934713408
        %v1067 = vunpack.c.0.s8 %v1066
        %v1068 = vperm.slane %v1060, %v1067
        %v1069 = vrot.slane %v1064, 4
        %v1070 = vsel %vm967, %v1069, %v1052
        %v1071 = vrot.slane %v1052, 4
        %v1072 = vsel %vm967, %v1064, %v1071
        %v1073 = vrot.slane %v1068, 4
        %v1074 = vsel %vm967, %v1073, %v1056
        %v1075 = vrot.slane %v1056, 4
        %v1076 = vsel %vm967, %v1068, %v1075
        %v1077 = vpack.c.bf16 %v1070, %v1070
        %v1078 = vpack.c.bf16 %v1072, %v1072
        %v1079 = vpack.c.bf16 %v1074, %v1074
        %v1080 = vpack.c.bf16 %v1076, %v1076
        %vm1081 = vcmask 60416
        %1082 = vst.msk [vmem:[#allocation4] sm:$0xf] %vm1081, -inf
        %1083 = vst.msk [vmem:[#allocation5] sm:$0xf] %vm1081, 0.0
        %vm1084 = vcmask 64512
        %1085 = vst.msk [vmem:[#allocation6] sm:$0xff] %vm1084, 0.0
        %1086 = vst.msk [vmem:[#allocation6 + $0x8] sm:$0xff] %vm1084, 0.0
        %1087 = vst.msk [vmem:[#allocation6 + $0x10] sm:$0xff] %vm1084, 0.0
        %1088 = vst.msk [vmem:[#allocation6 + $0x18] sm:$0xff] %vm1084, 0.0
        %v1089 = vld [vmem:[#allocation2] sm:$0xf]
        %v1090 = vld [vmem:[#allocation2 + $0x4] sm:$0xf]
        %v1091 = vld [vmem:[#allocation2 + $0x8] sm:$0xf]
        %v1092 = vld [vmem:[#allocation2 + $0xc] sm:$0xf]
        %v1093 = vld [vmem:[#allocation3] sm:$0xf]
        %v1094 = vld [vmem:[#allocation3 + $0x4] sm:$0xf]
        %v1095 = vld [vmem:[#allocation3 + $0x8] sm:$0xf]
        %v1096 = vld [vmem:[#allocation3 + $0xc] sm:$0xf]
        %v1098 = vsel %vm1084, %v1077, 0
        %v1101 = vsel %vm1084, %v1089, 0
        %1103 = vmatpush.bf16.xpose.msra.mxu0 0
        %1104 = vmatpush.bf16.xpose.msra.mxu0 0
        %1105 = vmatpush.bf16.xpose.msra.mxu0 0
        %1106 = vmatpush.bf16.xpose.msra.mxu0 0
        %1107 = vmatpush.bf16.xpose.msra.mxu0 0
        %1108 = vmatpush.bf16.xpose.msra.mxu0 0
        %1109 = vmatpush.bf16.xpose.msra.mxu0 0
        %1110 = vmatpush.bf16.xpose.msra.mxu0 %v1101
        %1111 = vmatmul.bf16.gmra.mxu0 %v1098
        %v1112 = vpop.f32.mrf.mxu0
        %v1113 = vadd.f32 0.0, %v1112
        %v1114 = vpop.f32.mrf.mxu0
        %1115 = vdwg.mxu0
        %v1117 = vsel %vm1084, %v1078, 0
        %v1120 = vsel %vm1084, %v1090, 0
        %1122 = vmatpush.bf16.xpose.msra.mxu0 0
        %1123 = vmatpush.bf16.xpose.msra.mxu0 0
        %1124 = vmatpush.bf16.xpose.msra.mxu0 0
        %1125 = vmatpush.bf16.xpose.msra.mxu0 0
        %1126 = vmatpush.bf16.xpose.msra.mxu0 0
        %1127 = vmatpush.bf16.xpose.msra.mxu0 0
        %1128 = vmatpush.bf16.xpose.msra.mxu0 0
        %1129 = vmatpush.bf16.xpose.msra.mxu0 %v1120
        %1130 = vmatmul.bf16.gmra.mxu0 %v1117
        %v1131 = vpop.f32.mrf.mxu0
        %v1132 = vadd.f32 0.0, %v1131
        %v1133 = vpop.f32.mrf.mxu0
        %1134 = vdwg.mxu0
        %v1136 = vsel %vm1084, %v1079, 0
        %v1139 = vsel %vm1084, %v1091, 0
        %1141 = vmatpush.bf16.xpose.msra.mxu0 0
        %1142 = vmatpush.bf16.xpose.msra.mxu0 0
        %1143 = vmatpush.bf16.xpose.msra.mxu0 0
        %1144 = vmatpush.bf16.xpose.msra.mxu0 0
        %1145 = vmatpush.bf16.xpose.msra.mxu0 0
        %1146 = vmatpush.bf16.xpose.msra.mxu0 0
        %1147 = vmatpush.bf16.xpose.msra.mxu0 0
        %1148 = vmatpush.bf16.xpose.msra.mxu0 %v1139
        %1149 = vmatmul.bf16.gmra.mxu0 %v1136
        %v1150 = vpop.f32.mrf.mxu0
        %v1151 = vadd.f32 0.0, %v1150
        %v1152 = vpop.f32.mrf.mxu0
        %1153 = vdwg.mxu0
        %v1155 = vsel %vm1084, %v1080, 0
        %v1158 = vsel %vm1084, %v1092, 0
        %1160 = vmatpush.bf16.xpose.msra.mxu0 0
        %1161 = vmatpush.bf16.xpose.msra.mxu0 0
        %1162 = vmatpush.bf16.xpose.msra.mxu0 0
        %1163 = vmatpush.bf16.xpose.msra.mxu0 0
        %1164 = vmatpush.bf16.xpose.msra.mxu0 0
        %1165 = vmatpush.bf16.xpose.msra.mxu0 0
        %1166 = vmatpush.bf16.xpose.msra.mxu0 0
        %1167 = vmatpush.bf16.xpose.msra.mxu0 %v1158
        %1168 = vmatmul.bf16.gmra.mxu0 %v1155
        %v1169 = vpop.f32.mrf.mxu0
        %v1170 = vadd.f32 0.0, %v1169
        %v1171 = vpop.f32.mrf.mxu0
        %1172 = vdwg.mxu0
        %v1173 = vmul.f32 %v1113, 0.35355338
        %v1174 = vmul.f32 %v1132, 0.35355338
        %v1175 = vmul.f32 %v1151, 0.35355338
        %v1176 = vmul.f32 %v1170, 0.35355338
        %v1177 = vld [vmem:[#allocation4] sm:$0xf]
        %v1178 = vsel %vm1084, %v1173, -inf
        %1179 = vmax.xlane.f32.xlu0 %v1178
        %v1180 = vpop.xlane.xlu0 %1179
        %v1181 = vsel %vm1084, %v1174, -inf
        %1182 = vmax.xlane.f32.xlu0 %v1181
        %v1183 = vpop.xlane.xlu0 %1182
        %v1184 = vsel %vm1084, %v1175, -inf
        %1185 = vmax.xlane.f32.xlu0 %v1184
        %v1186 = vpop.xlane.xlu0 %1185
        %v1187 = vsel %vm1084, %v1176, -inf
        %1188 = vmax.xlane.f32.xlu0 %v1187
        %v1189 = vpop.xlane.xlu0 %1188
        %v1194 = vlaneseq
        %v1195 = vand.u32 %v1194, 127
        %v1196 = vperm.slane %v1180, %v1195
        %v1197 = vperm.slane %v1183, %v1195
        %v1198 = vperm.slane %v1186, %v1195
        %v1199 = vperm.slane %v1189, %v1195
        %vm1200 = vcmask 1041409
        %v1201 = vsel %vm1200, %v1197, %v1196
        %vm1202 = vcmask 1042434
        %v1203 = vsel %vm1202, %v1198, %v1201
        %vm1204 = vcmask 1043459
        %v1205 = vsel %vm1204, %v1199, %v1203
        %v1207 = vmax.f32 %v1177, %v1205
        %v1208 = vsub.f32 %v1177, %v1207
        %v1209 = vmul.f32 %v1208, 1.442695
        %v1210 = vpow.pop %v1209
        %v1211 = vperm.slane %v1207, 0
        %v1212 = vlaneseq
        %v1213 = vshrl.u32 %v1212, 7
        %1215 = vset.pattern.permute.xlu0 %v1213
        %1216 = vperm.xlu0 %1215, %v1211
        %v1217 = vpop.permute.xlu0 %1216
        %v1218 = vperm.slane %v1207, 1
        %v1219 = vlaneseq
        %v1220 = vshrl.u32 %v1219, 7
        %1222 = vset.pattern.permute.xlu0 %v1220
        %1223 = vperm.xlu0 %1222, %v1218
        %v1224 = vpop.permute.xlu0 %1223
        %v1225 = vperm.slane %v1207, 2
        %v1226 = vlaneseq
        %v1227 = vshrl.u32 %v1226, 7
        %1229 = vset.pattern.permute.xlu0 %v1227
        %1230 = vperm.xlu0 %1229, %v1225
        %v1231 = vpop.permute.xlu0 %1230
        %v1232 = vperm.slane %v1207, 3
        %v1233 = vlaneseq
        %v1234 = vshrl.u32 %v1233, 7
        %1236 = vset.pattern.permute.xlu0 %v1234
        %1237 = vperm.xlu0 %1236, %v1232
        %v1238 = vpop.permute.xlu0 %1237
        %v1239 = vsub.f32 %v1173, %v1217
        %v1240 = vsub.f32 %v1174, %v1224
        %v1241 = vsub.f32 %v1175, %v1231
        %v1242 = vsub.f32 %v1176, %v1238
        %v1243 = vmul.f32 %v1239, 1.442695
        %v1244 = vpow.pop %v1243
        %v1245 = vmul.f32 %v1240, 1.442695
        %v1246 = vpow.pop %v1245
        %v1247 = vmul.f32 %v1241, 1.442695
        %v1248 = vpow.pop %v1247
        %v1249 = vmul.f32 %v1242, 1.442695
        %v1250 = vpow.pop %v1249
        %v1251 = vld [vmem:[#allocation5] sm:$0xf]
        %v1252 = vmul.f32 %v1210, %v1251
        %v1253 = vsel %vm1084, %v1244, 0.0
        %1254 = vadd.xlane.f32.xlu0 %v1253
        %v1255 = vpop.xlane.xlu0 %1254
        %v1256 = vsel %vm1084, %v1246, 0.0
        %1257 = vadd.xlane.f32.xlu0 %v1256
        %v1258 = vpop.xlane.xlu0 %1257
        %v1259 = vsel %vm1084, %v1248, 0.0
        %1260 = vadd.xlane.f32.xlu0 %v1259
        %v1261 = vpop.xlane.xlu0 %1260
        %v1262 = vsel %vm1084, %v1250, 0.0
        %1263 = vadd.xlane.f32.xlu0 %v1262
        %v1264 = vpop.xlane.xlu0 %1263
        %v1269 = vperm.slane %v1255, %v1195
        %v1270 = vperm.slane %v1258, %v1195
        %v1271 = vperm.slane %v1261, %v1195
        %v1272 = vperm.slane %v1264, %v1195
        %v1273 = vsel %vm1200, %v1270, %v1269
        %v1274 = vsel %vm1202, %v1271, %v1273
        %v1275 = vsel %vm1204, %v1272, %v1274
        %v1277 = vadd.f32 %v1252, %v1275
        %1278 = vst.msk [vmem:[#allocation5] sm:$0xf] %vm1081, %v1277
        %v1279 = vperm.slane %v1210, 0
        %v1280 = vlaneseq
        %v1281 = vshrl.u32 %v1280, 7
        %1283 = vset.pattern.permute.xlu0 %v1281
        %1284 = vperm.xlu0 %1283, %v1279
        %v1285 = vpop.permute.xlu0 %1284
        %v1286 = vperm.slane %v1210, 1
        %v1287 = vlaneseq
        %v1288 = vshrl.u32 %v1287, 7
        %1290 = vset.pattern.permute.xlu0 %v1288
        %1291 = vperm.xlu0 %1290, %v1286
        %v1292 = vpop.permute.xlu0 %1291
        %v1293 = vperm.slane %v1210, 2
        %v1294 = vlaneseq
        %v1295 = vshrl.u32 %v1294, 7
        %1297 = vset.pattern.permute.xlu0 %v1295
        %1298 = vperm.xlu0 %1297, %v1293
        %v1299 = vpop.permute.xlu0 %1298
        %v1300 = vperm.slane %v1210, 3
        %v1301 = vlaneseq
        %v1302 = vshrl.u32 %v1301, 7
        %1304 = vset.pattern.permute.xlu0 %v1302
        %1305 = vperm.xlu0 %1304, %v1300
        %v1306 = vpop.permute.xlu0 %1305
        %v1307 = vld [vmem:[#allocation6] sm:$0xff]
        %v1308 = vld [vmem:[#allocation6 + $0x8] sm:$0xff]
        %v1309 = vld [vmem:[#allocation6 + $0x10] sm:$0xff]
        %v1310 = vld [vmem:[#allocation6 + $0x18] sm:$0xff]
        %v1311 = vmul.f32 %v1285, %v1307
        %v1312 = vmul.f32 %v1292, %v1308
        %v1313 = vmul.f32 %v1299, %v1309
        %v1314 = vmul.f32 %v1306, %v1310
        %v1315 = vpack.c.bf16 %v1244, %v1244
        %v1316 = vpack.c.bf16 %v1246, %v1246
        %v1317 = vpack.c.bf16 %v1248, %v1248
        %v1318 = vpack.c.bf16 %v1250, %v1250
        %v1320 = vsel %vm1084, %v1315, 0
        %vm1322 = vcmask 1043456
        %v1324 = vsel %vm1322, %v1093, 0
        %1326 = vmatpush.bf16.msra.mxu0 0
        %1327 = vmatpush.bf16.msra.mxu0 0
        %1328 = vmatpush.bf16.msra.mxu0 0
        %1329 = vmatpush.bf16.msra.mxu0 0
        %1330 = vmatpush.bf16.msra.mxu0 0
        %1331 = vmatpush.bf16.msra.mxu0 0
        %1332 = vmatpush.bf16.msra.mxu0 0
        %1333 = vmatpush.bf16.msra.mxu0 %v1324
        %1334 = vmatmul.bf16.gmra.mxu0 %v1320
        %v1335 = vpop.f32.mrf.mxu0
        %v1336 = vadd.f32 0.0, %v1335
        %v1337 = vpop.f32.mrf.mxu0
        %1338 = vdwg.mxu0
        %v1340 = vsel %vm1084, %v1316, 0
        %v1343 = vsel %vm1322, %v1094, 0
        %1345 = vmatpush.bf16.msra.mxu0 0
        %1346 = vmatpush.bf16.msra.mxu0 0
        %1347 = vmatpush.bf16.msra.mxu0 0
        %1348 = vmatpush.bf16.msra.mxu0 0
        %1349 = vmatpush.bf16.msra.mxu0 0
        %1350 = vmatpush.bf16.msra.mxu0 0
        %1351 = vmatpush.bf16.msra.mxu0 0
        %1352 = vmatpush.bf16.msra.mxu0 %v1343
        %1353 = vmatmul.bf16.gmra.mxu0 %v1340
        %v1354 = vpop.f32.mrf.mxu0
        %v1355 = vadd.f32 0.0, %v1354
        %v1356 = vpop.f32.mrf.mxu0
        %1357 = vdwg.mxu0
        %v1359 = vsel %vm1084, %v1317, 0
        %v1362 = vsel %vm1322, %v1095, 0
        %1364 = vmatpush.bf16.msra.mxu0 0
        %1365 = vmatpush.bf16.msra.mxu0 0
        %1366 = vmatpush.bf16.msra.mxu0 0
        %1367 = vmatpush.bf16.msra.mxu0 0
        %1368 = vmatpush.bf16.msra.mxu0 0
        %1369 = vmatpush.bf16.msra.mxu0 0
        %1370 = vmatpush.bf16.msra.mxu0 0
        %1371 = vmatpush.bf16.msra.mxu0 %v1362
        %1372 = vmatmul.bf16.gmra.mxu0 %v1359
        %v1373 = vpop.f32.mrf.mxu0
        %v1374 = vadd.f32 0.0, %v1373
        %v1375 = vpop.f32.mrf.mxu0
        %1376 = vdwg.mxu0
        %v1378 = vsel %vm1084, %v1318, 0
        %v1381 = vsel %vm1322, %v1096, 0
        %1383 = vmatpush.bf16.msra.mxu0 0
        %1384 = vmatpush.bf16.msra.mxu0 0
        %1385 = vmatpush.bf16.msra.mxu0 0
        %1386 = vmatpush.bf16.msra.mxu0 0
        %1387 = vmatpush.bf16.msra.mxu0 0
        %1388 = vmatpush.bf16.msra.mxu0 0
        %1389 = vmatpush.bf16.msra.mxu0 0
        %1390 = vmatpush.bf16.msra.mxu0 %v1381
        %1391 = vmatmul.bf16.gmra.mxu0 %v1378
        %v1392 = vpop.f32.mrf.mxu0
        %v1393 = vadd.f32 0.0, %v1392
        %v1394 = vpop.f32.mrf.mxu0
        %1395 = vdwg.mxu0
        %v1396 = vadd.f32 %v1311, %v1336
        %v1397 = vadd.f32 %v1312, %v1355
        %v1398 = vadd.f32 %v1313, %v1374
        %v1399 = vadd.f32 %v1314, %v1393
        %1400 = vst.msk [vmem:[#allocation6] sm:$0xff] %vm1084, %v1396
        %1401 = vst.msk [vmem:[#allocation6 + $0x8] sm:$0xff] %vm1084, %v1397
        %1402 = vst.msk [vmem:[#allocation6 + $0x10] sm:$0xff] %vm1084, %v1398
        %1403 = vst.msk [vmem:[#allocation6 + $0x18] sm:$0xff] %vm1084, %v1399
        %1404 = vst.msk [vmem:[#allocation4] sm:$0xf] %vm1081, %v1207
        %v1405 = vld [vmem:[#allocation6] sm:$0xff]
        %v1406 = vld [vmem:[#allocation6 + $0x8] sm:$0xff]
        %v1407 = vld [vmem:[#allocation6 + $0x10] sm:$0xff]
        %v1408 = vld [vmem:[#allocation6 + $0x18] sm:$0xff]
        %v1409 = vld [vmem:[#allocation5] sm:$0xf]
        %v1410 = vrcp.pop %v1409
        %v1411 = vperm.slane %v1410, 0
        %v1412 = vlaneseq
        %v1413 = vshrl.u32 %v1412, 7
        %1415 = vset.pattern.permute.xlu0 %v1413
        %1416 = vperm.xlu0 %1415, %v1411
        %v1417 = vpop.permute.xlu0 %1416
        %v1418 = vperm.slane %v1410, 1
        %v1419 = vlaneseq
        %v1420 = vshrl.u32 %v1419, 7
        %1422 = vset.pattern.permute.xlu0 %v1420
        %1423 = vperm.xlu0 %1422, %v1418
        %v1424 = vpop.permute.xlu0 %1423
        %v1425 = vperm.slane %v1410, 2
        %v1426 = vlaneseq
        %v1427 = vshrl.u32 %v1426, 7
        %1429 = vset.pattern.permute.xlu0 %v1427
        %1430 = vperm.xlu0 %1429, %v1425
        %v1431 = vpop.permute.xlu0 %1430
        %v1432 = vperm.slane %v1410, 3
        %v1433 = vlaneseq
        %v1434 = vshrl.u32 %v1433, 7
        %1436 = vset.pattern.permute.xlu0 %v1434
        %1437 = vperm.xlu0 %1436, %v1432
        %v1438 = vpop.permute.xlu0 %1437
        %v1439 = vmul.f32 %v1405, %v1417
        %v1440 = vmul.f32 %v1406, %v1424
        %v1441 = vmul.f32 %v1407, %v1431
        %v1442 = vmul.f32 %v1408, %v1438
        %v1443 = vpack.c.bf16 %v1439, %v1439
        %v1444 = vpack.c.bf16 %v1440, %v1440
        %v1445 = vpack.c.bf16 %v1441, %v1441
        %v1446 = vpack.c.bf16 %v1442, %v1442
        %v1447 = vld [vmem:[#allocation10] sm:$0xf]
        %v1448 = vld [vmem:[#allocation10 + $0x4] sm:$0xf]
        %v1449 = vld [vmem:[#allocation10 + $0x8] sm:$0xf]
        %v1450 = vld [vmem:[#allocation10 + $0xc] sm:$0xf]
        %v1452 = vsel %vm1084, %v1443, 0
        %v1455 = vsel %vm1322, %v1447, 0
        %1457 = vmatpush.bf16.msra.mxu0 0
        %1458 = vmatpush.bf16.msra.mxu0 0
        %1459 = vmatpush.bf16.msra.mxu0 0
        %1460 = vmatpush.bf16.msra.mxu0 0
        %1461 = vmatpush.bf16.msra.mxu0 0
        %1462 = vmatpush.bf16.msra.mxu0 0
        %1463 = vmatpush.bf16.msra.mxu0 0
        %1464 = vmatpush.bf16.msra.mxu0 %v1455
        %1465 = vmatmul.bf16.gmra.mxu0 %v1452
        %v1466 = vpop.f32.mrf.mxu0
        %v1467 = vadd.f32 0.0, %v1466
        %v1468 = vpop.f32.mrf.mxu0
        %1469 = vdwg.mxu0
        %v1471 = vsel %vm1084, %v1444, 0
        %v1474 = vsel %vm1322, %v1448, 0
        %1476 = vmatpush.bf16.msra.mxu0 0
        %1477 = vmatpush.bf16.msra.mxu0 0
        %1478 = vmatpush.bf16.msra.mxu0 0
        %1479 = vmatpush.bf16.msra.mxu0 0
        %1480 = vmatpush.bf16.msra.mxu0 0
        %1481 = vmatpush.bf16.msra.mxu0 0
        %1482 = vmatpush.bf16.msra.mxu0 0
        %1483 = vmatpush.bf16.msra.mxu0 %v1474
        %1484 = vmatmul.bf16.gmra.mxu0 %v1471
        %v1485 = vpop.f32.mrf.mxu0
        %v1486 = vadd.f32 0.0, %v1485
        %v1487 = vpop.f32.mrf.mxu0
        %1488 = vdwg.mxu0
        %v1490 = vsel %vm1084, %v1445, 0
        %v1493 = vsel %vm1322, %v1449, 0
        %1495 = vmatpush.bf16.msra.mxu0 0
        %1496 = vmatpush.bf16.msra.mxu0 0
        %1497 = vmatpush.bf16.msra.mxu0 0
        %1498 = vmatpush.bf16.msra.mxu0 0
        %1499 = vmatpush.bf16.msra.mxu0 0
        %1500 = vmatpush.bf16.msra.mxu0 0
        %1501 = vmatpush.bf16.msra.mxu0 0
        %1502 = vmatpush.bf16.msra.mxu0 %v1493
        %1503 = vmatmul.bf16.gmra.mxu0 %v1490
        %v1504 = vpop.f32.mrf.mxu0
        %v1505 = vadd.f32 0.0, %v1504
        %v1506 = vpop.f32.mrf.mxu0
        %1507 = vdwg.mxu0
        %v1509 = vsel %vm1084, %v1446, 0
        %v1512 = vsel %vm1322, %v1450, 0
        %1514 = vmatpush.bf16.msra.mxu0 0
        %1515 = vmatpush.bf16.msra.mxu0 0
        %1516 = vmatpush.bf16.msra.mxu0 0
        %1517 = vmatpush.bf16.msra.mxu0 0
        %1518 = vmatpush.bf16.msra.mxu0 0
        %1519 = vmatpush.bf16.msra.mxu0 0
        %1520 = vmatpush.bf16.msra.mxu0 0
        %1521 = vmatpush.bf16.msra.mxu0 %v1512
        %1522 = vmatmul.bf16.gmra.mxu0 %v1509
        %v1523 = vpop.f32.mrf.mxu0
        %v1524 = vadd.f32 0.0, %v1523
        %v1525 = vpop.f32.mrf.mxu0
        %1526 = vdwg.mxu0
        %v1527 = vsel %vm939, %v1467, 0.0
        %v1528 = vsel %vm939, %v1486, 0.0
        %v1529 = vadd.f32 %v1527, %v1528
        %v1530 = vsel %vm939, %v1505, 0.0
        %v1531 = vadd.f32 %v1529, %v1530
        %v1532 = vsel %vm939, %v1524, 0.0
        %v1533 = vadd.f32 %v1531, %v1532
        %v1534 = vld [vmem:[%s7] sm:$0x1]
        %v1536 = vperm.slane %v1534, 0
        %v1538 = vadd.f32 %v1533, %v1536
        %v1539 = vadd.f32 %v917, %v1538
        %v1540 = vsel %vm939, %v1539, 0.0
        %1541 = vadd.xlane.f32.xlu0 %v1540
        %v1542 = vpop.xlane.xlu0 %1541
        %v1543 = vrcp.pop 32.0
        %v1544 = vmul.f32 32.0, %v1543
        %v1545 = vsub.f32 1.0, %v1544
        %v1546 = vmul.f32 %v1543, %v1545
        %v1547 = vadd.f32 %v1543, %v1546
        %vm1548 = vweird.f32 %v1543
        %v1549 = vsel %vm1548, %v1543, %v1547
        %v1550 = vmul.f32 %v1542, %v1549
        %v1551 = vsub.f32 %v1539, %v1550
        %v1552 = vmul.f32 %v1551, %v1551
        %v1553 = vsel %vm939, %v1552, 0.0
        %1554 = vadd.xlane.f32.xlu0 %v1553
        %v1555 = vpop.xlane.xlu0 %1554
        %v1556 = vmul.f32 %v1555, %v1549
        %v1557 = vadd.f32 %v1556, 1e-05
        %v1558 = vrsqrt.pop %v1557
        %v1559 = vmul.f32 %v1558, %v1557
        %v1560 = vmul.f32 %v1559, %v1558
        %v1561 = vmul.f32 0.5, %v1560
        %v1562 = vsub.f32 1.5, %v1561
        %v1563 = vmul.f32 %v1558, %v1562
        %vm1564 = vweird.f32 %v1557
        %vm1565 = vweird.f32 %v1558
        %vm1566 = vmor %vm1564, %vm1565
        %v1567 = vsel %vm1566, %v1558, %v1563
        %v1568 = vmul.f32 %v1551, %v1567
        %v1569 = vld [vmem:[%s8] sm:$0x1]
        %v1571 = vperm.slane %v1569, 0
        %v1573 = vmul.f32 %v1568, %v1571
        %v1574 = vld [vmem:[%s9] sm:$0x1]
        %v1576 = vperm.slane %v1574, 0
        %v1578 = vadd.f32 %v1573, %v1576
        %v1579 = vpack.c.bf16 %v1578, %v1578
        %v1580 = vld [vmem:[#allocation12] sm:$0xf]
        %v1581 = vld [vmem:[#allocation12 + $0x4] sm:$0xf]
        %v1582 = vld [vmem:[#allocation12 + $0x8] sm:$0xf]
        %v1583 = vld [vmem:[#allocation12 + $0xc] sm:$0xf]
        %v1584 = vld [vmem:[%s11] sm:$0x1]
        %v1586 = vperm.slane %v1584, 0
        %v1592 = vunpack.c.l.b16 %v1580
        %v1593 = vunpack.c.l.b16 %v1581
        %v1594 = vunpack.c.l.b16 %v1582
        %v1595 = vunpack.c.l.b16 %v1583
        %v1596 = vpack.c.b16 %v1593, %v1592
        %v1597 = vpack.c.b16 %v1595, %v1594
        %v1601 = vsel %vm939, %v1579, 0
        %1603 = vmatpush.bf16.msra.mxu0 0
        %1604 = vmatpush.bf16.msra.mxu0 0
        %1605 = vmatpush.bf16.msra.mxu0 0
        %1606 = vmatpush.bf16.msra.mxu0 0
        %1607 = vmatpush.bf16.msra.mxu0 0
        %1608 = vmatpush.bf16.msra.mxu0 0
        %1609 = vmatpush.bf16.msra.mxu0 %v1597
        %1610 = vmatpush.bf16.msra.mxu0 %v1596
        %1611 = vmatmul.bf16.gmra.mxu0 %v1601
        %v1612 = vpop.f32.mrf.mxu0
        %v1613 = vadd.f32 %v1586, %v1612
        %v1614 = vpop.f32.mrf.mxu0
        %1615 = vdwg.mxu0
        %v1616 = vmax.f32 %v1613, 0.0
        %v1617 = vpack.c.bf16 %v1616, %v1616
        %v1618 = vld [vmem:[%s12] sm:$0xf]
        %v1619 = vld [vmem:[%s12 + $0x4] sm:$0xf]
        %v1620 = vld [vmem:[%s12 + $0x8] sm:$0xf]
        %v1621 = vld [vmem:[%s12 + $0xc] sm:$0xf]
        %v1622 = vld [vmem:[%s12 + $0x10] sm:$0xf]
        %v1623 = vld [vmem:[%s12 + $0x14] sm:$0xf]
        %v1624 = vld [vmem:[%s12 + $0x18] sm:$0xf]
        %v1625 = vld [vmem:[%s12 + $0x1c] sm:$0xf]
        %v1626 = vld [vmem:[%s13] sm:$0x1]
        %v1628 = vperm.slane %v1626, 0
        %v1638 = vunpack.c.l.b16 %v1618
        %v1639 = vunpack.c.l.b16 %v1619
        %v1640 = vunpack.c.l.b16 %v1620
        %v1641 = vunpack.c.l.b16 %v1621
        %v1642 = vunpack.c.l.b16 %v1622
        %v1643 = vunpack.c.l.b16 %v1623
        %v1644 = vunpack.c.l.b16 %v1624
        %v1645 = vunpack.c.l.b16 %v1625
        %v1646 = vpack.c.b16 %v1639, %v1638
        %v1647 = vpack.c.b16 %v1641, %v1640
        %v1648 = vpack.c.b16 %v1643, %v1642
        %v1649 = vpack.c.b16 %v1645, %v1644
        %vm1654 = vcmask 523264
        %v1656 = vsel %vm1654, %v1617, 0
        %1658 = vmatpush.bf16.msra.mxu0 0
        %1659 = vmatpush.bf16.msra.mxu0 0
        %1660 = vmatpush.bf16.msra.mxu0 0
        %1661 = vmatpush.bf16.msra.mxu0 0
        %1662 = vmatpush.bf16.msra.mxu0 %v1649
        %1663 = vmatpush.bf16.msra.mxu0 %v1648
        %1664 = vmatpush.bf16.msra.mxu0 %v1647
        %1665 = vmatpush.bf16.msra.mxu0 %v1646
        %1666 = vmatmul.bf16.gmra.mxu0 %v1656
        %v1667 = vpop.f32.mrf.mxu0
        %v1668 = vadd.f32 %v1628, %v1667
        %v1669 = vpop.f32.mrf.mxu0
        %1670 = vdwg.mxu0
        %v1671 = vadd.f32 %v1578, %v1668
        %v1672 = vsel %vm939, %v1671, 0.0
        %1673 = vadd.xlane.f32.xlu0 %v1672
        %v1674 = vpop.xlane.xlu0 %1673
        %v1675 = vmul.f32 %v1674, %v1549
        %v1676 = vsub.f32 %v1671, %v1675
        %v1677 = vmul.f32 %v1676, %v1676
        %v1678 = vsel %vm939, %v1677, 0.0
        %1679 = vadd.xlane.f32.xlu0 %v1678
        %v1680 = vpop.xlane.xlu0 %1679
        %v1681 = vmul.f32 %v1680, %v1549
        %v1682 = vadd.f32 %v1681, 1e-05
        %v1683 = vrsqrt.pop %v1682
        %v1684 = vmul.f32 %v1683, %v1682
        %v1685 = vmul.f32 %v1684, %v1683
        %v1686 = vmul.f32 0.5, %v1685
        %v1687 = vsub.f32 1.5, %v1686
        %v1688 = vmul.f32 %v1683, %v1687
        %vm1689 = vweird.f32 %v1682
        %vm1690 = vweird.f32 %v1683
        %vm1691 = vmor %vm1689, %vm1690
        %v1692 = vsel %vm1691, %v1683, %v1688
        %v1693 = vmul.f32 %v1676, %v1692
        %v1694 = vld [vmem:[%s14] sm:$0x1]
        %v1696 = vperm.slane %v1694, 0
        %v1698 = vmul.f32 %v1693, %v1696
        %v1699 = vld [vmem:[%s15] sm:$0x1]
        %v1701 = vperm.slane %v1699, 0
        %v1703 = vadd.f32 %v1698, %v1701
        %1704 = vst.msk [vmem:[%s606] sm:$0xff] %vm939, %v1703
        %s1705 = sand.u32 %s404, 1
        %s1706 = scalar_lea.sflag [#allocation9], %s1705
        %s1707 = sand.u32 %s404, 1
        %s1708 = smul.addr %s1707, 8
        %s1709 = scalar_lea.vmem [#allocation13], %s1708
        // Predicated region
        $region101: #{tpu_custom_call.1} parent=83 // pred_check
          %p1710 = pneg %p414
        $region102: #{tpu_custom_call.1} parent=83 // pred_check_branch
          %1712 = sbr.rel (%p1710) target = $region104
        $region103: #{tpu_custom_call.1} parent=83 // pred_region
          %1714 = vsyncadd %s1706, 0
          %s1715 = sadd.s32 %s39, %s38
          %s1716 = smul.addr %s1715, 8
          %s1717 = scalar_lea.hbm %s16, %s1716
          %s1719 = sshll.u32 %s1709, 4
          %s1720 = int_to_ptr.vmem [resolvable:$true] %s1719
          %s1721 = sshll.u32 %s1717, 4
          %s1722 = int_to_ptr.hbm [resolvable:$true] %s1721
          %1724 = dma.vmem_to_hbm [thread:$0]  %s1720, 128, %s1722, %s1706
        $region104: #{tpu_custom_call.1} parent=83 // pred_fallthru
          _
      $region84: #{tpu_custom_call.1} parent=5 // pred_fallthru
        _
      %p1725 = scmp.le.s32.totalorder 2, %s29
      // Predicated region
      $region105: #{tpu_custom_call.1} parent=5 // pred_check
        %p1726 = pneg %p1725
      $region106: #{tpu_custom_call.1} parent=5 // pred_check_branch
        %1728 = sbr.rel (%p1726) target = $region108
      $region107: #{tpu_custom_call.1} parent=5 // pred_region
        %s1729 = ssub.s32 %s29, 2
        // Predicated region
        $region109: #{tpu_custom_call.1} parent=107 // pred_check
          %p1730 = pneg %p420
        $region110: #{tpu_custom_call.1} parent=107 // pred_check_branch
          %1732 = sbr.rel (%p1730) target = $region112
        $region111: #{tpu_custom_call.1} parent=107 // pred_region
          %s1733 = sand.u32 %s405, 1
          %s1734 = scalar_lea.sflag [#allocation9], %s1733
          %s1735 = sand.u32 %s405, 1
          %s1736 = smul.addr %s1735, 8
          %s1737 = scalar_lea.vmem [#allocation13], %s1736
          %1739 = dma.done %s1734, 128
        $region112: #{tpu_custom_call.1} parent=107 // pred_fallthru
          _
      $region108: #{tpu_custom_call.1} parent=5 // pred_fallthru
        _
    $region6: #{tpu_custom_call.1} parent=1 // loop_footer
      %s33 = sadd.s32 1, %s29
    $region7: #{tpu_custom_call.1} parent=1 // loop_footer_branch
      %28 = sbr.rel target = $region3
    $region8: #{tpu_custom_call.1} parent=1 // loop_exit
      _
    %1740 = vsyncpa [#allocation8], 1
    %s1741 = scalar_lea.sflag [#allocation8], 1
    %1742 = vsyncpa %s1741, 1
    %1743 = vsyncpa [#allocation11], 1
    %1744 = vsyncpa [#allocation9], 1
    %s1745 = scalar_lea.sflag [#allocation9], 1
    %1746 = vsyncpa %s1745, 1

</llo_original>
